<compile_context>
chip_gen: v7x
topology: tpu7x:2x2x1
jax: 0.10.0
libtpu: 0.0.40
codegen_flags: <defaults>
</compile_context>

<pallas_src>
import jax
import jax.numpy as jnp
from jax.experimental import pallas as pl
from jax.experimental.pallas import tpu as pltpu

D_IN, D_H, D_OUT = 28 * 28, 800, 10      # logical (PyTorch) dims
D_H_P, D_OUT_P = 896, 128                # 128-aligned padded N dims


def _mlp_kernel(x_ref, w1_ref, b1_ref, w2_ref, b2_ref, w3_ref, b3_ref, o_ref):
    """Fused 3-layer MLP forward for one (bm, 784) batch tile.

    Matmuls run on the MXU with bf16 operands and f32 accumulation; the tanh
    epilogues run in bf16 on the EUP (fast path on v6e/v7x, auto-widened on v5e).
    """
    x = x_ref[...].astype(jnp.bfloat16)                       # (bm, 784)

    h1 = jnp.dot(x, w1_ref[...], preferred_element_type=jnp.float32) + b1_ref[...]
    h1 = jnp.tanh(h1.astype(jnp.bfloat16))                    # (bm, 896) bf16

    h2 = jnp.dot(h1, w2_ref[...], preferred_element_type=jnp.float32) + b2_ref[...]
    h2 = jnp.tanh(h2.astype(jnp.bfloat16))                    # (bm, 896) bf16

    out = jnp.dot(h2, w3_ref[...], preferred_element_type=jnp.float32) + b3_ref[...]
    o_ref[...] = out                                          # (bm, 128) f32, lane-dense


def _choose_bm(batch):
    """Adaptive batch tile (static at trace time, multiple of 8)."""
    b8 = max(8, ((batch + 7) // 8) * 8)
    if b8 >= 1024:
        return 512
    if b8 >= 512:
        return 256
    if b8 >= 256:
        return 128
    # Small batch: aim for >=2 grid tiles (v7x megacore), 8-row aligned.
    half = (b8 + 1) // 2
    return max(8, ((half + 7) // 8) * 8)


def prepare_params(params):
    """One-time padding/bf16 cast of (in, out)-layout params to kernel layout.

    Padded weight rows/cols and bias entries are zero, so tanh(0)=0 keeps the
    padded hidden units inert; padded output columns are sliced off in the wrapper.
    """
    w1, b1, w2, b2, w3, b3 = params
    w1_p = jnp.zeros((D_IN, D_H_P), jnp.bfloat16).at[:, :D_H].set(w1.astype(jnp.bfloat16))
    b1_p = jnp.zeros((1, D_H_P), jnp.float32).at[:, :D_H].set(b1)
    w2_p = jnp.zeros((D_H_P, D_H_P), jnp.bfloat16).at[:D_H, :D_H].set(w2.astype(jnp.bfloat16))
    b2_p = jnp.zeros((1, D_H_P), jnp.float32).at[:, :D_H].set(b2)
    w3_p = jnp.zeros((D_H_P, D_OUT_P), jnp.bfloat16).at[:D_H, :D_OUT].set(w3.astype(jnp.bfloat16))
    b3_p = jnp.zeros((1, D_OUT_P), jnp.float32).at[:, :D_OUT].set(b3)
    return (w1_p, b1_p, w2_p, b2_p, w3_p, b3_p)


@jax.jit
def mnist_classifier_forward(img, padded_params):
    """img: (B, 1, 28, 28) float32 NCHW. padded_params: output of prepare_params.
    Returns logits (B, 10) float32."""
    w1_p, b1_p, w2_p, b2_p, w3_p, b3_p = padded_params
    x = img.reshape(-1, D_IN).astype(jnp.float32)   # same semantics as torch .view(-1, 784)
    B = x.shape[0]
    bm = _choose_bm(B)
    n_tiles = pl.cdiv(B, bm)
    B_pad = n_tiles * bm
    if B_pad != B:
        x = jnp.pad(x, ((0, B_pad - B), (0, 0)))    # zero rows -> discarded below

    grid_spec = pltpu.PrefetchScalarGridSpec(
        num_scalar_prefetch=0,
        grid=(n_tiles,),
        in_specs=[
            pl.BlockSpec((bm, D_IN), lambda i: (i, 0)),        # x tile, f32, K=784 unpadded
            pl.BlockSpec((D_IN, D_H_P), lambda i: (0, 0)),     # W1 (resident, bf16)
            pl.BlockSpec((1, D_H_P), lambda i: (0, 0)),        # b1 (f32)
            pl.BlockSpec((D_H_P, D_H_P), lambda i: (0, 0)),    # W2
            pl.BlockSpec((1, D_H_P), lambda i: (0, 0)),        # b2
            pl.BlockSpec((D_H_P, D_OUT_P), lambda i: (0, 0)),  # W3 (128-padded N)
            pl.BlockSpec((1, D_OUT_P), lambda i: (0, 0)),      # b3
        ],
        out_specs=pl.BlockSpec((bm, D_OUT_P), lambda i: (i, 0)),
    )

    out = pl.pallas_call(
        _mlp_kernel,
        out_shape=jax.ShapeDtypeStruct((B_pad, D_OUT_P), jnp.float32),
        grid_spec=grid_spec,
        compiler_params=pltpu.CompilerParams(
            dimension_semantics=("parallel",),
            vmem_limit_bytes=48 << 20,  # ample at bm<=512; safe on v7x's 64 MiB VMEM
        ),
    )(x, w1_p, b1_p, w2_p, b2_p, w3_p, b3_p)

    return out[:B, :D_OUT]


def init_params(key):
    """Deterministic init matching nn.Linear's U(-1/sqrt(fan_in), 1/sqrt(fan_in)).

    Weights are stored as (in_features, out_features) — the transpose of
    PyTorch's (out, in) layout — so the kernel can do x @ W directly.
    """
    ks = jax.random.split(key, 6)

    def lin(kw, kb, fan_in, fan_out):
        bound = 1.0 / jnp.sqrt(jnp.float32(fan_in))
        w = jax.random.uniform(kw, (fan_in, fan_out), jnp.float32, -bound, bound)
        b = jax.random.uniform(kb, (1, fan_out), jnp.float32, -bound, bound)
        return w, b

    w1, b1 = lin(ks[0], ks[1], D_IN, D_H)
    w2, b2 = lin(ks[2], ks[3], D_H, D_H)
    w3, b3 = lin(ks[4], ks[5], D_H, D_OUT)
    return (w1, b1, w2, b2, w3, b3)


def _reference_forward(img, params):
    w1, b1, w2, b2, w3, b3 = params
    x = img.reshape(-1, D_IN)
    h1 = jnp.tanh(x @ w1 + b1)
    h2 = jnp.tanh(h1 @ w2 + b2)
    return h2 @ w3 + b3


if __name__ == "__main__":
    key = jax.random.PRNGKey(0)
    k_img, k_par = jax.random.split(key)

    params = init_params(k_par)
    padded_params = prepare_params(params)   # one-time pad/cast, reused every call

    # Case 1: tiny batch (single tile).
    B1 = 8
    img1 = jax.random.normal(k_img, (B1, 1, 28, 28), jnp.float32)
    logits1 = jax.block_until_ready(mnist_classifier_forward(img1, padded_params))
    ref1 = _reference_forward(img1, params)
    assert logits1.shape == (B1, 10)
    # bf16 matmul operands / bf16 tanh with f32 accumulation -> relaxed tolerance.
    assert jnp.allclose(logits1, ref1, atol=5e-2, rtol=5e-2), (
        float(jnp.max(jnp.abs(logits1 - ref1))))

    # Case 2: batch that exercises the multi-tile grid + row padding path.
    B2 = 40
    img2 = jax.random.normal(jax.random.fold_in(k_img, 1), (B2, 1, 28, 28), jnp.float32)
    logits2 = jax.block_until_ready(mnist_classifier_forward(img2, padded_params))
    ref2 = _reference_forward(img2, params)
    assert logits2.shape == (B2, 10)
    assert jnp.allclose(logits2, ref2, atol=5e-2, rtol=5e-2), (
        float(jnp.max(jnp.abs(logits2 - ref2))))

    print("KERNEL_OK")
</pallas_src>

<mosaic_0001>
module attributes {stable_mosaic.version = 11 : i64} {
  func.func @_mlp_kernel(%arg0: i32, %arg1: memref<8x784xf32, #tpu.memory_space<vmem>>, %arg2: memref<784x896xbf16, #tpu.memory_space<vmem>>, %arg3: memref<1x896xf32, #tpu.memory_space<vmem>>, %arg4: memref<896x896xbf16, #tpu.memory_space<vmem>>, %arg5: memref<1x896xf32, #tpu.memory_space<vmem>>, %arg6: memref<896x128xbf16, #tpu.memory_space<vmem>>, %arg7: memref<1x128xf32, #tpu.memory_space<vmem>>, %arg8: memref<8x128xf32, #tpu.memory_space<vmem>>) attributes {dimension_semantics = [#tpu.dimension_semantics<parallel>], iteration_bounds = array<i64: 1>, scalar_prefetch = 0 : i64, scratch_operands = 0 : i64, tpu.core_type = #tpu.core_type<tc>, window_params = [{transform_indices = @transform_0, window_bounds = array<i64: 8, 784>}, {pipeline_mode = #tpu.pipeline_mode<synchronous>, transform_indices = @transform_1, window_bounds = array<i64: 784, 896>}, {pipeline_mode = #tpu.pipeline_mode<synchronous>, transform_indices = @transform_2, window_bounds = array<i64: 1, 896>}, {pipeline_mode = #tpu.pipeline_mode<synchronous>, transform_indices = @transform_3, window_bounds = array<i64: 896, 896>}, {pipeline_mode = #tpu.pipeline_mode<synchronous>, transform_indices = @transform_4, window_bounds = array<i64: 1, 896>}, {pipeline_mode = #tpu.pipeline_mode<synchronous>, transform_indices = @transform_5, window_bounds = array<i64: 896, 128>}, {pipeline_mode = #tpu.pipeline_mode<synchronous>, transform_indices = @transform_6, window_bounds = array<i64: 1, 128>}, {transform_indices = @transform_7, window_bounds = array<i64: 8, 128>}]} {
    %c0 = arith.constant 0 : index
    %c0_0 = arith.constant 0 : index
    %0 = vector.load %arg1[%c0, %c0_0] : memref<8x784xf32, #tpu.memory_space<vmem>>, vector<8x784xf32>
    %1 = arith.truncf %0 : vector<8x784xf32> to vector<8x784xbf16>
    %c0_1 = arith.constant 0 : index
    %c0_2 = arith.constant 0 : index
    %2 = vector.load %arg2[%c0_1, %c0_2] : memref<784x896xbf16, #tpu.memory_space<vmem>>, vector<784x896xbf16>
    %cst = arith.constant dense<0.000000e+00> : vector<8x896xf32>
    %3 = tpu.matmul %1, %2, %cst {dimension_numbers = #tpu.dot_dimension_numbers<[1], [0], [0], [1], [0, 0, 1, 1], [], []>} : vector<8x784xbf16>, vector<784x896xbf16>, vector<8x896xf32> -> vector<8x896xf32>
    %c0_3 = arith.constant 0 : index
    %c0_4 = arith.constant 0 : index
    %4 = vector.load %arg3[%c0_3, %c0_4] : memref<1x896xf32, #tpu.memory_space<vmem>>, vector<1x896xf32>
    %5 = vector.broadcast %4 : vector<1x896xf32> to vector<8x896xf32>
    %6 = arith.addf %3, %5 : vector<8x896xf32>
    %7 = arith.truncf %6 : vector<8x896xf32> to vector<8x896xbf16>
    %8 = math.tanh %7 : vector<8x896xbf16>
    %c0_5 = arith.constant 0 : index
    %c0_6 = arith.constant 0 : index
    %9 = vector.load %arg4[%c0_5, %c0_6] : memref<896x896xbf16, #tpu.memory_space<vmem>>, vector<896x896xbf16>
    %cst_7 = arith.constant dense<0.000000e+00> : vector<8x896xf32>
    %10 = tpu.matmul %8, %9, %cst_7 {dimension_numbers = #tpu.dot_dimension_numbers<[1], [0], [0], [1], [0, 0, 1, 1], [], []>} : vector<8x896xbf16>, vector<896x896xbf16>, vector<8x896xf32> -> vector<8x896xf32>
    %c0_8 = arith.constant 0 : index
    %c0_9 = arith.constant 0 : index
    %11 = vector.load %arg5[%c0_8, %c0_9] : memref<1x896xf32, #tpu.memory_space<vmem>>, vector<1x896xf32>
    %12 = vector.broadcast %11 : vector<1x896xf32> to vector<8x896xf32>
    %13 = arith.addf %10, %12 : vector<8x896xf32>
    %14 = arith.truncf %13 : vector<8x896xf32> to vector<8x896xbf16>
    %15 = math.tanh %14 : vector<8x896xbf16>
    %c0_10 = arith.constant 0 : index
    %c0_11 = arith.constant 0 : index
    %16 = vector.load %arg6[%c0_10, %c0_11] : memref<896x128xbf16, #tpu.memory_space<vmem>>, vector<896x128xbf16>
    %cst_12 = arith.constant dense<0.000000e+00> : vector<8x128xf32>
    %17 = tpu.matmul %15, %16, %cst_12 {dimension_numbers = #tpu.dot_dimension_numbers<[1], [0], [0], [1], [0, 0, 1, 1], [], []>} : vector<8x896xbf16>, vector<896x128xbf16>, vector<8x128xf32> -> vector<8x128xf32>
    %c0_13 = arith.constant 0 : index
    %c0_14 = arith.constant 0 : index
    %18 = vector.load %arg7[%c0_13, %c0_14] : memref<1x128xf32, #tpu.memory_space<vmem>>, vector<1x128xf32>
    %19 = vector.broadcast %18 : vector<1x128xf32> to vector<8x128xf32>
    %20 = arith.addf %17, %19 : vector<8x128xf32>
    %c0_15 = arith.constant 0 : index
    %c0_16 = arith.constant 0 : index
    %21 = vector.load %arg8[%c0_15, %c0_16] : memref<8x128xf32, #tpu.memory_space<vmem>>, vector<8x128xf32>
    tpu.vector_store %arg8[%c0_15, %c0_16], %20 {strides = array<i32>} : memref<8x128xf32, #tpu.memory_space<vmem>>, vector<8x128xf32>,
    return
  }
  func.func @transform_0(%arg0: i32) -> (i32, i32) {
    %c0_i32 = arith.constant 0 : i32
    %c0_i32_0 = arith.constant 0 : i32
    return %arg0, %c0_i32 : i32, i32
  }
  func.func @transform_1(%arg0: i32) -> (i32, i32) {
    %c0_i32 = arith.constant 0 : i32
    %c0_i32_0 = arith.constant 0 : i32
    %c0_i32_1 = arith.constant 0 : i32
    return %c0_i32, %c0_i32_0 : i32, i32
  }
  func.func @transform_2(%arg0: i32) -> (i32, i32) {
    %c0_i32 = arith.constant 0 : i32
    %c0_i32_0 = arith.constant 0 : i32
    %c0_i32_1 = arith.constant 0 : i32
    return %c0_i32, %c0_i32_0 : i32, i32
  }
  func.func @transform_3(%arg0: i32) -> (i32, i32) {
    %c0_i32 = arith.constant 0 : i32
    %c0_i32_0 = arith.constant 0 : i32
    %c0_i32_1 = arith.constant 0 : i32
    return %c0_i32, %c0_i32_0 : i32, i32
  }
  func.func @transform_4(%arg0: i32) -> (i32, i32) {
    %c0_i32 = arith.constant 0 : i32
    %c0_i32_0 = arith.constant 0 : i32
    %c0_i32_1 = arith.constant 0 : i32
    return %c0_i32, %c0_i32_0 : i32, i32
  }
  func.func @transform_5(%arg0: i32) -> (i32, i32) {
    %c0_i32 = arith.constant 0 : i32
    %c0_i32_0 = arith.constant 0 : i32
    %c0_i32_1 = arith.constant 0 : i32
    return %c0_i32, %c0_i32_0 : i32, i32
  }
  func.func @transform_6(%arg0: i32) -> (i32, i32) {
    %c0_i32 = arith.constant 0 : i32
    %c0_i32_0 = arith.constant 0 : i32
    %c0_i32_1 = arith.constant 0 : i32
    return %c0_i32, %c0_i32_0 : i32, i32
  }
  func.func @transform_7(%arg0: i32) -> (i32, i32) {
    %c0_i32 = arith.constant 0 : i32
    %c0_i32_0 = arith.constant 0 : i32
    return %arg0, %c0_i32 : i32, i32
  }
}

</mosaic_0001>

<llo_original>
// kernel: mnist_classifier_forward.1
$region0: #{mnist_classifier_forward.1}
  #allocation0 [shape = 'u32[]', space=smem, size = 0x4, offset = 0x4, fixed_abs, tag = 'smem constant byte address 0x4 - core index']
  #allocation1 [shape = 'u32[144,128]{1,0:T(1,128)}', space=vmem, size = 0x12000, scoped, tag = 'internal scratch']
  %s0 = inlined_call_operand.vmem [shape: f32[8,784], index: 0, kind: input, shape index: {}]
  %s1 = inlined_call_operand.hbm [shape: bf16[784,896], index: 1, kind: input, shape index: {}]
  %s2 = inlined_call_operand.hbm [shape: f32[1,896], index: 2, kind: input, shape index: {}]
  %s3 = inlined_call_operand.hbm [shape: bf16[896,896], index: 3, kind: input, shape index: {}]
  %s4 = inlined_call_operand.hbm [shape: f32[1,896], index: 4, kind: input, shape index: {}]
  %s5 = inlined_call_operand.hbm [shape: bf16[896,128], index: 5, kind: input, shape index: {}]
  %s6 = inlined_call_operand.hbm [shape: f32[1,128], index: 6, kind: input, shape index: {}]
  %s7 = inlined_call_operand.hbm [shape: f32[8,128], index: 7, kind: output, shape index: {}]
  %s8 = sld [smem:[#allocation0]]
  $region62: #{mnist_classifier_forward.1} parent=0
    _
  %s10 = ssub.s32 1, %s8
  %s11 = scalar_select 0, %s10, %s8
  $region1: #{mnist_classifier_forward.1} parent=0
    #allocation2 [shape = 'u8[1404928]{0}', space=vmem, size = 0x157000, scoped, tag = 'input window, operand 1, single buffered']
    #allocation3 [shape = 's32[1]{0}', space=sflag, size = 0x4, scoped, tag = 'scoped memory for mnist_classifier_forward.1']
    #allocation4 [shape = 's32[1]{0}', space=sflag, size = 0x4, scoped, tag = 'scoped memory for mnist_classifier_forward.1']
    #allocation5 [shape = 'u8[3584]{0}', space=vmem, size = 0x1000, scoped, tag = 'input window, operand 2, single buffered']
    #allocation6 [shape = 's32[1]{0}', space=sflag, size = 0x4, scoped, tag = 'scoped memory for mnist_classifier_forward.1']
    #allocation7 [shape = 'u8[1605632]{0}', space=vmem, size = 0x188000, scoped, tag = 'input window, operand 3, single buffered']
    #allocation8 [shape = 'u8[3584]{0}', space=vmem, size = 0x1000, scoped, tag = 'input window, operand 4, single buffered']
    #allocation9 [shape = 's32[1]{0}', space=sflag, size = 0x4, scoped, tag = 'scoped memory for mnist_classifier_forward.1']
    #allocation10 [shape = 'u8[229376]{0}', space=vmem, size = 0x38000, scoped, tag = 'input window, operand 5, single buffered']
    #allocation11 [shape = 'u8[512]{0}', space=vmem, size = 0x400, scoped, tag = 'input window, operand 6, single buffered']
    #allocation12 [shape = 's32[1]{0}', space=sflag, size = 0x4, scoped, tag = 'scoped memory for mnist_classifier_forward.1']
    #allocation13 [shape = 'u8[4096]{0}', space=vmem, size = 0x1000, scoped, tag = 'output window, operand 0, single buffered']
    %12 = vsyncpa [#allocation3], 0
    %13 = vsyncpa [#allocation6], 0
    %14 = vsyncpa [#allocation9], 0
    %15 = vsyncpa [#allocation12], 0
    %16 = vsyncpa [#allocation4], 0
    // Predicated region
    $region2: #{mnist_classifier_forward.1} parent=1 // pred_check
      _
    $region3: #{mnist_classifier_forward.1} parent=1 // pred_check_branch
      %18 = sbr.rel (0) target = $region5
    $region4: #{mnist_classifier_forward.1} parent=1 // pred_region
      _
    $region5: #{mnist_classifier_forward.1} parent=1 // pred_fallthru
      _
    // Predicated region
    $region6: #{mnist_classifier_forward.1} parent=1 // pred_check
      _
    $region7: #{mnist_classifier_forward.1} parent=1 // pred_check_branch
      %20 = sbr.rel (0) target = $region9
    $region8: #{mnist_classifier_forward.1} parent=1 // pred_region
      %s22 = ssub.s32 43904, 43904
      %23 = vsyncadd [#allocation3], %s22
      %s24 = sshll.u32 [#allocation2], 4
      %s25 = int_to_ptr.vmem [resolvable:$true] %s24
      %30 = dma.hbm_to_vmem [thread:$0]  %s1, 43904, %s25, [#allocation3], 448, 448, 28
    $region9: #{mnist_classifier_forward.1} parent=1 // pred_fallthru
      _
    // Predicated region
    $region10: #{mnist_classifier_forward.1} parent=1 // pred_check
      _
    $region11: #{mnist_classifier_forward.1} parent=1 // pred_check_branch
      %32 = sbr.rel (0) target = $region13
    $region12: #{mnist_classifier_forward.1} parent=1 // pred_region
      %s34 = ssub.s32 112, 112
      %35 = vsyncadd [#allocation6], %s34
      %s37 = sshll.u32 [#allocation5], 4
      %s38 = int_to_ptr.vmem [resolvable:$true] %s37
      %40 = dma.hbm_to_vmem [thread:$0]  %s2, 112, %s38, [#allocation6]
    $region13: #{mnist_classifier_forward.1} parent=1 // pred_fallthru
      _
    // Predicated region
    $region14: #{mnist_classifier_forward.1} parent=1 // pred_check
      _
    $region15: #{mnist_classifier_forward.1} parent=1 // pred_check_branch
      %42 = sbr.rel (0) target = $region17
    $region16: #{mnist_classifier_forward.1} parent=1 // pred_region
      %s44 = ssub.s32 50176, 50176
      %45 = vsyncadd [#allocation6], %s44
      %s46 = sshll.u32 [#allocation7], 4
      %s47 = int_to_ptr.vmem [resolvable:$true] %s46
      %52 = dma.hbm_to_vmem [thread:$0]  %s3, 50176, %s47, [#allocation6], 448, 448, 28
    $region17: #{mnist_classifier_forward.1} parent=1 // pred_fallthru
      _
    // Predicated region
    $region18: #{mnist_classifier_forward.1} parent=1 // pred_check
      _
    $region19: #{mnist_classifier_forward.1} parent=1 // pred_check_branch
      %54 = sbr.rel (0) target = $region21
    $region20: #{mnist_classifier_forward.1} parent=1 // pred_region
      %s56 = ssub.s32 112, 112
      %57 = vsyncadd [#allocation9], %s56
      %s59 = sshll.u32 [#allocation8], 4
      %s60 = int_to_ptr.vmem [resolvable:$true] %s59
      %62 = dma.hbm_to_vmem [thread:$0]  %s4, 112, %s60, [#allocation9]
    $region21: #{mnist_classifier_forward.1} parent=1 // pred_fallthru
      _
    // Predicated region
    $region22: #{mnist_classifier_forward.1} parent=1 // pred_check
      _
    $region23: #{mnist_classifier_forward.1} parent=1 // pred_check_branch
      %64 = sbr.rel (0) target = $region25
    $region24: #{mnist_classifier_forward.1} parent=1 // pred_region
      %s66 = ssub.s32 7168, 7168
      %67 = vsyncadd [#allocation9], %s66
      %s68 = sshll.u32 [#allocation10], 4
      %s69 = int_to_ptr.vmem [resolvable:$true] %s68
      %74 = dma.hbm_to_vmem [thread:$0]  %s5, 7168, %s69, [#allocation9], 64, 64, 4
    $region25: #{mnist_classifier_forward.1} parent=1 // pred_fallthru
      _
    // Predicated region
    $region26: #{mnist_classifier_forward.1} parent=1 // pred_check
      _
    $region27: #{mnist_classifier_forward.1} parent=1 // pred_check_branch
      %76 = sbr.rel (0) target = $region29
    $region28: #{mnist_classifier_forward.1} parent=1 // pred_region
      %s78 = ssub.s32 16, 16
      %79 = vsyncadd [#allocation12], %s78
      %s81 = sshll.u32 [#allocation11], 4
      %s82 = int_to_ptr.vmem [resolvable:$true] %s81
      %84 = dma.hbm_to_vmem [thread:$0]  %s6, 16, %s82, [#allocation12]
    $region29: #{mnist_classifier_forward.1} parent=1 // pred_fallthru
      _
    // Predicated region
    $region30: #{mnist_classifier_forward.1} parent=1 // pred_check
      _
    $region31: #{mnist_classifier_forward.1} parent=1 // pred_check_branch
      %86 = sbr.rel (0) target = $region33
    $region32: #{mnist_classifier_forward.1} parent=1 // pred_region
      %87 = dma.done [#allocation3], 43904
    $region33: #{mnist_classifier_forward.1} parent=1 // pred_fallthru
      _
    // Predicated region
    $region34: #{mnist_classifier_forward.1} parent=1 // pred_check
      _
    $region35: #{mnist_classifier_forward.1} parent=1 // pred_check_branch
      %89 = sbr.rel (0) target = $region37
    $region36: #{mnist_classifier_forward.1} parent=1 // pred_region
      %90 = dma.done [#allocation6], 112
    $region37: #{mnist_classifier_forward.1} parent=1 // pred_fallthru
      _
    // Predicated region
    $region38: #{mnist_classifier_forward.1} parent=1 // pred_check
      _
    $region39: #{mnist_classifier_forward.1} parent=1 // pred_check_branch
      %92 = sbr.rel (0) target = $region41
    $region40: #{mnist_classifier_forward.1} parent=1 // pred_region
      %93 = dma.done [#allocation6], 50176
    $region41: #{mnist_classifier_forward.1} parent=1 // pred_fallthru
      _
    // Predicated region
    $region42: #{mnist_classifier_forward.1} parent=1 // pred_check
      _
    $region43: #{mnist_classifier_forward.1} parent=1 // pred_check_branch
      %95 = sbr.rel (0) target = $region45
    $region44: #{mnist_classifier_forward.1} parent=1 // pred_region
      %96 = dma.done [#allocation9], 112
    $region45: #{mnist_classifier_forward.1} parent=1 // pred_fallthru
      _
    // Predicated region
    $region46: #{mnist_classifier_forward.1} parent=1 // pred_check
      _
    $region47: #{mnist_classifier_forward.1} parent=1 // pred_check_branch
      %98 = sbr.rel (0) target = $region49
    $region48: #{mnist_classifier_forward.1} parent=1 // pred_region
      %99 = dma.done [#allocation9], 7168
    $region49: #{mnist_classifier_forward.1} parent=1 // pred_fallthru
      _
    // Predicated region
    $region50: #{mnist_classifier_forward.1} parent=1 // pred_check
      _
    $region51: #{mnist_classifier_forward.1} parent=1 // pred_check_branch
      %101 = sbr.rel (0) target = $region53
    $region52: #{mnist_classifier_forward.1} parent=1 // pred_region
      %102 = dma.done [#allocation12], 16
    $region53: #{mnist_classifier_forward.1} parent=1 // pred_fallthru
      _
    %v104 = vld [vmem:[%s0] sm:$0xff]
    %v105 = vld [vmem:[%s0 + $0x8] sm:$0xff]
    %v106 = vld [vmem:[%s0 + $0x10] sm:$0xff]
    %v107 = vld [vmem:[%s0 + $0x18] sm:$0xff]
    %v108 = vld [vmem:[%s0 + $0x20] sm:$0xff]
    %v109 = vld [vmem:[%s0 + $0x28] sm:$0xff]
    %v110 = vld [vmem:[%s0 + $0x30] sm:$0xff]
    %v111 = vpack.c.bf16 %v104, %v104
    %v112 = vpack.c.bf16 %v105, %v105
    %v113 = vpack.c.bf16 %v106, %v106
    %v114 = vpack.c.bf16 %v107, %v107
    %v115 = vpack.c.bf16 %v108, %v108
    %v116 = vpack.c.bf16 %v109, %v109
    %v117 = vpack.c.bf16 %v110, %v110
    %v118 = vld [vmem:[#allocation2] sm:$0xff]
    %v119 = vld [vmem:[#allocation2 + $0x8] sm:$0xff]
    %v120 = vld [vmem:[#allocation2 + $0x10] sm:$0xff]
    %v121 = vld [vmem:[#allocation2 + $0x18] sm:$0xf]
    %v122 = vld [vmem:[#allocation2 + $0x1c] sm:$0xff]
    %v123 = vld [vmem:[#allocation2 + $0x24] sm:$0xff]
    %v124 = vld [vmem:[#allocation2 + $0x2c] sm:$0xff]
    %v125 = vld [vmem:[#allocation2 + $0x34] sm:$0xf]
    %v126 = vld [vmem:[#allocation2 + $0x38] sm:$0xff]
    %v127 = vld [vmem:[#allocation2 + $0x40] sm:$0xff]
    %v128 = vld [vmem:[#allocation2 + $0x48] sm:$0xff]
    %v129 = vld [vmem:[#allocation2 + $0x50] sm:$0xf]
    %v130 = vld [vmem:[#allocation2 + $0x54] sm:$0xff]
    %v131 = vld [vmem:[#allocation2 + $0x5c] sm:$0xff]
    %v132 = vld [vmem:[#allocation2 + $0x64] sm:$0xff]
    %v133 = vld [vmem:[#allocation2 + $0x6c] sm:$0xf]
    %v134 = vld [vmem:[#allocation2 + $0x70] sm:$0xff]
    %v135 = vld [vmem:[#allocation2 + $0x78] sm:$0xff]
    %v136 = vld [vmem:[#allocation2 + $0x80] sm:$0xff]
    %v137 = vld [vmem:[#allocation2 + $0x88] sm:$0xf]
    %v138 = vld [vmem:[#allocation2 + $0x8c] sm:$0xff]
    %v139 = vld [vmem:[#allocation2 + $0x94] sm:$0xff]
    %v140 = vld [vmem:[#allocation2 + $0x9c] sm:$0xff]
    %v141 = vld [vmem:[#allocation2 + $0xa4] sm:$0xf]
    %v142 = vld [vmem:[#allocation2 + $0xa8] sm:$0xff]
    %v143 = vld [vmem:[#allocation2 + $0xb0] sm:$0xff]
    %v144 = vld [vmem:[#allocation2 + $0xb8] sm:$0xff]
    %v145 = vld [vmem:[#allocation2 + $0xc0] sm:$0xf]
    %v146 = vld [vmem:[#allocation2 + $0xc4] sm:$0xff]
    %v147 = vld [vmem:[#allocation2 + $0xcc] sm:$0xff]
    %v148 = vld [vmem:[#allocation2 + $0xd4] sm:$0xff]
    %v149 = vld [vmem:[#allocation2 + $0xdc] sm:$0xf]
    %v150 = vld [vmem:[#allocation2 + $0xe0] sm:$0xff]
    %v151 = vld [vmem:[#allocation2 + $0xe8] sm:$0xff]
    %v152 = vld [vmem:[#allocation2 + $0xf0] sm:$0xff]
    %v153 = vld [vmem:[#allocation2 + $0xf8] sm:$0xf]
    %v154 = vld [vmem:[#allocation2 + $0xfc] sm:$0xff]
    %v155 = vld [vmem:[#allocation2 + $0x104] sm:$0xff]
    %v156 = vld [vmem:[#allocation2 + $0x10c] sm:$0xff]
    %v157 = vld [vmem:[#allocation2 + $0x114] sm:$0xf]
    %v158 = vld [vmem:[#allocation2 + $0x118] sm:$0xff]
    %v159 = vld [vmem:[#allocation2 + $0x120] sm:$0xff]
    %v160 = vld [vmem:[#allocation2 + $0x128] sm:$0xff]
    %v161 = vld [vmem:[#allocation2 + $0x130] sm:$0xf]
    %v162 = vld [vmem:[#allocation2 + $0x134] sm:$0xff]
    %v163 = vld [vmem:[#allocation2 + $0x13c] sm:$0xff]
    %v164 = vld [vmem:[#allocation2 + $0x144] sm:$0xff]
    %v165 = vld [vmem:[#allocation2 + $0x14c] sm:$0xf]
    %v166 = vld [vmem:[#allocation2 + $0x150] sm:$0xff]
    %v167 = vld [vmem:[#allocation2 + $0x158] sm:$0xff]
    %v168 = vld [vmem:[#allocation2 + $0x160] sm:$0xff]
    %v169 = vld [vmem:[#allocation2 + $0x168] sm:$0xf]
    %v170 = vld [vmem:[#allocation2 + $0x16c] sm:$0xff]
    %v171 = vld [vmem:[#allocation2 + $0x174] sm:$0xff]
    %v172 = vld [vmem:[#allocation2 + $0x17c] sm:$0xff]
    %v173 = vld [vmem:[#allocation2 + $0x184] sm:$0xf]
    %v174 = vld [vmem:[#allocation2 + $0x188] sm:$0xff]
    %v175 = vld [vmem:[#allocation2 + $0x190] sm:$0xff]
    %v176 = vld [vmem:[#allocation2 + $0x198] sm:$0xff]
    %v177 = vld [vmem:[#allocation2 + $0x1a0] sm:$0xf]
    %v178 = vld [vmem:[#allocation2 + $0x1a4] sm:$0xff]
    %v179 = vld [vmem:[#allocation2 + $0x1ac] sm:$0xff]
    %v180 = vld [vmem:[#allocation2 + $0x1b4] sm:$0xff]
    %v181 = vld [vmem:[#allocation2 + $0x1bc] sm:$0xf]
    %v182 = vld [vmem:[#allocation2 + $0x1c0] sm:$0xff]
    %v183 = vld [vmem:[#allocation2 + $0x1c8] sm:$0xff]
    %v184 = vld [vmem:[#allocation2 + $0x1d0] sm:$0xff]
    %v185 = vld [vmem:[#allocation2 + $0x1d8] sm:$0xf]
    %v186 = vld [vmem:[#allocation2 + $0x1dc] sm:$0xff]
    %v187 = vld [vmem:[#allocation2 + $0x1e4] sm:$0xff]
    %v188 = vld [vmem:[#allocation2 + $0x1ec] sm:$0xff]
    %v189 = vld [vmem:[#allocation2 + $0x1f4] sm:$0xf]
    %v190 = vld [vmem:[#allocation2 + $0x1f8] sm:$0xff]
    %v191 = vld [vmem:[#allocation2 + $0x200] sm:$0xff]
    %v192 = vld [vmem:[#allocation2 + $0x208] sm:$0xff]
    %v193 = vld [vmem:[#allocation2 + $0x210] sm:$0xf]
    %v194 = vld [vmem:[#allocation2 + $0x214] sm:$0xff]
    %v195 = vld [vmem:[#allocation2 + $0x21c] sm:$0xff]
    %v196 = vld [vmem:[#allocation2 + $0x224] sm:$0xff]
    %v197 = vld [vmem:[#allocation2 + $0x22c] sm:$0xf]
    %v198 = vld [vmem:[#allocation2 + $0x230] sm:$0xff]
    %v199 = vld [vmem:[#allocation2 + $0x238] sm:$0xff]
    %v200 = vld [vmem:[#allocation2 + $0x240] sm:$0xff]
    %v201 = vld [vmem:[#allocation2 + $0x248] sm:$0xf]
    %v202 = vld [vmem:[#allocation2 + $0x24c] sm:$0xff]
    %v203 = vld [vmem:[#allocation2 + $0x254] sm:$0xff]
    %v204 = vld [vmem:[#allocation2 + $0x25c] sm:$0xff]
    %v205 = vld [vmem:[#allocation2 + $0x264] sm:$0xf]
    %v206 = vld [vmem:[#allocation2 + $0x268] sm:$0xff]
    %v207 = vld [vmem:[#allocation2 + $0x270] sm:$0xff]
    %v208 = vld [vmem:[#allocation2 + $0x278] sm:$0xff]
    %v209 = vld [vmem:[#allocation2 + $0x280] sm:$0xf]
    %v210 = vld [vmem:[#allocation2 + $0x284] sm:$0xff]
    %v211 = vld [vmem:[#allocation2 + $0x28c] sm:$0xff]
    %v212 = vld [vmem:[#allocation2 + $0x294] sm:$0xff]
    %v213 = vld [vmem:[#allocation2 + $0x29c] sm:$0xf]
    %v214 = vld [vmem:[#allocation2 + $0x2a0] sm:$0xff]
    %v215 = vld [vmem:[#allocation2 + $0x2a8] sm:$0xff]
    %v216 = vld [vmem:[#allocation2 + $0x2b0] sm:$0xff]
    %v217 = vld [vmem:[#allocation2 + $0x2b8] sm:$0xf]
    %v218 = vld [vmem:[#allocation2 + $0x2bc] sm:$0xff]
    %v219 = vld [vmem:[#allocation2 + $0x2c4] sm:$0xff]
    %v220 = vld [vmem:[#allocation2 + $0x2cc] sm:$0xff]
    %v221 = vld [vmem:[#allocation2 + $0x2d4] sm:$0xf]
    %v222 = vld [vmem:[#allocation2 + $0x2d8] sm:$0xff]
    %v223 = vld [vmem:[#allocation2 + $0x2e0] sm:$0xff]
    %v224 = vld [vmem:[#allocation2 + $0x2e8] sm:$0xff]
    %v225 = vld [vmem:[#allocation2 + $0x2f0] sm:$0xf]
    %v226 = vld [vmem:[#allocation2 + $0x2f4] sm:$0xff]
    %v227 = vld [vmem:[#allocation2 + $0x2fc] sm:$0xff]
    %v228 = vld [vmem:[#allocation2 + $0x304] sm:$0xff]
    %v229 = vld [vmem:[#allocation2 + $0x30c] sm:$0xf]
    %v230 = vld [vmem:[#allocation2 + $0x310] sm:$0xff]
    %v231 = vld [vmem:[#allocation2 + $0x318] sm:$0xff]
    %v232 = vld [vmem:[#allocation2 + $0x320] sm:$0xff]
    %v233 = vld [vmem:[#allocation2 + $0x328] sm:$0xf]
    %v234 = vld [vmem:[#allocation2 + $0x32c] sm:$0xff]
    %v235 = vld [vmem:[#allocation2 + $0x334] sm:$0xff]
    %v236 = vld [vmem:[#allocation2 + $0x33c] sm:$0xff]
    %v237 = vld [vmem:[#allocation2 + $0x344] sm:$0xf]
    %v238 = vld [vmem:[#allocation2 + $0x348] sm:$0xff]
    %v239 = vld [vmem:[#allocation2 + $0x350] sm:$0xff]
    %v240 = vld [vmem:[#allocation2 + $0x358] sm:$0xff]
    %v241 = vld [vmem:[#allocation2 + $0x360] sm:$0xf]
    %v242 = vld [vmem:[#allocation2 + $0x364] sm:$0xff]
    %v243 = vld [vmem:[#allocation2 + $0x36c] sm:$0xff]
    %v244 = vld [vmem:[#allocation2 + $0x374] sm:$0xff]
    %v245 = vld [vmem:[#allocation2 + $0x37c] sm:$0xf]
    %v246 = vld [vmem:[#allocation2 + $0x380] sm:$0xff]
    %v247 = vld [vmem:[#allocation2 + $0x388] sm:$0xff]
    %v248 = vld [vmem:[#allocation2 + $0x390] sm:$0xff]
    %v249 = vld [vmem:[#allocation2 + $0x398] sm:$0xf]
    %v250 = vld [vmem:[#allocation2 + $0x39c] sm:$0xff]
    %v251 = vld [vmem:[#allocation2 + $0x3a4] sm:$0xff]
    %v252 = vld [vmem:[#allocation2 + $0x3ac] sm:$0xff]
    %v253 = vld [vmem:[#allocation2 + $0x3b4] sm:$0xf]
    %v254 = vld [vmem:[#allocation2 + $0x3b8] sm:$0xff]
    %v255 = vld [vmem:[#allocation2 + $0x3c0] sm:$0xff]
    %v256 = vld [vmem:[#allocation2 + $0x3c8] sm:$0xff]
    %v257 = vld [vmem:[#allocation2 + $0x3d0] sm:$0xf]
    %v258 = vld [vmem:[#allocation2 + $0x3d4] sm:$0xff]
    %v259 = vld [vmem:[#allocation2 + $0x3dc] sm:$0xff]
    %v260 = vld [vmem:[#allocation2 + $0x3e4] sm:$0xff]
    %v261 = vld [vmem:[#allocation2 + $0x3ec] sm:$0xf]
    %v262 = vld [vmem:[#allocation2 + $0x3f0] sm:$0xff]
    %v263 = vld [vmem:[#allocation2 + $0x3f8] sm:$0xff]
    %v264 = vld [vmem:[#allocation2 + $0x400] sm:$0xff]
    %v265 = vld [vmem:[#allocation2 + $0x408] sm:$0xf]
    %v266 = vld [vmem:[#allocation2 + $0x40c] sm:$0xff]
    %v267 = vld [vmem:[#allocation2 + $0x414] sm:$0xff]
    %v268 = vld [vmem:[#allocation2 + $0x41c] sm:$0xff]
    %v269 = vld [vmem:[#allocation2 + $0x424] sm:$0xf]
    %v270 = vld [vmem:[#allocation2 + $0x428] sm:$0xff]
    %v271 = vld [vmem:[#allocation2 + $0x430] sm:$0xff]
    %v272 = vld [vmem:[#allocation2 + $0x438] sm:$0xff]
    %v273 = vld [vmem:[#allocation2 + $0x440] sm:$0xf]
    %v274 = vld [vmem:[#allocation2 + $0x444] sm:$0xff]
    %v275 = vld [vmem:[#allocation2 + $0x44c] sm:$0xff]
    %v276 = vld [vmem:[#allocation2 + $0x454] sm:$0xff]
    %v277 = vld [vmem:[#allocation2 + $0x45c] sm:$0xf]
    %v278 = vld [vmem:[#allocation2 + $0x460] sm:$0xff]
    %v279 = vld [vmem:[#allocation2 + $0x468] sm:$0xff]
    %v280 = vld [vmem:[#allocation2 + $0x470] sm:$0xff]
    %v281 = vld [vmem:[#allocation2 + $0x478] sm:$0xf]
    %v282 = vld [vmem:[#allocation2 + $0x47c] sm:$0xff]
    %v283 = vld [vmem:[#allocation2 + $0x484] sm:$0xff]
    %v284 = vld [vmem:[#allocation2 + $0x48c] sm:$0xff]
    %v285 = vld [vmem:[#allocation2 + $0x494] sm:$0xf]
    %v286 = vld [vmem:[#allocation2 + $0x498] sm:$0xff]
    %v287 = vld [vmem:[#allocation2 + $0x4a0] sm:$0xff]
    %v288 = vld [vmem:[#allocation2 + $0x4a8] sm:$0xff]
    %v289 = vld [vmem:[#allocation2 + $0x4b0] sm:$0xf]
    %v290 = vld [vmem:[#allocation2 + $0x4b4] sm:$0xff]
    %v291 = vld [vmem:[#allocation2 + $0x4bc] sm:$0xff]
    %v292 = vld [vmem:[#allocation2 + $0x4c4] sm:$0xff]
    %v293 = vld [vmem:[#allocation2 + $0x4cc] sm:$0xf]
    %v294 = vld [vmem:[#allocation2 + $0x4d0] sm:$0xff]
    %v295 = vld [vmem:[#allocation2 + $0x4d8] sm:$0xff]
    %v296 = vld [vmem:[#allocation2 + $0x4e0] sm:$0xff]
    %v297 = vld [vmem:[#allocation2 + $0x4e8] sm:$0xf]
    %v298 = vld [vmem:[#allocation2 + $0x4ec] sm:$0xff]
    %v299 = vld [vmem:[#allocation2 + $0x4f4] sm:$0xff]
    %v300 = vld [vmem:[#allocation2 + $0x4fc] sm:$0xff]
    %v301 = vld [vmem:[#allocation2 + $0x504] sm:$0xf]
    %v302 = vld [vmem:[#allocation2 + $0x508] sm:$0xff]
    %v303 = vld [vmem:[#allocation2 + $0x510] sm:$0xff]
    %v304 = vld [vmem:[#allocation2 + $0x518] sm:$0xff]
    %v305 = vld [vmem:[#allocation2 + $0x520] sm:$0xf]
    %v306 = vld [vmem:[#allocation2 + $0x524] sm:$0xff]
    %v307 = vld [vmem:[#allocation2 + $0x52c] sm:$0xff]
    %v308 = vld [vmem:[#allocation2 + $0x534] sm:$0xff]
    %v309 = vld [vmem:[#allocation2 + $0x53c] sm:$0xf]
    %v310 = vld [vmem:[#allocation2 + $0x540] sm:$0xff]
    %v311 = vld [vmem:[#allocation2 + $0x548] sm:$0xff]
    %v312 = vld [vmem:[#allocation2 + $0x550] sm:$0xff]
    %v313 = vld [vmem:[#allocation2 + $0x558] sm:$0xf]
    %v314 = vld [vmem:[#allocation2 + $0x55c] sm:$0xff]
    %v315 = vld [vmem:[#allocation2 + $0x564] sm:$0xff]
    %v316 = vld [vmem:[#allocation2 + $0x56c] sm:$0xff]
    %v317 = vld [vmem:[#allocation2 + $0x574] sm:$0xf]
    %v318 = vld [vmem:[#allocation2 + $0x578] sm:$0xff]
    %v319 = vld [vmem:[#allocation2 + $0x580] sm:$0xff]
    %v320 = vld [vmem:[#allocation2 + $0x588] sm:$0xff]
    %v321 = vld [vmem:[#allocation2 + $0x590] sm:$0xf]
    %v322 = vld [vmem:[#allocation2 + $0x594] sm:$0xff]
    %v323 = vld [vmem:[#allocation2 + $0x59c] sm:$0xff]
    %v324 = vld [vmem:[#allocation2 + $0x5a4] sm:$0xff]
    %v325 = vld [vmem:[#allocation2 + $0x5ac] sm:$0xf]
    %v326 = vld [vmem:[#allocation2 + $0x5b0] sm:$0xff]
    %v327 = vld [vmem:[#allocation2 + $0x5b8] sm:$0xff]
    %v328 = vld [vmem:[#allocation2 + $0x5c0] sm:$0xff]
    %v329 = vld [vmem:[#allocation2 + $0x5c8] sm:$0xf]
    %v330 = vld [vmem:[#allocation2 + $0x5cc] sm:$0xff]
    %v331 = vld [vmem:[#allocation2 + $0x5d4] sm:$0xff]
    %v332 = vld [vmem:[#allocation2 + $0x5dc] sm:$0xff]
    %v333 = vld [vmem:[#allocation2 + $0x5e4] sm:$0xf]
    %v334 = vld [vmem:[#allocation2 + $0x5e8] sm:$0xff]
    %v335 = vld [vmem:[#allocation2 + $0x5f0] sm:$0xff]
    %v336 = vld [vmem:[#allocation2 + $0x5f8] sm:$0xff]
    %v337 = vld [vmem:[#allocation2 + $0x600] sm:$0xf]
    %v338 = vld [vmem:[#allocation2 + $0x604] sm:$0xff]
    %v339 = vld [vmem:[#allocation2 + $0x60c] sm:$0xff]
    %v340 = vld [vmem:[#allocation2 + $0x614] sm:$0xff]
    %v341 = vld [vmem:[#allocation2 + $0x61c] sm:$0xf]
    %v342 = vld [vmem:[#allocation2 + $0x620] sm:$0xff]
    %v343 = vld [vmem:[#allocation2 + $0x628] sm:$0xff]
    %v344 = vld [vmem:[#allocation2 + $0x630] sm:$0xff]
    %v345 = vld [vmem:[#allocation2 + $0x638] sm:$0xf]
    %v346 = vld [vmem:[#allocation2 + $0x63c] sm:$0xff]
    %v347 = vld [vmem:[#allocation2 + $0x644] sm:$0xff]
    %v348 = vld [vmem:[#allocation2 + $0x64c] sm:$0xff]
    %v349 = vld [vmem:[#allocation2 + $0x654] sm:$0xf]
    %v350 = vld [vmem:[#allocation2 + $0x658] sm:$0xff]
    %v351 = vld [vmem:[#allocation2 + $0x660] sm:$0xff]
    %v352 = vld [vmem:[#allocation2 + $0x668] sm:$0xff]
    %v353 = vld [vmem:[#allocation2 + $0x670] sm:$0xf]
    %v354 = vld [vmem:[#allocation2 + $0x674] sm:$0xff]
    %v355 = vld [vmem:[#allocation2 + $0x67c] sm:$0xff]
    %v356 = vld [vmem:[#allocation2 + $0x684] sm:$0xff]
    %v357 = vld [vmem:[#allocation2 + $0x68c] sm:$0xf]
    %v358 = vld [vmem:[#allocation2 + $0x690] sm:$0xff]
    %v359 = vld [vmem:[#allocation2 + $0x698] sm:$0xff]
    %v360 = vld [vmem:[#allocation2 + $0x6a0] sm:$0xff]
    %v361 = vld [vmem:[#allocation2 + $0x6a8] sm:$0xf]
    %v362 = vld [vmem:[#allocation2 + $0x6ac] sm:$0xff]
    %v363 = vld [vmem:[#allocation2 + $0x6b4] sm:$0xff]
    %v364 = vld [vmem:[#allocation2 + $0x6bc] sm:$0xff]
    %v365 = vld [vmem:[#allocation2 + $0x6c4] sm:$0xf]
    %v366 = vld [vmem:[#allocation2 + $0x6c8] sm:$0xff]
    %v367 = vld [vmem:[#allocation2 + $0x6d0] sm:$0xff]
    %v368 = vld [vmem:[#allocation2 + $0x6d8] sm:$0xff]
    %v369 = vld [vmem:[#allocation2 + $0x6e0] sm:$0xf]
    %v370 = vld [vmem:[#allocation2 + $0x6e4] sm:$0xff]
    %v371 = vld [vmem:[#allocation2 + $0x6ec] sm:$0xff]
    %v372 = vld [vmem:[#allocation2 + $0x6f4] sm:$0xff]
    %v373 = vld [vmem:[#allocation2 + $0x6fc] sm:$0xf]
    %v374 = vld [vmem:[#allocation2 + $0x700] sm:$0xff]
    %v375 = vld [vmem:[#allocation2 + $0x708] sm:$0xff]
    %v376 = vld [vmem:[#allocation2 + $0x710] sm:$0xff]
    %v377 = vld [vmem:[#allocation2 + $0x718] sm:$0xf]
    %v378 = vld [vmem:[#allocation2 + $0x71c] sm:$0xff]
    %v379 = vld [vmem:[#allocation2 + $0x724] sm:$0xff]
    %v380 = vld [vmem:[#allocation2 + $0x72c] sm:$0xff]
    %v381 = vld [vmem:[#allocation2 + $0x734] sm:$0xf]
    %v382 = vld [vmem:[#allocation2 + $0x738] sm:$0xff]
    %v383 = vld [vmem:[#allocation2 + $0x740] sm:$0xff]
    %v384 = vld [vmem:[#allocation2 + $0x748] sm:$0xff]
    %v385 = vld [vmem:[#allocation2 + $0x750] sm:$0xf]
    %v386 = vld [vmem:[#allocation2 + $0x754] sm:$0xff]
    %v387 = vld [vmem:[#allocation2 + $0x75c] sm:$0xff]
    %v388 = vld [vmem:[#allocation2 + $0x764] sm:$0xff]
    %v389 = vld [vmem:[#allocation2 + $0x76c] sm:$0xf]
    %v390 = vld [vmem:[#allocation2 + $0x770] sm:$0xff]
    %v391 = vld [vmem:[#allocation2 + $0x778] sm:$0xff]
    %v392 = vld [vmem:[#allocation2 + $0x780] sm:$0xff]
    %v393 = vld [vmem:[#allocation2 + $0x788] sm:$0xf]
    %v394 = vld [vmem:[#allocation2 + $0x78c] sm:$0xff]
    %v395 = vld [vmem:[#allocation2 + $0x794] sm:$0xff]
    %v396 = vld [vmem:[#allocation2 + $0x79c] sm:$0xff]
    %v397 = vld [vmem:[#allocation2 + $0x7a4] sm:$0xf]
    %v398 = vld [vmem:[#allocation2 + $0x7a8] sm:$0xff]
    %v399 = vld [vmem:[#allocation2 + $0x7b0] sm:$0xff]
    %v400 = vld [vmem:[#allocation2 + $0x7b8] sm:$0xff]
    %v401 = vld [vmem:[#allocation2 + $0x7c0] sm:$0xf]
    %v402 = vld [vmem:[#allocation2 + $0x7c4] sm:$0xff]
    %v403 = vld [vmem:[#allocation2 + $0x7cc] sm:$0xff]
    %v404 = vld [vmem:[#allocation2 + $0x7d4] sm:$0xff]
    %v405 = vld [vmem:[#allocation2 + $0x7dc] sm:$0xf]
    %v406 = vld [vmem:[#allocation2 + $0x7e0] sm:$0xff]
    %v407 = vld [vmem:[#allocation2 + $0x7e8] sm:$0xff]
    %v408 = vld [vmem:[#allocation2 + $0x7f0] sm:$0xff]
    %v409 = vld [vmem:[#allocation2 + $0x7f8] sm:$0xf]
    %v410 = vld [vmem:[#allocation2 + $0x7fc] sm:$0xff]
    %v411 = vld [vmem:[#allocation2 + $0x804] sm:$0xff]
    %v412 = vld [vmem:[#allocation2 + $0x80c] sm:$0xff]
    %v413 = vld [vmem:[#allocation2 + $0x814] sm:$0xf]
    %v414 = vld [vmem:[#allocation2 + $0x818] sm:$0xff]
    %v415 = vld [vmem:[#allocation2 + $0x820] sm:$0xff]
    %v416 = vld [vmem:[#allocation2 + $0x828] sm:$0xff]
    %v417 = vld [vmem:[#allocation2 + $0x830] sm:$0xf]
    %v418 = vld [vmem:[#allocation2 + $0x834] sm:$0xff]
    %v419 = vld [vmem:[#allocation2 + $0x83c] sm:$0xff]
    %v420 = vld [vmem:[#allocation2 + $0x844] sm:$0xff]
    %v421 = vld [vmem:[#allocation2 + $0x84c] sm:$0xf]
    %v422 = vld [vmem:[#allocation2 + $0x850] sm:$0xff]
    %v423 = vld [vmem:[#allocation2 + $0x858] sm:$0xff]
    %v424 = vld [vmem:[#allocation2 + $0x860] sm:$0xff]
    %v425 = vld [vmem:[#allocation2 + $0x868] sm:$0xf]
    %v426 = vld [vmem:[#allocation2 + $0x86c] sm:$0xff]
    %v427 = vld [vmem:[#allocation2 + $0x874] sm:$0xff]
    %v428 = vld [vmem:[#allocation2 + $0x87c] sm:$0xff]
    %v429 = vld [vmem:[#allocation2 + $0x884] sm:$0xf]
    %v430 = vld [vmem:[#allocation2 + $0x888] sm:$0xff]
    %v431 = vld [vmem:[#allocation2 + $0x890] sm:$0xff]
    %v432 = vld [vmem:[#allocation2 + $0x898] sm:$0xff]
    %v433 = vld [vmem:[#allocation2 + $0x8a0] sm:$0xf]
    %v434 = vld [vmem:[#allocation2 + $0x8a4] sm:$0xff]
    %v435 = vld [vmem:[#allocation2 + $0x8ac] sm:$0xff]
    %v436 = vld [vmem:[#allocation2 + $0x8b4] sm:$0xff]
    %v437 = vld [vmem:[#allocation2 + $0x8bc] sm:$0xf]
    %v438 = vld [vmem:[#allocation2 + $0x8c0] sm:$0xff]
    %v439 = vld [vmem:[#allocation2 + $0x8c8] sm:$0xff]
    %v440 = vld [vmem:[#allocation2 + $0x8d0] sm:$0xff]
    %v441 = vld [vmem:[#allocation2 + $0x8d8] sm:$0xf]
    %v442 = vld [vmem:[#allocation2 + $0x8dc] sm:$0xff]
    %v443 = vld [vmem:[#allocation2 + $0x8e4] sm:$0xff]
    %v444 = vld [vmem:[#allocation2 + $0x8ec] sm:$0xff]
    %v445 = vld [vmem:[#allocation2 + $0x8f4] sm:$0xf]
    %v446 = vld [vmem:[#allocation2 + $0x8f8] sm:$0xff]
    %v447 = vld [vmem:[#allocation2 + $0x900] sm:$0xff]
    %v448 = vld [vmem:[#allocation2 + $0x908] sm:$0xff]
    %v449 = vld [vmem:[#allocation2 + $0x910] sm:$0xf]
    %v450 = vld [vmem:[#allocation2 + $0x914] sm:$0xff]
    %v451 = vld [vmem:[#allocation2 + $0x91c] sm:$0xff]
    %v452 = vld [vmem:[#allocation2 + $0x924] sm:$0xff]
    %v453 = vld [vmem:[#allocation2 + $0x92c] sm:$0xf]
    %v454 = vld [vmem:[#allocation2 + $0x930] sm:$0xff]
    %v455 = vld [vmem:[#allocation2 + $0x938] sm:$0xff]
    %v456 = vld [vmem:[#allocation2 + $0x940] sm:$0xff]
    %v457 = vld [vmem:[#allocation2 + $0x948] sm:$0xf]
    %v458 = vld [vmem:[#allocation2 + $0x94c] sm:$0xff]
    %v459 = vld [vmem:[#allocation2 + $0x954] sm:$0xff]
    %v460 = vld [vmem:[#allocation2 + $0x95c] sm:$0xff]
    %v461 = vld [vmem:[#allocation2 + $0x964] sm:$0xf]
    %v462 = vld [vmem:[#allocation2 + $0x968] sm:$0xff]
    %v463 = vld [vmem:[#allocation2 + $0x970] sm:$0xff]
    %v464 = vld [vmem:[#allocation2 + $0x978] sm:$0xff]
    %v465 = vld [vmem:[#allocation2 + $0x980] sm:$0xf]
    %v466 = vld [vmem:[#allocation2 + $0x984] sm:$0xff]
    %v467 = vld [vmem:[#allocation2 + $0x98c] sm:$0xff]
    %v468 = vld [vmem:[#allocation2 + $0x994] sm:$0xff]
    %v469 = vld [vmem:[#allocation2 + $0x99c] sm:$0xf]
    %v470 = vld [vmem:[#allocation2 + $0x9a0] sm:$0xff]
    %v471 = vld [vmem:[#allocation2 + $0x9a8] sm:$0xff]
    %v472 = vld [vmem:[#allocation2 + $0x9b0] sm:$0xff]
    %v473 = vld [vmem:[#allocation2 + $0x9b8] sm:$0xf]
    %v474 = vld [vmem:[#allocation2 + $0x9bc] sm:$0xff]
    %v475 = vld [vmem:[#allocation2 + $0x9c4] sm:$0xff]
    %v476 = vld [vmem:[#allocation2 + $0x9cc] sm:$0xff]
    %v477 = vld [vmem:[#allocation2 + $0x9d4] sm:$0xf]
    %v478 = vld [vmem:[#allocation2 + $0x9d8] sm:$0xff]
    %v479 = vld [vmem:[#allocation2 + $0x9e0] sm:$0xff]
    %v480 = vld [vmem:[#allocation2 + $0x9e8] sm:$0xff]
    %v481 = vld [vmem:[#allocation2 + $0x9f0] sm:$0xf]
    %v482 = vld [vmem:[#allocation2 + $0x9f4] sm:$0xff]
    %v483 = vld [vmem:[#allocation2 + $0x9fc] sm:$0xff]
    %v484 = vld [vmem:[#allocation2 + $0xa04] sm:$0xff]
    %v485 = vld [vmem:[#allocation2 + $0xa0c] sm:$0xf]
    %v486 = vld [vmem:[#allocation2 + $0xa10] sm:$0xff]
    %v487 = vld [vmem:[#allocation2 + $0xa18] sm:$0xff]
    %v488 = vld [vmem:[#allocation2 + $0xa20] sm:$0xff]
    %v489 = vld [vmem:[#allocation2 + $0xa28] sm:$0xf]
    %v490 = vld [vmem:[#allocation2 + $0xa2c] sm:$0xff]
    %v491 = vld [vmem:[#allocation2 + $0xa34] sm:$0xff]
    %v492 = vld [vmem:[#allocation2 + $0xa3c] sm:$0xff]
    %v493 = vld [vmem:[#allocation2 + $0xa44] sm:$0xf]
    %v494 = vld [vmem:[#allocation2 + $0xa48] sm:$0xff]
    %v495 = vld [vmem:[#allocation2 + $0xa50] sm:$0xff]
    %v496 = vld [vmem:[#allocation2 + $0xa58] sm:$0xff]
    %v497 = vld [vmem:[#allocation2 + $0xa60] sm:$0xf]
    %v498 = vld [vmem:[#allocation2 + $0xa64] sm:$0xff]
    %v499 = vld [vmem:[#allocation2 + $0xa6c] sm:$0xff]
    %v500 = vld [vmem:[#allocation2 + $0xa74] sm:$0xff]
    %v501 = vld [vmem:[#allocation2 + $0xa7c] sm:$0xf]
    %v502 = vld [vmem:[#allocation2 + $0xa80] sm:$0xff]
    %v503 = vld [vmem:[#allocation2 + $0xa88] sm:$0xff]
    %v504 = vld [vmem:[#allocation2 + $0xa90] sm:$0xff]
    %v505 = vld [vmem:[#allocation2 + $0xa98] sm:$0xf]
    %v506 = vld [vmem:[#allocation2 + $0xa9c] sm:$0xff]
    %v507 = vld [vmem:[#allocation2 + $0xaa4] sm:$0xff]
    %v508 = vld [vmem:[#allocation2 + $0xaac] sm:$0xff]
    %v509 = vld [vmem:[#allocation2 + $0xab4] sm:$0xf]
    %v510 = vld [vmem:[#allocation5] sm:$0xff]
    %v512 = vlaneseq
    %v513 = vshrl.u32 %v512, 7
    %v514 = vsub.s32 0, %v513
    %v515 = vrot.slane %v510, %v514
    %v516 = vlaneseq
    %v517 = vshrl.u32 %v516, 7
    %v518 = vsub.s32 1, %v517
    %v519 = vrot.slane %v510, %v518
    %v520 = vlaneseq
    %v521 = vshrl.u32 %v520, 7
    %v522 = vsub.s32 2, %v521
    %v523 = vrot.slane %v510, %v522
    %v524 = vlaneseq
    %v525 = vshrl.u32 %v524, 7
    %v526 = vsub.s32 3, %v525
    %v527 = vrot.slane %v510, %v526
    %v528 = vlaneseq
    %v529 = vshrl.u32 %v528, 7
    %v530 = vsub.s32 4, %v529
    %v531 = vrot.slane %v510, %v530
    %v532 = vlaneseq
    %v533 = vshrl.u32 %v532, 7
    %v534 = vsub.s32 5, %v533
    %v535 = vrot.slane %v510, %v534
    %v536 = vlaneseq
    %v537 = vshrl.u32 %v536, 7
    %v538 = vsub.s32 6, %v537
    %v539 = vrot.slane %v510, %v538
    %v939 = vunpack.c.l.b16 %v118
    %v940 = vunpack.c.h.b16 %v118
    %v941 = vunpack.c.l.b16 %v119
    %v942 = vunpack.c.h.b16 %v119
    %v943 = vunpack.c.l.b16 %v120
    %v944 = vunpack.c.h.b16 %v120
    %v945 = vunpack.c.l.b16 %v121
    %v946 = vunpack.c.l.b16 %v122
    %v947 = vunpack.c.h.b16 %v122
    %v948 = vunpack.c.l.b16 %v123
    %v949 = vunpack.c.h.b16 %v123
    %v950 = vunpack.c.l.b16 %v124
    %v951 = vunpack.c.h.b16 %v124
    %v952 = vunpack.c.l.b16 %v125
    %v953 = vunpack.c.l.b16 %v126
    %v954 = vunpack.c.h.b16 %v126
    %v955 = vunpack.c.l.b16 %v127
    %v956 = vunpack.c.h.b16 %v127
    %v957 = vunpack.c.l.b16 %v128
    %v958 = vunpack.c.h.b16 %v128
    %v959 = vunpack.c.l.b16 %v129
    %v960 = vunpack.c.l.b16 %v130
    %v961 = vunpack.c.h.b16 %v130
    %v962 = vunpack.c.l.b16 %v131
    %v963 = vunpack.c.h.b16 %v131
    %v964 = vunpack.c.l.b16 %v132
    %v965 = vunpack.c.h.b16 %v132
    %v966 = vunpack.c.l.b16 %v133
    %v967 = vunpack.c.l.b16 %v134
    %v968 = vunpack.c.h.b16 %v134
    %v969 = vunpack.c.l.b16 %v135
    %v970 = vunpack.c.h.b16 %v135
    %v971 = vunpack.c.l.b16 %v136
    %v972 = vunpack.c.h.b16 %v136
    %v973 = vunpack.c.l.b16 %v137
    %v974 = vunpack.c.l.b16 %v138
    %v975 = vunpack.c.h.b16 %v138
    %v976 = vunpack.c.l.b16 %v139
    %v977 = vunpack.c.h.b16 %v139
    %v978 = vunpack.c.l.b16 %v140
    %v979 = vunpack.c.h.b16 %v140
    %v980 = vunpack.c.l.b16 %v141
    %v981 = vunpack.c.l.b16 %v142
    %v982 = vunpack.c.h.b16 %v142
    %v983 = vunpack.c.l.b16 %v143
    %v984 = vunpack.c.h.b16 %v143
    %v985 = vunpack.c.l.b16 %v144
    %v986 = vunpack.c.h.b16 %v144
    %v987 = vunpack.c.l.b16 %v145
    %v988 = vunpack.c.l.b16 %v146
    %v989 = vunpack.c.h.b16 %v146
    %v990 = vunpack.c.l.b16 %v147
    %v991 = vunpack.c.h.b16 %v147
    %v992 = vunpack.c.l.b16 %v148
    %v993 = vunpack.c.h.b16 %v148
    %v994 = vunpack.c.l.b16 %v149
    %v995 = vunpack.c.l.b16 %v150
    %v996 = vunpack.c.h.b16 %v150
    %v997 = vunpack.c.l.b16 %v151
    %v998 = vunpack.c.h.b16 %v151
    %v999 = vunpack.c.l.b16 %v152
    %v1000 = vunpack.c.h.b16 %v152
    %v1001 = vunpack.c.l.b16 %v153
    %v1002 = vunpack.c.l.b16 %v154
    %v1003 = vunpack.c.h.b16 %v154
    %v1004 = vunpack.c.l.b16 %v155
    %v1005 = vunpack.c.h.b16 %v155
    %v1006 = vunpack.c.l.b16 %v156
    %v1007 = vunpack.c.h.b16 %v156
    %v1008 = vunpack.c.l.b16 %v157
    %v1009 = vunpack.c.l.b16 %v158
    %v1010 = vunpack.c.h.b16 %v158
    %v1011 = vunpack.c.l.b16 %v159
    %v1012 = vunpack.c.h.b16 %v159
    %v1013 = vunpack.c.l.b16 %v160
    %v1014 = vunpack.c.h.b16 %v160
    %v1015 = vunpack.c.l.b16 %v161
    %v1016 = vunpack.c.l.b16 %v162
    %v1017 = vunpack.c.h.b16 %v162
    %v1018 = vunpack.c.l.b16 %v163
    %v1019 = vunpack.c.h.b16 %v163
    %v1020 = vunpack.c.l.b16 %v164
    %v1021 = vunpack.c.h.b16 %v164
    %v1022 = vunpack.c.l.b16 %v165
    %v1023 = vunpack.c.l.b16 %v166
    %v1024 = vunpack.c.h.b16 %v166
    %v1025 = vunpack.c.l.b16 %v167
    %v1026 = vunpack.c.h.b16 %v167
    %v1027 = vunpack.c.l.b16 %v168
    %v1028 = vunpack.c.h.b16 %v168
    %v1029 = vunpack.c.l.b16 %v169
    %v1030 = vunpack.c.l.b16 %v170
    %v1031 = vunpack.c.h.b16 %v170
    %v1032 = vunpack.c.l.b16 %v171
    %v1033 = vunpack.c.h.b16 %v171
    %v1034 = vunpack.c.l.b16 %v172
    %v1035 = vunpack.c.h.b16 %v172
    %v1036 = vunpack.c.l.b16 %v173
    %v1037 = vunpack.c.l.b16 %v174
    %v1038 = vunpack.c.h.b16 %v174
    %v1039 = vunpack.c.l.b16 %v175
    %v1040 = vunpack.c.h.b16 %v175
    %v1041 = vunpack.c.l.b16 %v176
    %v1042 = vunpack.c.h.b16 %v176
    %v1043 = vunpack.c.l.b16 %v177
    %v1044 = vunpack.c.l.b16 %v178
    %v1045 = vunpack.c.h.b16 %v178
    %v1046 = vunpack.c.l.b16 %v179
    %v1047 = vunpack.c.h.b16 %v179
    %v1048 = vunpack.c.l.b16 %v180
    %v1049 = vunpack.c.h.b16 %v180
    %v1050 = vunpack.c.l.b16 %v181
    %v1051 = vunpack.c.l.b16 %v182
    %v1052 = vunpack.c.h.b16 %v182
    %v1053 = vunpack.c.l.b16 %v183
    %v1054 = vunpack.c.h.b16 %v183
    %v1055 = vunpack.c.l.b16 %v184
    %v1056 = vunpack.c.h.b16 %v184
    %v1057 = vunpack.c.l.b16 %v185
    %v1058 = vunpack.c.l.b16 %v186
    %v1059 = vunpack.c.h.b16 %v186
    %v1060 = vunpack.c.l.b16 %v187
    %v1061 = vunpack.c.h.b16 %v187
    %v1062 = vunpack.c.l.b16 %v188
    %v1063 = vunpack.c.h.b16 %v188
    %v1064 = vunpack.c.l.b16 %v189
    %v1065 = vunpack.c.l.b16 %v190
    %v1066 = vunpack.c.h.b16 %v190
    %v1067 = vunpack.c.l.b16 %v191
    %v1068 = vunpack.c.h.b16 %v191
    %v1069 = vunpack.c.l.b16 %v192
    %v1070 = vunpack.c.h.b16 %v192
    %v1071 = vunpack.c.l.b16 %v193
    %v1072 = vunpack.c.l.b16 %v194
    %v1073 = vunpack.c.h.b16 %v194
    %v1074 = vunpack.c.l.b16 %v195
    %v1075 = vunpack.c.h.b16 %v195
    %v1076 = vunpack.c.l.b16 %v196
    %v1077 = vunpack.c.h.b16 %v196
    %v1078 = vunpack.c.l.b16 %v197
    %v1079 = vunpack.c.l.b16 %v198
    %v1080 = vunpack.c.h.b16 %v198
    %v1081 = vunpack.c.l.b16 %v199
    %v1082 = vunpack.c.h.b16 %v199
    %v1083 = vunpack.c.l.b16 %v200
    %v1084 = vunpack.c.h.b16 %v200
    %v1085 = vunpack.c.l.b16 %v201
    %v1086 = vunpack.c.l.b16 %v202
    %v1087 = vunpack.c.h.b16 %v202
    %v1088 = vunpack.c.l.b16 %v203
    %v1089 = vunpack.c.h.b16 %v203
    %v1090 = vunpack.c.l.b16 %v204
    %v1091 = vunpack.c.h.b16 %v204
    %v1092 = vunpack.c.l.b16 %v205
    %v1093 = vunpack.c.l.b16 %v206
    %v1094 = vunpack.c.h.b16 %v206
    %v1095 = vunpack.c.l.b16 %v207
    %v1096 = vunpack.c.h.b16 %v207
    %v1097 = vunpack.c.l.b16 %v208
    %v1098 = vunpack.c.h.b16 %v208
    %v1099 = vunpack.c.l.b16 %v209
    %v1100 = vunpack.c.l.b16 %v210
    %v1101 = vunpack.c.h.b16 %v210
    %v1102 = vunpack.c.l.b16 %v211
    %v1103 = vunpack.c.h.b16 %v211
    %v1104 = vunpack.c.l.b16 %v212
    %v1105 = vunpack.c.h.b16 %v212
    %v1106 = vunpack.c.l.b16 %v213
    %v1107 = vunpack.c.l.b16 %v214
    %v1108 = vunpack.c.h.b16 %v214
    %v1109 = vunpack.c.l.b16 %v215
    %v1110 = vunpack.c.h.b16 %v215
    %v1111 = vunpack.c.l.b16 %v216
    %v1112 = vunpack.c.h.b16 %v216
    %v1113 = vunpack.c.l.b16 %v217
    %v1114 = vunpack.c.l.b16 %v218
    %v1115 = vunpack.c.h.b16 %v218
    %v1116 = vunpack.c.l.b16 %v219
    %v1117 = vunpack.c.h.b16 %v219
    %v1118 = vunpack.c.l.b16 %v220
    %v1119 = vunpack.c.h.b16 %v220
    %v1120 = vunpack.c.l.b16 %v221
    %v1121 = vunpack.c.l.b16 %v222
    %v1122 = vunpack.c.h.b16 %v222
    %v1123 = vunpack.c.l.b16 %v223
    %v1124 = vunpack.c.h.b16 %v223
    %v1125 = vunpack.c.l.b16 %v224
    %v1126 = vunpack.c.h.b16 %v224
    %v1127 = vunpack.c.l.b16 %v225
    %v1128 = vunpack.c.l.b16 %v226
    %v1129 = vunpack.c.h.b16 %v226
    %v1130 = vunpack.c.l.b16 %v227
    %v1131 = vunpack.c.h.b16 %v227
    %v1132 = vunpack.c.l.b16 %v228
    %v1133 = vunpack.c.h.b16 %v228
    %v1134 = vunpack.c.l.b16 %v229
    %v1135 = vunpack.c.l.b16 %v230
    %v1136 = vunpack.c.h.b16 %v230
    %v1137 = vunpack.c.l.b16 %v231
    %v1138 = vunpack.c.h.b16 %v231
    %v1139 = vunpack.c.l.b16 %v232
    %v1140 = vunpack.c.h.b16 %v232
    %v1141 = vunpack.c.l.b16 %v233
    %v1142 = vunpack.c.l.b16 %v234
    %v1143 = vunpack.c.h.b16 %v234
    %v1144 = vunpack.c.l.b16 %v235
    %v1145 = vunpack.c.h.b16 %v235
    %v1146 = vunpack.c.l.b16 %v236
    %v1147 = vunpack.c.h.b16 %v236
    %v1148 = vunpack.c.l.b16 %v237
    %v1149 = vunpack.c.l.b16 %v238
    %v1150 = vunpack.c.h.b16 %v238
    %v1151 = vunpack.c.l.b16 %v239
    %v1152 = vunpack.c.h.b16 %v239
    %v1153 = vunpack.c.l.b16 %v240
    %v1154 = vunpack.c.h.b16 %v240
    %v1155 = vunpack.c.l.b16 %v241
    %v1156 = vunpack.c.l.b16 %v242
    %v1157 = vunpack.c.h.b16 %v242
    %v1158 = vunpack.c.l.b16 %v243
    %v1159 = vunpack.c.h.b16 %v243
    %v1160 = vunpack.c.l.b16 %v244
    %v1161 = vunpack.c.h.b16 %v244
    %v1162 = vunpack.c.l.b16 %v245
    %v1163 = vunpack.c.l.b16 %v246
    %v1164 = vunpack.c.h.b16 %v246
    %v1165 = vunpack.c.l.b16 %v247
    %v1166 = vunpack.c.h.b16 %v247
    %v1167 = vunpack.c.l.b16 %v248
    %v1168 = vunpack.c.h.b16 %v248
    %v1169 = vunpack.c.l.b16 %v249
    %v1170 = vunpack.c.l.b16 %v250
    %v1171 = vunpack.c.h.b16 %v250
    %v1172 = vunpack.c.l.b16 %v251
    %v1173 = vunpack.c.h.b16 %v251
    %v1174 = vunpack.c.l.b16 %v252
    %v1175 = vunpack.c.h.b16 %v252
    %v1176 = vunpack.c.l.b16 %v253
    %v1177 = vunpack.c.l.b16 %v254
    %v1178 = vunpack.c.h.b16 %v254
    %v1179 = vunpack.c.l.b16 %v255
    %v1180 = vunpack.c.h.b16 %v255
    %v1181 = vunpack.c.l.b16 %v256
    %v1182 = vunpack.c.h.b16 %v256
    %v1183 = vunpack.c.l.b16 %v257
    %v1184 = vunpack.c.l.b16 %v258
    %v1185 = vunpack.c.h.b16 %v258
    %v1186 = vunpack.c.l.b16 %v259
    %v1187 = vunpack.c.h.b16 %v259
    %v1188 = vunpack.c.l.b16 %v260
    %v1189 = vunpack.c.h.b16 %v260
    %v1190 = vunpack.c.l.b16 %v261
    %v1191 = vunpack.c.l.b16 %v262
    %v1192 = vunpack.c.h.b16 %v262
    %v1193 = vunpack.c.l.b16 %v263
    %v1194 = vunpack.c.h.b16 %v263
    %v1195 = vunpack.c.l.b16 %v264
    %v1196 = vunpack.c.h.b16 %v264
    %v1197 = vunpack.c.l.b16 %v265
    %v1198 = vunpack.c.l.b16 %v266
    %v1199 = vunpack.c.h.b16 %v266
    %v1200 = vunpack.c.l.b16 %v267
    %v1201 = vunpack.c.h.b16 %v267
    %v1202 = vunpack.c.l.b16 %v268
    %v1203 = vunpack.c.h.b16 %v268
    %v1204 = vunpack.c.l.b16 %v269
    %v1205 = vunpack.c.l.b16 %v270
    %v1206 = vunpack.c.h.b16 %v270
    %v1207 = vunpack.c.l.b16 %v271
    %v1208 = vunpack.c.h.b16 %v271
    %v1209 = vunpack.c.l.b16 %v272
    %v1210 = vunpack.c.h.b16 %v272
    %v1211 = vunpack.c.l.b16 %v273
    %v1212 = vunpack.c.l.b16 %v274
    %v1213 = vunpack.c.h.b16 %v274
    %v1214 = vunpack.c.l.b16 %v275
    %v1215 = vunpack.c.h.b16 %v275
    %v1216 = vunpack.c.l.b16 %v276
    %v1217 = vunpack.c.h.b16 %v276
    %v1218 = vunpack.c.l.b16 %v277
    %v1219 = vunpack.c.l.b16 %v278
    %v1220 = vunpack.c.h.b16 %v278
    %v1221 = vunpack.c.l.b16 %v279
    %v1222 = vunpack.c.h.b16 %v279
    %v1223 = vunpack.c.l.b16 %v280
    %v1224 = vunpack.c.h.b16 %v280
    %v1225 = vunpack.c.l.b16 %v281
    %v1226 = vunpack.c.l.b16 %v282
    %v1227 = vunpack.c.h.b16 %v282
    %v1228 = vunpack.c.l.b16 %v283
    %v1229 = vunpack.c.h.b16 %v283
    %v1230 = vunpack.c.l.b16 %v284
    %v1231 = vunpack.c.h.b16 %v284
    %v1232 = vunpack.c.l.b16 %v285
    %v1233 = vunpack.c.l.b16 %v286
    %v1234 = vunpack.c.h.b16 %v286
    %v1235 = vunpack.c.l.b16 %v287
    %v1236 = vunpack.c.h.b16 %v287
    %v1237 = vunpack.c.l.b16 %v288
    %v1238 = vunpack.c.h.b16 %v288
    %v1239 = vunpack.c.l.b16 %v289
    %v1240 = vunpack.c.l.b16 %v290
    %v1241 = vunpack.c.h.b16 %v290
    %v1242 = vunpack.c.l.b16 %v291
    %v1243 = vunpack.c.h.b16 %v291
    %v1244 = vunpack.c.l.b16 %v292
    %v1245 = vunpack.c.h.b16 %v292
    %v1246 = vunpack.c.l.b16 %v293
    %v1247 = vunpack.c.l.b16 %v294
    %v1248 = vunpack.c.h.b16 %v294
    %v1249 = vunpack.c.l.b16 %v295
    %v1250 = vunpack.c.h.b16 %v295
    %v1251 = vunpack.c.l.b16 %v296
    %v1252 = vunpack.c.h.b16 %v296
    %v1253 = vunpack.c.l.b16 %v297
    %v1254 = vunpack.c.l.b16 %v298
    %v1255 = vunpack.c.h.b16 %v298
    %v1256 = vunpack.c.l.b16 %v299
    %v1257 = vunpack.c.h.b16 %v299
    %v1258 = vunpack.c.l.b16 %v300
    %v1259 = vunpack.c.h.b16 %v300
    %v1260 = vunpack.c.l.b16 %v301
    %v1261 = vunpack.c.l.b16 %v302
    %v1262 = vunpack.c.h.b16 %v302
    %v1263 = vunpack.c.l.b16 %v303
    %v1264 = vunpack.c.h.b16 %v303
    %v1265 = vunpack.c.l.b16 %v304
    %v1266 = vunpack.c.h.b16 %v304
    %v1267 = vunpack.c.l.b16 %v305
    %v1268 = vunpack.c.l.b16 %v306
    %v1269 = vunpack.c.h.b16 %v306
    %v1270 = vunpack.c.l.b16 %v307
    %v1271 = vunpack.c.h.b16 %v307
    %v1272 = vunpack.c.l.b16 %v308
    %v1273 = vunpack.c.h.b16 %v308
    %v1274 = vunpack.c.l.b16 %v309
    %v1275 = vunpack.c.l.b16 %v310
    %v1276 = vunpack.c.h.b16 %v310
    %v1277 = vunpack.c.l.b16 %v311
    %v1278 = vunpack.c.h.b16 %v311
    %v1279 = vunpack.c.l.b16 %v312
    %v1280 = vunpack.c.h.b16 %v312
    %v1281 = vunpack.c.l.b16 %v313
    %v1282 = vunpack.c.l.b16 %v314
    %v1283 = vunpack.c.h.b16 %v314
    %v1284 = vunpack.c.l.b16 %v315
    %v1285 = vunpack.c.h.b16 %v315
    %v1286 = vunpack.c.l.b16 %v316
    %v1287 = vunpack.c.h.b16 %v316
    %v1288 = vunpack.c.l.b16 %v317
    %v1289 = vunpack.c.l.b16 %v318
    %v1290 = vunpack.c.h.b16 %v318
    %v1291 = vunpack.c.l.b16 %v319
    %v1292 = vunpack.c.h.b16 %v319
    %v1293 = vunpack.c.l.b16 %v320
    %v1294 = vunpack.c.h.b16 %v320
    %v1295 = vunpack.c.l.b16 %v321
    %v1296 = vunpack.c.l.b16 %v322
    %v1297 = vunpack.c.h.b16 %v322
    %v1298 = vunpack.c.l.b16 %v323
    %v1299 = vunpack.c.h.b16 %v323
    %v1300 = vunpack.c.l.b16 %v324
    %v1301 = vunpack.c.h.b16 %v324
    %v1302 = vunpack.c.l.b16 %v325
    %v1303 = vunpack.c.l.b16 %v326
    %v1304 = vunpack.c.h.b16 %v326
    %v1305 = vunpack.c.l.b16 %v327
    %v1306 = vunpack.c.h.b16 %v327
    %v1307 = vunpack.c.l.b16 %v328
    %v1308 = vunpack.c.h.b16 %v328
    %v1309 = vunpack.c.l.b16 %v329
    %v1310 = vunpack.c.l.b16 %v330
    %v1311 = vunpack.c.h.b16 %v330
    %v1312 = vunpack.c.l.b16 %v331
    %v1313 = vunpack.c.h.b16 %v331
    %v1314 = vunpack.c.l.b16 %v332
    %v1315 = vunpack.c.h.b16 %v332
    %v1316 = vunpack.c.l.b16 %v333
    %v1317 = vunpack.c.l.b16 %v334
    %v1318 = vunpack.c.h.b16 %v334
    %v1319 = vunpack.c.l.b16 %v335
    %v1320 = vunpack.c.h.b16 %v335
    %v1321 = vunpack.c.l.b16 %v336
    %v1322 = vunpack.c.h.b16 %v336
    %v1323 = vunpack.c.l.b16 %v337
    %v1324 = vunpack.c.l.b16 %v338
    %v1325 = vunpack.c.h.b16 %v338
    %v1326 = vunpack.c.l.b16 %v339
    %v1327 = vunpack.c.h.b16 %v339
    %v1328 = vunpack.c.l.b16 %v340
    %v1329 = vunpack.c.h.b16 %v340
    %v1330 = vunpack.c.l.b16 %v341
    %v1331 = vunpack.c.l.b16 %v342
    %v1332 = vunpack.c.h.b16 %v342
    %v1333 = vunpack.c.l.b16 %v343
    %v1334 = vunpack.c.h.b16 %v343
    %v1335 = vunpack.c.l.b16 %v344
    %v1336 = vunpack.c.h.b16 %v344
    %v1337 = vunpack.c.l.b16 %v345
    %v1338 = vunpack.c.l.b16 %v346
    %v1339 = vunpack.c.h.b16 %v346
    %v1340 = vunpack.c.l.b16 %v347
    %v1341 = vunpack.c.h.b16 %v347
    %v1342 = vunpack.c.l.b16 %v348
    %v1343 = vunpack.c.h.b16 %v348
    %v1344 = vunpack.c.l.b16 %v349
    %v1345 = vunpack.c.l.b16 %v350
    %v1346 = vunpack.c.h.b16 %v350
    %v1347 = vunpack.c.l.b16 %v351
    %v1348 = vunpack.c.h.b16 %v351
    %v1349 = vunpack.c.l.b16 %v352
    %v1350 = vunpack.c.h.b16 %v352
    %v1351 = vunpack.c.l.b16 %v353
    %v1352 = vunpack.c.l.b16 %v354
    %v1353 = vunpack.c.h.b16 %v354
    %v1354 = vunpack.c.l.b16 %v355
    %v1355 = vunpack.c.h.b16 %v355
    %v1356 = vunpack.c.l.b16 %v356
    %v1357 = vunpack.c.h.b16 %v356
    %v1358 = vunpack.c.l.b16 %v357
    %v1359 = vunpack.c.l.b16 %v358
    %v1360 = vunpack.c.h.b16 %v358
    %v1361 = vunpack.c.l.b16 %v359
    %v1362 = vunpack.c.h.b16 %v359
    %v1363 = vunpack.c.l.b16 %v360
    %v1364 = vunpack.c.h.b16 %v360
    %v1365 = vunpack.c.l.b16 %v361
    %v1366 = vunpack.c.l.b16 %v362
    %v1367 = vunpack.c.h.b16 %v362
    %v1368 = vunpack.c.l.b16 %v363
    %v1369 = vunpack.c.h.b16 %v363
    %v1370 = vunpack.c.l.b16 %v364
    %v1371 = vunpack.c.h.b16 %v364
    %v1372 = vunpack.c.l.b16 %v365
    %v1373 = vunpack.c.l.b16 %v366
    %v1374 = vunpack.c.h.b16 %v366
    %v1375 = vunpack.c.l.b16 %v367
    %v1376 = vunpack.c.h.b16 %v367
    %v1377 = vunpack.c.l.b16 %v368
    %v1378 = vunpack.c.h.b16 %v368
    %v1379 = vunpack.c.l.b16 %v369
    %v1380 = vunpack.c.l.b16 %v370
    %v1381 = vunpack.c.h.b16 %v370
    %v1382 = vunpack.c.l.b16 %v371
    %v1383 = vunpack.c.h.b16 %v371
    %v1384 = vunpack.c.l.b16 %v372
    %v1385 = vunpack.c.h.b16 %v372
    %v1386 = vunpack.c.l.b16 %v373
    %v1387 = vunpack.c.l.b16 %v374
    %v1388 = vunpack.c.h.b16 %v374
    %v1389 = vunpack.c.l.b16 %v375
    %v1390 = vunpack.c.h.b16 %v375
    %v1391 = vunpack.c.l.b16 %v376
    %v1392 = vunpack.c.h.b16 %v376
    %v1393 = vunpack.c.l.b16 %v377
    %v1394 = vunpack.c.l.b16 %v378
    %v1395 = vunpack.c.h.b16 %v378
    %v1396 = vunpack.c.l.b16 %v379
    %v1397 = vunpack.c.h.b16 %v379
    %v1398 = vunpack.c.l.b16 %v380
    %v1399 = vunpack.c.h.b16 %v380
    %v1400 = vunpack.c.l.b16 %v381
    %v1401 = vunpack.c.l.b16 %v382
    %v1402 = vunpack.c.h.b16 %v382
    %v1403 = vunpack.c.l.b16 %v383
    %v1404 = vunpack.c.h.b16 %v383
    %v1405 = vunpack.c.l.b16 %v384
    %v1406 = vunpack.c.h.b16 %v384
    %v1407 = vunpack.c.l.b16 %v385
    %v1408 = vunpack.c.l.b16 %v386
    %v1409 = vunpack.c.h.b16 %v386
    %v1410 = vunpack.c.l.b16 %v387
    %v1411 = vunpack.c.h.b16 %v387
    %v1412 = vunpack.c.l.b16 %v388
    %v1413 = vunpack.c.h.b16 %v388
    %v1414 = vunpack.c.l.b16 %v389
    %v1415 = vunpack.c.l.b16 %v390
    %v1416 = vunpack.c.h.b16 %v390
    %v1417 = vunpack.c.l.b16 %v391
    %v1418 = vunpack.c.h.b16 %v391
    %v1419 = vunpack.c.l.b16 %v392
    %v1420 = vunpack.c.h.b16 %v392
    %v1421 = vunpack.c.l.b16 %v393
    %v1422 = vunpack.c.l.b16 %v394
    %v1423 = vunpack.c.h.b16 %v394
    %v1424 = vunpack.c.l.b16 %v395
    %v1425 = vunpack.c.h.b16 %v395
    %v1426 = vunpack.c.l.b16 %v396
    %v1427 = vunpack.c.h.b16 %v396
    %v1428 = vunpack.c.l.b16 %v397
    %v1429 = vunpack.c.l.b16 %v398
    %v1430 = vunpack.c.h.b16 %v398
    %v1431 = vunpack.c.l.b16 %v399
    %v1432 = vunpack.c.h.b16 %v399
    %v1433 = vunpack.c.l.b16 %v400
    %v1434 = vunpack.c.h.b16 %v400
    %v1435 = vunpack.c.l.b16 %v401
    %v1436 = vunpack.c.l.b16 %v402
    %v1437 = vunpack.c.h.b16 %v402
    %v1438 = vunpack.c.l.b16 %v403
    %v1439 = vunpack.c.h.b16 %v403
    %v1440 = vunpack.c.l.b16 %v404
    %v1441 = vunpack.c.h.b16 %v404
    %v1442 = vunpack.c.l.b16 %v405
    %v1443 = vunpack.c.l.b16 %v406
    %v1444 = vunpack.c.h.b16 %v406
    %v1445 = vunpack.c.l.b16 %v407
    %v1446 = vunpack.c.h.b16 %v407
    %v1447 = vunpack.c.l.b16 %v408
    %v1448 = vunpack.c.h.b16 %v408
    %v1449 = vunpack.c.l.b16 %v409
    %v1450 = vunpack.c.l.b16 %v410
    %v1451 = vunpack.c.h.b16 %v410
    %v1452 = vunpack.c.l.b16 %v411
    %v1453 = vunpack.c.h.b16 %v411
    %v1454 = vunpack.c.l.b16 %v412
    %v1455 = vunpack.c.h.b16 %v412
    %v1456 = vunpack.c.l.b16 %v413
    %v1457 = vunpack.c.l.b16 %v414
    %v1458 = vunpack.c.h.b16 %v414
    %v1459 = vunpack.c.l.b16 %v415
    %v1460 = vunpack.c.h.b16 %v415
    %v1461 = vunpack.c.l.b16 %v416
    %v1462 = vunpack.c.h.b16 %v416
    %v1463 = vunpack.c.l.b16 %v417
    %v1464 = vunpack.c.l.b16 %v418
    %v1465 = vunpack.c.h.b16 %v418
    %v1466 = vunpack.c.l.b16 %v419
    %v1467 = vunpack.c.h.b16 %v419
    %v1468 = vunpack.c.l.b16 %v420
    %v1469 = vunpack.c.h.b16 %v420
    %v1470 = vunpack.c.l.b16 %v421
    %v1471 = vunpack.c.l.b16 %v422
    %v1472 = vunpack.c.h.b16 %v422
    %v1473 = vunpack.c.l.b16 %v423
    %v1474 = vunpack.c.h.b16 %v423
    %v1475 = vunpack.c.l.b16 %v424
    %v1476 = vunpack.c.h.b16 %v424
    %v1477 = vunpack.c.l.b16 %v425
    %v1478 = vunpack.c.l.b16 %v426
    %v1479 = vunpack.c.h.b16 %v426
    %v1480 = vunpack.c.l.b16 %v427
    %v1481 = vunpack.c.h.b16 %v427
    %v1482 = vunpack.c.l.b16 %v428
    %v1483 = vunpack.c.h.b16 %v428
    %v1484 = vunpack.c.l.b16 %v429
    %v1485 = vunpack.c.l.b16 %v430
    %v1486 = vunpack.c.h.b16 %v430
    %v1487 = vunpack.c.l.b16 %v431
    %v1488 = vunpack.c.h.b16 %v431
    %v1489 = vunpack.c.l.b16 %v432
    %v1490 = vunpack.c.h.b16 %v432
    %v1491 = vunpack.c.l.b16 %v433
    %v1492 = vunpack.c.l.b16 %v434
    %v1493 = vunpack.c.h.b16 %v434
    %v1494 = vunpack.c.l.b16 %v435
    %v1495 = vunpack.c.h.b16 %v435
    %v1496 = vunpack.c.l.b16 %v436
    %v1497 = vunpack.c.h.b16 %v436
    %v1498 = vunpack.c.l.b16 %v437
    %v1499 = vunpack.c.l.b16 %v438
    %v1500 = vunpack.c.h.b16 %v438
    %v1501 = vunpack.c.l.b16 %v439
    %v1502 = vunpack.c.h.b16 %v439
    %v1503 = vunpack.c.l.b16 %v440
    %v1504 = vunpack.c.h.b16 %v440
    %v1505 = vunpack.c.l.b16 %v441
    %v1506 = vunpack.c.l.b16 %v442
    %v1507 = vunpack.c.h.b16 %v442
    %v1508 = vunpack.c.l.b16 %v443
    %v1509 = vunpack.c.h.b16 %v443
    %v1510 = vunpack.c.l.b16 %v444
    %v1511 = vunpack.c.h.b16 %v444
    %v1512 = vunpack.c.l.b16 %v445
    %v1513 = vunpack.c.l.b16 %v446
    %v1514 = vunpack.c.h.b16 %v446
    %v1515 = vunpack.c.l.b16 %v447
    %v1516 = vunpack.c.h.b16 %v447
    %v1517 = vunpack.c.l.b16 %v448
    %v1518 = vunpack.c.h.b16 %v448
    %v1519 = vunpack.c.l.b16 %v449
    %v1520 = vunpack.c.l.b16 %v450
    %v1521 = vunpack.c.h.b16 %v450
    %v1522 = vunpack.c.l.b16 %v451
    %v1523 = vunpack.c.h.b16 %v451
    %v1524 = vunpack.c.l.b16 %v452
    %v1525 = vunpack.c.h.b16 %v452
    %v1526 = vunpack.c.l.b16 %v453
    %v1527 = vunpack.c.l.b16 %v454
    %v1528 = vunpack.c.h.b16 %v454
    %v1529 = vunpack.c.l.b16 %v455
    %v1530 = vunpack.c.h.b16 %v455
    %v1531 = vunpack.c.l.b16 %v456
    %v1532 = vunpack.c.h.b16 %v456
    %v1533 = vunpack.c.l.b16 %v457
    %v1534 = vunpack.c.l.b16 %v458
    %v1535 = vunpack.c.h.b16 %v458
    %v1536 = vunpack.c.l.b16 %v459
    %v1537 = vunpack.c.h.b16 %v459
    %v1538 = vunpack.c.l.b16 %v460
    %v1539 = vunpack.c.h.b16 %v460
    %v1540 = vunpack.c.l.b16 %v461
    %v1541 = vunpack.c.l.b16 %v462
    %v1542 = vunpack.c.h.b16 %v462
    %v1543 = vunpack.c.l.b16 %v463
    %v1544 = vunpack.c.h.b16 %v463
    %v1545 = vunpack.c.l.b16 %v464
    %v1546 = vunpack.c.h.b16 %v464
    %v1547 = vunpack.c.l.b16 %v465
    %v1548 = vunpack.c.l.b16 %v466
    %v1549 = vunpack.c.h.b16 %v466
    %v1550 = vunpack.c.l.b16 %v467
    %v1551 = vunpack.c.h.b16 %v467
    %v1552 = vunpack.c.l.b16 %v468
    %v1553 = vunpack.c.h.b16 %v468
    %v1554 = vunpack.c.l.b16 %v469
    %v1555 = vunpack.c.l.b16 %v470
    %v1556 = vunpack.c.h.b16 %v470
    %v1557 = vunpack.c.l.b16 %v471
    %v1558 = vunpack.c.h.b16 %v471
    %v1559 = vunpack.c.l.b16 %v472
    %v1560 = vunpack.c.h.b16 %v472
    %v1561 = vunpack.c.l.b16 %v473
    %v1562 = vunpack.c.l.b16 %v474
    %v1563 = vunpack.c.h.b16 %v474
    %v1564 = vunpack.c.l.b16 %v475
    %v1565 = vunpack.c.h.b16 %v475
    %v1566 = vunpack.c.l.b16 %v476
    %v1567 = vunpack.c.h.b16 %v476
    %v1568 = vunpack.c.l.b16 %v477
    %v1569 = vunpack.c.l.b16 %v478
    %v1570 = vunpack.c.h.b16 %v478
    %v1571 = vunpack.c.l.b16 %v479
    %v1572 = vunpack.c.h.b16 %v479
    %v1573 = vunpack.c.l.b16 %v480
    %v1574 = vunpack.c.h.b16 %v480
    %v1575 = vunpack.c.l.b16 %v481
    %v1576 = vunpack.c.l.b16 %v482
    %v1577 = vunpack.c.h.b16 %v482
    %v1578 = vunpack.c.l.b16 %v483
    %v1579 = vunpack.c.h.b16 %v483
    %v1580 = vunpack.c.l.b16 %v484
    %v1581 = vunpack.c.h.b16 %v484
    %v1582 = vunpack.c.l.b16 %v485
    %v1583 = vunpack.c.l.b16 %v486
    %v1584 = vunpack.c.h.b16 %v486
    %v1585 = vunpack.c.l.b16 %v487
    %v1586 = vunpack.c.h.b16 %v487
    %v1587 = vunpack.c.l.b16 %v488
    %v1588 = vunpack.c.h.b16 %v488
    %v1589 = vunpack.c.l.b16 %v489
    %v1590 = vunpack.c.l.b16 %v490
    %v1591 = vunpack.c.h.b16 %v490
    %v1592 = vunpack.c.l.b16 %v491
    %v1593 = vunpack.c.h.b16 %v491
    %v1594 = vunpack.c.l.b16 %v492
    %v1595 = vunpack.c.h.b16 %v492
    %v1596 = vunpack.c.l.b16 %v493
    %v1597 = vunpack.c.l.b16 %v494
    %v1598 = vunpack.c.h.b16 %v494
    %v1599 = vunpack.c.l.b16 %v495
    %v1600 = vunpack.c.h.b16 %v495
    %v1601 = vunpack.c.l.b16 %v496
    %v1602 = vunpack.c.h.b16 %v496
    %v1603 = vunpack.c.l.b16 %v497
    %v1604 = vunpack.c.l.b16 %v498
    %v1605 = vunpack.c.h.b16 %v498
    %v1606 = vunpack.c.l.b16 %v499
    %v1607 = vunpack.c.h.b16 %v499
    %v1608 = vunpack.c.l.b16 %v500
    %v1609 = vunpack.c.h.b16 %v500
    %v1610 = vunpack.c.l.b16 %v501
    %v1611 = vunpack.c.l.b16 %v502
    %v1612 = vunpack.c.h.b16 %v502
    %v1613 = vunpack.c.l.b16 %v503
    %v1614 = vunpack.c.h.b16 %v503
    %v1615 = vunpack.c.l.b16 %v504
    %v1616 = vunpack.c.h.b16 %v504
    %v1617 = vunpack.c.l.b16 %v505
    %v1618 = vunpack.c.l.b16 %v506
    %v1619 = vunpack.c.h.b16 %v506
    %v1620 = vunpack.c.l.b16 %v507
    %v1621 = vunpack.c.h.b16 %v507
    %v1622 = vunpack.c.l.b16 %v508
    %v1623 = vunpack.c.h.b16 %v508
    %v1624 = vunpack.c.l.b16 %v509
    %v1625 = vpack.c.b16 %v946, %v939
    %v1626 = vpack.c.b16 %v947, %v940
    %v1627 = vpack.c.b16 %v948, %v941
    %v1628 = vpack.c.b16 %v949, %v942
    %v1629 = vpack.c.b16 %v950, %v943
    %v1630 = vpack.c.b16 %v951, %v944
    %v1631 = vpack.c.b16 %v952, %v945
    %v1632 = vpack.c.b16 %v960, %v953
    %v1633 = vpack.c.b16 %v961, %v954
    %v1634 = vpack.c.b16 %v962, %v955
    %v1635 = vpack.c.b16 %v963, %v956
    %v1636 = vpack.c.b16 %v964, %v957
    %v1637 = vpack.c.b16 %v965, %v958
    %v1638 = vpack.c.b16 %v966, %v959
    %v1639 = vpack.c.b16 %v974, %v967
    %v1640 = vpack.c.b16 %v975, %v968
    %v1641 = vpack.c.b16 %v976, %v969
    %v1642 = vpack.c.b16 %v977, %v970
    %v1643 = vpack.c.b16 %v978, %v971
    %v1644 = vpack.c.b16 %v979, %v972
    %v1645 = vpack.c.b16 %v980, %v973
    %v1646 = vpack.c.b16 %v988, %v981
    %v1647 = vpack.c.b16 %v989, %v982
    %v1648 = vpack.c.b16 %v990, %v983
    %v1649 = vpack.c.b16 %v991, %v984
    %v1650 = vpack.c.b16 %v992, %v985
    %v1651 = vpack.c.b16 %v993, %v986
    %v1652 = vpack.c.b16 %v994, %v987
    %v1653 = vpack.c.b16 %v1002, %v995
    %v1654 = vpack.c.b16 %v1003, %v996
    %v1655 = vpack.c.b16 %v1004, %v997
    %v1656 = vpack.c.b16 %v1005, %v998
    %v1657 = vpack.c.b16 %v1006, %v999
    %v1658 = vpack.c.b16 %v1007, %v1000
    %v1659 = vpack.c.b16 %v1008, %v1001
    %v1660 = vpack.c.b16 %v1016, %v1009
    %v1661 = vpack.c.b16 %v1017, %v1010
    %v1662 = vpack.c.b16 %v1018, %v1011
    %v1663 = vpack.c.b16 %v1019, %v1012
    %v1664 = vpack.c.b16 %v1020, %v1013
    %v1665 = vpack.c.b16 %v1021, %v1014
    %v1666 = vpack.c.b16 %v1022, %v1015
    %v1667 = vpack.c.b16 %v1030, %v1023
    %v1668 = vpack.c.b16 %v1031, %v1024
    %v1669 = vpack.c.b16 %v1032, %v1025
    %v1670 = vpack.c.b16 %v1033, %v1026
    %v1671 = vpack.c.b16 %v1034, %v1027
    %v1672 = vpack.c.b16 %v1035, %v1028
    %v1673 = vpack.c.b16 %v1036, %v1029
    %v1674 = vpack.c.b16 %v1044, %v1037
    %v1675 = vpack.c.b16 %v1045, %v1038
    %v1676 = vpack.c.b16 %v1046, %v1039
    %v1677 = vpack.c.b16 %v1047, %v1040
    %v1678 = vpack.c.b16 %v1048, %v1041
    %v1679 = vpack.c.b16 %v1049, %v1042
    %v1680 = vpack.c.b16 %v1050, %v1043
    %v1681 = vpack.c.b16 %v1058, %v1051
    %v1682 = vpack.c.b16 %v1059, %v1052
    %v1683 = vpack.c.b16 %v1060, %v1053
    %v1684 = vpack.c.b16 %v1061, %v1054
    %v1685 = vpack.c.b16 %v1062, %v1055
    %v1686 = vpack.c.b16 %v1063, %v1056
    %v1687 = vpack.c.b16 %v1064, %v1057
    %v1688 = vpack.c.b16 %v1072, %v1065
    %v1689 = vpack.c.b16 %v1073, %v1066
    %v1690 = vpack.c.b16 %v1074, %v1067
    %v1691 = vpack.c.b16 %v1075, %v1068
    %v1692 = vpack.c.b16 %v1076, %v1069
    %v1693 = vpack.c.b16 %v1077, %v1070
    %v1694 = vpack.c.b16 %v1078, %v1071
    %v1695 = vpack.c.b16 %v1086, %v1079
    %v1696 = vpack.c.b16 %v1087, %v1080
    %v1697 = vpack.c.b16 %v1088, %v1081
    %v1698 = vpack.c.b16 %v1089, %v1082
    %v1699 = vpack.c.b16 %v1090, %v1083
    %v1700 = vpack.c.b16 %v1091, %v1084
    %v1701 = vpack.c.b16 %v1092, %v1085
    %v1702 = vpack.c.b16 %v1100, %v1093
    %v1703 = vpack.c.b16 %v1101, %v1094
    %v1704 = vpack.c.b16 %v1102, %v1095
    %v1705 = vpack.c.b16 %v1103, %v1096
    %v1706 = vpack.c.b16 %v1104, %v1097
    %v1707 = vpack.c.b16 %v1105, %v1098
    %v1708 = vpack.c.b16 %v1106, %v1099
    %v1709 = vpack.c.b16 %v1114, %v1107
    %v1710 = vpack.c.b16 %v1115, %v1108
    %v1711 = vpack.c.b16 %v1116, %v1109
    %v1712 = vpack.c.b16 %v1117, %v1110
    %v1713 = vpack.c.b16 %v1118, %v1111
    %v1714 = vpack.c.b16 %v1119, %v1112
    %v1715 = vpack.c.b16 %v1120, %v1113
    %v1716 = vpack.c.b16 %v1128, %v1121
    %v1717 = vpack.c.b16 %v1129, %v1122
    %v1718 = vpack.c.b16 %v1130, %v1123
    %v1719 = vpack.c.b16 %v1131, %v1124
    %v1720 = vpack.c.b16 %v1132, %v1125
    %v1721 = vpack.c.b16 %v1133, %v1126
    %v1722 = vpack.c.b16 %v1134, %v1127
    %v1723 = vpack.c.b16 %v1142, %v1135
    %v1724 = vpack.c.b16 %v1143, %v1136
    %v1725 = vpack.c.b16 %v1144, %v1137
    %v1726 = vpack.c.b16 %v1145, %v1138
    %v1727 = vpack.c.b16 %v1146, %v1139
    %v1728 = vpack.c.b16 %v1147, %v1140
    %v1729 = vpack.c.b16 %v1148, %v1141
    %v1730 = vpack.c.b16 %v1156, %v1149
    %v1731 = vpack.c.b16 %v1157, %v1150
    %v1732 = vpack.c.b16 %v1158, %v1151
    %v1733 = vpack.c.b16 %v1159, %v1152
    %v1734 = vpack.c.b16 %v1160, %v1153
    %v1735 = vpack.c.b16 %v1161, %v1154
    %v1736 = vpack.c.b16 %v1162, %v1155
    %v1737 = vpack.c.b16 %v1170, %v1163
    %v1738 = vpack.c.b16 %v1171, %v1164
    %v1739 = vpack.c.b16 %v1172, %v1165
    %v1740 = vpack.c.b16 %v1173, %v1166
    %v1741 = vpack.c.b16 %v1174, %v1167
    %v1742 = vpack.c.b16 %v1175, %v1168
    %v1743 = vpack.c.b16 %v1176, %v1169
    %v1744 = vpack.c.b16 %v1184, %v1177
    %v1745 = vpack.c.b16 %v1185, %v1178
    %v1746 = vpack.c.b16 %v1186, %v1179
    %v1747 = vpack.c.b16 %v1187, %v1180
    %v1748 = vpack.c.b16 %v1188, %v1181
    %v1749 = vpack.c.b16 %v1189, %v1182
    %v1750 = vpack.c.b16 %v1190, %v1183
    %v1751 = vpack.c.b16 %v1198, %v1191
    %v1752 = vpack.c.b16 %v1199, %v1192
    %v1753 = vpack.c.b16 %v1200, %v1193
    %v1754 = vpack.c.b16 %v1201, %v1194
    %v1755 = vpack.c.b16 %v1202, %v1195
    %v1756 = vpack.c.b16 %v1203, %v1196
    %v1757 = vpack.c.b16 %v1204, %v1197
    %v1758 = vpack.c.b16 %v1212, %v1205
    %v1759 = vpack.c.b16 %v1213, %v1206
    %v1760 = vpack.c.b16 %v1214, %v1207
    %v1761 = vpack.c.b16 %v1215, %v1208
    %v1762 = vpack.c.b16 %v1216, %v1209
    %v1763 = vpack.c.b16 %v1217, %v1210
    %v1764 = vpack.c.b16 %v1218, %v1211
    %v1765 = vpack.c.b16 %v1226, %v1219
    %v1766 = vpack.c.b16 %v1227, %v1220
    %v1767 = vpack.c.b16 %v1228, %v1221
    %v1768 = vpack.c.b16 %v1229, %v1222
    %v1769 = vpack.c.b16 %v1230, %v1223
    %v1770 = vpack.c.b16 %v1231, %v1224
    %v1771 = vpack.c.b16 %v1232, %v1225
    %v1772 = vpack.c.b16 %v1240, %v1233
    %v1773 = vpack.c.b16 %v1241, %v1234
    %v1774 = vpack.c.b16 %v1242, %v1235
    %v1775 = vpack.c.b16 %v1243, %v1236
    %v1776 = vpack.c.b16 %v1244, %v1237
    %v1777 = vpack.c.b16 %v1245, %v1238
    %v1778 = vpack.c.b16 %v1246, %v1239
    %v1779 = vpack.c.b16 %v1254, %v1247
    %v1780 = vpack.c.b16 %v1255, %v1248
    %v1781 = vpack.c.b16 %v1256, %v1249
    %v1782 = vpack.c.b16 %v1257, %v1250
    %v1783 = vpack.c.b16 %v1258, %v1251
    %v1784 = vpack.c.b16 %v1259, %v1252
    %v1785 = vpack.c.b16 %v1260, %v1253
    %v1786 = vpack.c.b16 %v1268, %v1261
    %v1787 = vpack.c.b16 %v1269, %v1262
    %v1788 = vpack.c.b16 %v1270, %v1263
    %v1789 = vpack.c.b16 %v1271, %v1264
    %v1790 = vpack.c.b16 %v1272, %v1265
    %v1791 = vpack.c.b16 %v1273, %v1266
    %v1792 = vpack.c.b16 %v1274, %v1267
    %v1793 = vpack.c.b16 %v1282, %v1275
    %v1794 = vpack.c.b16 %v1283, %v1276
    %v1795 = vpack.c.b16 %v1284, %v1277
    %v1796 = vpack.c.b16 %v1285, %v1278
    %v1797 = vpack.c.b16 %v1286, %v1279
    %v1798 = vpack.c.b16 %v1287, %v1280
    %v1799 = vpack.c.b16 %v1288, %v1281
    %v1800 = vpack.c.b16 %v1296, %v1289
    %v1801 = vpack.c.b16 %v1297, %v1290
    %v1802 = vpack.c.b16 %v1298, %v1291
    %v1803 = vpack.c.b16 %v1299, %v1292
    %v1804 = vpack.c.b16 %v1300, %v1293
    %v1805 = vpack.c.b16 %v1301, %v1294
    %v1806 = vpack.c.b16 %v1302, %v1295
    %v1807 = vpack.c.b16 %v1310, %v1303
    %v1808 = vpack.c.b16 %v1311, %v1304
    %v1809 = vpack.c.b16 %v1312, %v1305
    %v1810 = vpack.c.b16 %v1313, %v1306
    %v1811 = vpack.c.b16 %v1314, %v1307
    %v1812 = vpack.c.b16 %v1315, %v1308
    %v1813 = vpack.c.b16 %v1316, %v1309
    %v1814 = vpack.c.b16 %v1324, %v1317
    %v1815 = vpack.c.b16 %v1325, %v1318
    %v1816 = vpack.c.b16 %v1326, %v1319
    %v1817 = vpack.c.b16 %v1327, %v1320
    %v1818 = vpack.c.b16 %v1328, %v1321
    %v1819 = vpack.c.b16 %v1329, %v1322
    %v1820 = vpack.c.b16 %v1330, %v1323
    %v1821 = vpack.c.b16 %v1338, %v1331
    %v1822 = vpack.c.b16 %v1339, %v1332
    %v1823 = vpack.c.b16 %v1340, %v1333
    %v1824 = vpack.c.b16 %v1341, %v1334
    %v1825 = vpack.c.b16 %v1342, %v1335
    %v1826 = vpack.c.b16 %v1343, %v1336
    %v1827 = vpack.c.b16 %v1344, %v1337
    %v1828 = vpack.c.b16 %v1352, %v1345
    %v1829 = vpack.c.b16 %v1353, %v1346
    %v1830 = vpack.c.b16 %v1354, %v1347
    %v1831 = vpack.c.b16 %v1355, %v1348
    %v1832 = vpack.c.b16 %v1356, %v1349
    %v1833 = vpack.c.b16 %v1357, %v1350
    %v1834 = vpack.c.b16 %v1358, %v1351
    %v1835 = vpack.c.b16 %v1366, %v1359
    %v1836 = vpack.c.b16 %v1367, %v1360
    %v1837 = vpack.c.b16 %v1368, %v1361
    %v1838 = vpack.c.b16 %v1369, %v1362
    %v1839 = vpack.c.b16 %v1370, %v1363
    %v1840 = vpack.c.b16 %v1371, %v1364
    %v1841 = vpack.c.b16 %v1372, %v1365
    %v1842 = vpack.c.b16 %v1380, %v1373
    %v1843 = vpack.c.b16 %v1381, %v1374
    %v1844 = vpack.c.b16 %v1382, %v1375
    %v1845 = vpack.c.b16 %v1383, %v1376
    %v1846 = vpack.c.b16 %v1384, %v1377
    %v1847 = vpack.c.b16 %v1385, %v1378
    %v1848 = vpack.c.b16 %v1386, %v1379
    %v1849 = vpack.c.b16 %v1394, %v1387
    %v1850 = vpack.c.b16 %v1395, %v1388
    %v1851 = vpack.c.b16 %v1396, %v1389
    %v1852 = vpack.c.b16 %v1397, %v1390
    %v1853 = vpack.c.b16 %v1398, %v1391
    %v1854 = vpack.c.b16 %v1399, %v1392
    %v1855 = vpack.c.b16 %v1400, %v1393
    %v1856 = vpack.c.b16 %v1408, %v1401
    %v1857 = vpack.c.b16 %v1409, %v1402
    %v1858 = vpack.c.b16 %v1410, %v1403
    %v1859 = vpack.c.b16 %v1411, %v1404
    %v1860 = vpack.c.b16 %v1412, %v1405
    %v1861 = vpack.c.b16 %v1413, %v1406
    %v1862 = vpack.c.b16 %v1414, %v1407
    %v1863 = vpack.c.b16 %v1422, %v1415
    %v1864 = vpack.c.b16 %v1423, %v1416
    %v1865 = vpack.c.b16 %v1424, %v1417
    %v1866 = vpack.c.b16 %v1425, %v1418
    %v1867 = vpack.c.b16 %v1426, %v1419
    %v1868 = vpack.c.b16 %v1427, %v1420
    %v1869 = vpack.c.b16 %v1428, %v1421
    %v1870 = vpack.c.b16 %v1436, %v1429
    %v1871 = vpack.c.b16 %v1437, %v1430
    %v1872 = vpack.c.b16 %v1438, %v1431
    %v1873 = vpack.c.b16 %v1439, %v1432
    %v1874 = vpack.c.b16 %v1440, %v1433
    %v1875 = vpack.c.b16 %v1441, %v1434
    %v1876 = vpack.c.b16 %v1442, %v1435
    %v1877 = vpack.c.b16 %v1450, %v1443
    %v1878 = vpack.c.b16 %v1451, %v1444
    %v1879 = vpack.c.b16 %v1452, %v1445
    %v1880 = vpack.c.b16 %v1453, %v1446
    %v1881 = vpack.c.b16 %v1454, %v1447
    %v1882 = vpack.c.b16 %v1455, %v1448
    %v1883 = vpack.c.b16 %v1456, %v1449
    %v1884 = vpack.c.b16 %v1464, %v1457
    %v1885 = vpack.c.b16 %v1465, %v1458
    %v1886 = vpack.c.b16 %v1466, %v1459
    %v1887 = vpack.c.b16 %v1467, %v1460
    %v1888 = vpack.c.b16 %v1468, %v1461
    %v1889 = vpack.c.b16 %v1469, %v1462
    %v1890 = vpack.c.b16 %v1470, %v1463
    %v1891 = vpack.c.b16 %v1478, %v1471
    %v1892 = vpack.c.b16 %v1479, %v1472
    %v1893 = vpack.c.b16 %v1480, %v1473
    %v1894 = vpack.c.b16 %v1481, %v1474
    %v1895 = vpack.c.b16 %v1482, %v1475
    %v1896 = vpack.c.b16 %v1483, %v1476
    %v1897 = vpack.c.b16 %v1484, %v1477
    %v1898 = vpack.c.b16 %v1492, %v1485
    %v1899 = vpack.c.b16 %v1493, %v1486
    %v1900 = vpack.c.b16 %v1494, %v1487
    %v1901 = vpack.c.b16 %v1495, %v1488
    %v1902 = vpack.c.b16 %v1496, %v1489
    %v1903 = vpack.c.b16 %v1497, %v1490
    %v1904 = vpack.c.b16 %v1498, %v1491
    %v1905 = vpack.c.b16 %v1506, %v1499
    %v1906 = vpack.c.b16 %v1507, %v1500
    %v1907 = vpack.c.b16 %v1508, %v1501
    %v1908 = vpack.c.b16 %v1509, %v1502
    %v1909 = vpack.c.b16 %v1510, %v1503
    %v1910 = vpack.c.b16 %v1511, %v1504
    %v1911 = vpack.c.b16 %v1512, %v1505
    %v1912 = vpack.c.b16 %v1520, %v1513
    %v1913 = vpack.c.b16 %v1521, %v1514
    %v1914 = vpack.c.b16 %v1522, %v1515
    %v1915 = vpack.c.b16 %v1523, %v1516
    %v1916 = vpack.c.b16 %v1524, %v1517
    %v1917 = vpack.c.b16 %v1525, %v1518
    %v1918 = vpack.c.b16 %v1526, %v1519
    %v1919 = vpack.c.b16 %v1534, %v1527
    %v1920 = vpack.c.b16 %v1535, %v1528
    %v1921 = vpack.c.b16 %v1536, %v1529
    %v1922 = vpack.c.b16 %v1537, %v1530
    %v1923 = vpack.c.b16 %v1538, %v1531
    %v1924 = vpack.c.b16 %v1539, %v1532
    %v1925 = vpack.c.b16 %v1540, %v1533
    %v1926 = vpack.c.b16 %v1548, %v1541
    %v1927 = vpack.c.b16 %v1549, %v1542
    %v1928 = vpack.c.b16 %v1550, %v1543
    %v1929 = vpack.c.b16 %v1551, %v1544
    %v1930 = vpack.c.b16 %v1552, %v1545
    %v1931 = vpack.c.b16 %v1553, %v1546
    %v1932 = vpack.c.b16 %v1554, %v1547
    %v1933 = vpack.c.b16 %v1562, %v1555
    %v1934 = vpack.c.b16 %v1563, %v1556
    %v1935 = vpack.c.b16 %v1564, %v1557
    %v1936 = vpack.c.b16 %v1565, %v1558
    %v1937 = vpack.c.b16 %v1566, %v1559
    %v1938 = vpack.c.b16 %v1567, %v1560
    %v1939 = vpack.c.b16 %v1568, %v1561
    %v1940 = vpack.c.b16 %v1576, %v1569
    %v1941 = vpack.c.b16 %v1577, %v1570
    %v1942 = vpack.c.b16 %v1578, %v1571
    %v1943 = vpack.c.b16 %v1579, %v1572
    %v1944 = vpack.c.b16 %v1580, %v1573
    %v1945 = vpack.c.b16 %v1581, %v1574
    %v1946 = vpack.c.b16 %v1582, %v1575
    %v1947 = vpack.c.b16 %v1590, %v1583
    %v1948 = vpack.c.b16 %v1591, %v1584
    %v1949 = vpack.c.b16 %v1592, %v1585
    %v1950 = vpack.c.b16 %v1593, %v1586
    %v1951 = vpack.c.b16 %v1594, %v1587
    %v1952 = vpack.c.b16 %v1595, %v1588
    %v1953 = vpack.c.b16 %v1596, %v1589
    %v1954 = vpack.c.b16 %v1604, %v1597
    %v1955 = vpack.c.b16 %v1605, %v1598
    %v1956 = vpack.c.b16 %v1606, %v1599
    %v1957 = vpack.c.b16 %v1607, %v1600
    %v1958 = vpack.c.b16 %v1608, %v1601
    %v1959 = vpack.c.b16 %v1609, %v1602
    %v1960 = vpack.c.b16 %v1610, %v1603
    %v1961 = vpack.c.b16 %v1618, %v1611
    %v1962 = vpack.c.b16 %v1619, %v1612
    %v1963 = vpack.c.b16 %v1620, %v1613
    %v1964 = vpack.c.b16 %v1621, %v1614
    %v1965 = vpack.c.b16 %v1622, %v1615
    %v1966 = vpack.c.b16 %v1623, %v1616
    %v1967 = vpack.c.b16 %v1624, %v1617
    %vm2311 = vcmask 130048
    %v2313 = vsel %vm2311, %v117, 0
    %2315 = vmatprep.subr.bf16.mxu0 %v1626
    %2316 = vmatpush1.bf16.msra.mxu0 %v1625
    %2317 = vmatprep.subr.bf16.mxu0 %v1633
    %2318 = vmatpush1.bf16.msra.mxu0 %v1632
    %2319 = vmatprep.subr.bf16.mxu0 %v1640
    %2320 = vmatpush1.bf16.msra.mxu0 %v1639
    %2321 = vmatprep.subr.bf16.mxu0 %v1647
    %2322 = vmatpush1.bf16.msra.mxu0 %v1646
    %2323 = vmatprep.subr.bf16.mxu0 %v1654
    %2324 = vmatpush1.bf16.msra.mxu0 %v1653
    %2325 = vmatprep.subr.bf16.mxu0 %v1661
    %2326 = vmatpush1.bf16.msra.mxu0 %v1660
    %2327 = vmatprep.subr.bf16.mxu0 %v1668
    %2328 = vmatpush1.bf16.msra.mxu0 %v1667
    %2329 = vmatprep.subr.bf16.mxu0 %v1675
    %2330 = vmatpush1.bf16.msra.mxu0 %v1674
    %2331 = vmatprep.subr.bf16.mxu0 %v1682
    %2332 = vmatpush1.bf16.msra.mxu0 %v1681
    %2333 = vmatprep.subr.bf16.mxu0 %v1689
    %2334 = vmatpush1.bf16.msra.mxu0 %v1688
    %2335 = vmatprep.subr.bf16.mxu0 %v1696
    %2336 = vmatpush1.bf16.msra.mxu0 %v1695
    %2337 = vmatprep.subr.bf16.mxu0 %v1703
    %2338 = vmatpush1.bf16.msra.mxu0 %v1702
    %2339 = vmatprep.subr.bf16.mxu0 %v1710
    %2340 = vmatpush1.bf16.msra.mxu0 %v1709
    %2341 = vmatprep.subr.bf16.mxu0 %v1717
    %2342 = vmatpush1.bf16.msra.mxu0 %v1716
    %2343 = vmatprep.subr.bf16.mxu0 %v1724
    %2344 = vmatpush1.bf16.msra.mxu0 %v1723
    %2345 = vmatprep.subr.bf16.mxu0 %v1731
    %2346 = vmatpush1.bf16.msra.mxu0 %v1730
    %2347 = vmatprep.mubr.bf16.mxu0 %v112
    %2348 = vmatmul.mubr.bf16.gmra.mrb[0].mxu0 %v111
    %v2349 = vpop.f32.mrb[0].mxu0
    %v2350 = vadd.f32 %v515, %v2349
    %v2351 = vpop.f32.mrb[0].mxu0
    %v2352 = vadd.f32 %v519, %v2351
    %v2353 = vpop.f32.mrb[0].mxu0
    %v2354 = vpop.f32.mrb[0].mxu0
    %2355 = vdwg.mxu0
    %2356 = vmatprep.subr.bf16.mxu0 %v1738
    %2357 = vmatpush1.bf16.msra.mxu0 %v1737
    %2358 = vmatprep.subr.bf16.mxu0 %v1745
    %2359 = vmatpush1.bf16.msra.mxu0 %v1744
    %2360 = vmatprep.subr.bf16.mxu0 %v1752
    %2361 = vmatpush1.bf16.msra.mxu0 %v1751
    %2362 = vmatprep.subr.bf16.mxu0 %v1759
    %2363 = vmatpush1.bf16.msra.mxu0 %v1758
    %2364 = vmatprep.subr.bf16.mxu0 %v1766
    %2365 = vmatpush1.bf16.msra.mxu0 %v1765
    %2366 = vmatprep.subr.bf16.mxu0 %v1773
    %2367 = vmatpush1.bf16.msra.mxu0 %v1772
    %2368 = vmatprep.subr.bf16.mxu0 %v1780
    %2369 = vmatpush1.bf16.msra.mxu0 %v1779
    %2370 = vmatprep.subr.bf16.mxu0 %v1787
    %2371 = vmatpush1.bf16.msra.mxu0 %v1786
    %2372 = vmatprep.subr.bf16.mxu0 %v1794
    %2373 = vmatpush1.bf16.msra.mxu0 %v1793
    %2374 = vmatprep.subr.bf16.mxu0 %v1801
    %2375 = vmatpush1.bf16.msra.mxu0 %v1800
    %2376 = vmatprep.subr.bf16.mxu0 %v1808
    %2377 = vmatpush1.bf16.msra.mxu0 %v1807
    %2378 = vmatprep.subr.bf16.mxu0 %v1815
    %2379 = vmatpush1.bf16.msra.mxu0 %v1814
    %2380 = vmatprep.subr.bf16.mxu0 %v1822
    %2381 = vmatpush1.bf16.msra.mxu0 %v1821
    %2382 = vmatprep.subr.bf16.mxu0 %v1829
    %2383 = vmatpush1.bf16.msra.mxu0 %v1828
    %2384 = vmatprep.subr.bf16.mxu0 %v1836
    %2385 = vmatpush1.bf16.msra.mxu0 %v1835
    %2386 = vmatprep.subr.bf16.mxu0 %v1843
    %2387 = vmatpush1.bf16.msra.mxu0 %v1842
    %2388 = vmatprep.mubr.bf16.mxu0 %v114
    %2389 = vmatmul.mubr.bf16.gmra.mrb[0].mxu0 %v113
    %v2390 = vpop.f32.mrb[0].mxu0
    %v2391 = vadd.f32 %v2350, %v2390
    %v2392 = vpop.f32.mrb[0].mxu0
    %v2393 = vadd.f32 %v2352, %v2392
    %v2394 = vpop.f32.mrb[0].mxu0
    %v2395 = vpop.f32.mrb[0].mxu0
    %2396 = vdwg.mxu0
    %2397 = vmatprep.subr.bf16.mxu0 %v1850
    %2398 = vmatpush1.bf16.msra.mxu0 %v1849
    %2399 = vmatprep.subr.bf16.mxu0 %v1857
    %2400 = vmatpush1.bf16.msra.mxu0 %v1856
    %2401 = vmatprep.subr.bf16.mxu0 %v1864
    %2402 = vmatpush1.bf16.msra.mxu0 %v1863
    %2403 = vmatprep.subr.bf16.mxu0 %v1871
    %2404 = vmatpush1.bf16.msra.mxu0 %v1870
    %2405 = vmatprep.subr.bf16.mxu0 %v1878
    %2406 = vmatpush1.bf16.msra.mxu0 %v1877
    %2407 = vmatprep.subr.bf16.mxu0 %v1885
    %2408 = vmatpush1.bf16.msra.mxu0 %v1884
    %2409 = vmatprep.subr.bf16.mxu0 %v1892
    %2410 = vmatpush1.bf16.msra.mxu0 %v1891
    %2411 = vmatprep.subr.bf16.mxu0 %v1899
    %2412 = vmatpush1.bf16.msra.mxu0 %v1898
    %2413 = vmatprep.subr.bf16.mxu0 %v1906
    %2414 = vmatpush1.bf16.msra.mxu0 %v1905
    %2415 = vmatprep.subr.bf16.mxu0 %v1913
    %2416 = vmatpush1.bf16.msra.mxu0 %v1912
    %2417 = vmatprep.subr.bf16.mxu0 %v1920
    %2418 = vmatpush1.bf16.msra.mxu0 %v1919
    %2419 = vmatprep.subr.bf16.mxu0 %v1927
    %2420 = vmatpush1.bf16.msra.mxu0 %v1926
    %2421 = vmatprep.subr.bf16.mxu0 %v1934
    %2422 = vmatpush1.bf16.msra.mxu0 %v1933
    %2423 = vmatprep.subr.bf16.mxu0 %v1941
    %2424 = vmatpush1.bf16.msra.mxu0 %v1940
    %2425 = vmatprep.subr.bf16.mxu0 %v1948
    %2426 = vmatpush1.bf16.msra.mxu0 %v1947
    %2427 = vmatprep.subr.bf16.mxu0 %v1955
    %2428 = vmatpush1.bf16.msra.mxu0 %v1954
    %2429 = vmatprep.mubr.bf16.mxu0 %v116
    %2430 = vmatmul.mubr.bf16.gmra.mrb[0].mxu0 %v115
    %v2431 = vpop.f32.mrb[0].mxu0
    %v2432 = vadd.f32 %v2391, %v2431
    %v2433 = vpop.f32.mrb[0].mxu0
    %v2434 = vadd.f32 %v2393, %v2433
    %v2435 = vpop.f32.mrb[0].mxu0
    %v2436 = vpop.f32.mrb[0].mxu0
    %2437 = vdwg.mxu0
    %2438 = vmatprep.subr.bf16.mxu0 %v1962
    %2439 = vmatpush1.bf16.msra.mxu0 %v1961
    %2440 = vmatprep.subr.bf16.mxu0 0
    %2441 = vmatpush1.bf16.msra.mxu0 0
    %2442 = vmatprep.subr.bf16.mxu0 0
    %2443 = vmatpush1.bf16.msra.mxu0 0
    %2444 = vmatprep.subr.bf16.mxu0 0
    %2445 = vmatpush1.bf16.msra.mxu0 0
    %2446 = vmatprep.subr.bf16.mxu0 0
    %2447 = vmatpush1.bf16.msra.mxu0 0
    %2448 = vmatprep.subr.bf16.mxu0 0
    %2449 = vmatpush1.bf16.msra.mxu0 0
    %2450 = vmatprep.subr.bf16.mxu0 0
    %2451 = vmatpush1.bf16.msra.mxu0 0
    %2452 = vmatprep.subr.bf16.mxu0 0
    %2453 = vmatpush1.bf16.msra.mxu0 0
    %2454 = vmatprep.subr.bf16.mxu0 0
    %2455 = vmatpush1.bf16.msra.mxu0 0
    %2456 = vmatprep.subr.bf16.mxu0 0
    %2457 = vmatpush1.bf16.msra.mxu0 0
    %2458 = vmatprep.subr.bf16.mxu0 0
    %2459 = vmatpush1.bf16.msra.mxu0 0
    %2460 = vmatprep.subr.bf16.mxu0 0
    %2461 = vmatpush1.bf16.msra.mxu0 0
    %2462 = vmatprep.subr.bf16.mxu0 0
    %2463 = vmatpush1.bf16.msra.mxu0 0
    %2464 = vmatprep.subr.bf16.mxu0 0
    %2465 = vmatpush1.bf16.msra.mxu0 0
    %2466 = vmatprep.subr.bf16.mxu0 0
    %2467 = vmatpush1.bf16.msra.mxu0 0
    %2468 = vmatprep.subr.bf16.mxu0 0
    %2469 = vmatpush1.bf16.msra.mxu0 0
    %2470 = vmatprep.mubr.bf16.mxu0 0
    %2471 = vmatmul.mubr.bf16.gmra.mrb[0].mxu0 %v2313
    %v2472 = vpop.f32.mrb[0].mxu0
    %v2473 = vadd.f32 %v2432, %v2472
    %v2474 = vpop.f32.mrb[0].mxu0
    %v2475 = vadd.f32 %v2434, %v2474
    %v2476 = vpop.f32.mrb[0].mxu0
    %v2477 = vpop.f32.mrb[0].mxu0
    %2478 = vdwg.mxu0
    %2479 = vmatprep.subr.bf16.mxu0 %v1628
    %2480 = vmatpush1.bf16.msra.mxu0 %v1627
    %2481 = vmatprep.subr.bf16.mxu0 %v1635
    %2482 = vmatpush1.bf16.msra.mxu0 %v1634
    %2483 = vmatprep.subr.bf16.mxu0 %v1642
    %2484 = vmatpush1.bf16.msra.mxu0 %v1641
    %2485 = vmatprep.subr.bf16.mxu0 %v1649
    %2486 = vmatpush1.bf16.msra.mxu0 %v1648
    %2487 = vmatprep.subr.bf16.mxu0 %v1656
    %2488 = vmatpush1.bf16.msra.mxu0 %v1655
    %2489 = vmatprep.subr.bf16.mxu0 %v1663
    %2490 = vmatpush1.bf16.msra.mxu0 %v1662
    %2491 = vmatprep.subr.bf16.mxu0 %v1670
    %2492 = vmatpush1.bf16.msra.mxu0 %v1669
    %2493 = vmatprep.subr.bf16.mxu0 %v1677
    %2494 = vmatpush1.bf16.msra.mxu0 %v1676
    %2495 = vmatprep.subr.bf16.mxu0 %v1684
    %2496 = vmatpush1.bf16.msra.mxu0 %v1683
    %2497 = vmatprep.subr.bf16.mxu0 %v1691
    %2498 = vmatpush1.bf16.msra.mxu0 %v1690
    %2499 = vmatprep.subr.bf16.mxu0 %v1698
    %2500 = vmatpush1.bf16.msra.mxu0 %v1697
    %2501 = vmatprep.subr.bf16.mxu0 %v1705
    %2502 = vmatpush1.bf16.msra.mxu0 %v1704
    %2503 = vmatprep.subr.bf16.mxu0 %v1712
    %2504 = vmatpush1.bf16.msra.mxu0 %v1711
    %2505 = vmatprep.subr.bf16.mxu0 %v1719
    %2506 = vmatpush1.bf16.msra.mxu0 %v1718
    %2507 = vmatprep.subr.bf16.mxu0 %v1726
    %2508 = vmatpush1.bf16.msra.mxu0 %v1725
    %2509 = vmatprep.subr.bf16.mxu0 %v1733
    %2510 = vmatpush1.bf16.msra.mxu0 %v1732
    %2511 = vmatprep.mubr.bf16.mxu0 %v112
    %2512 = vmatmul.mubr.bf16.gmra.mrb[0].mxu0 %v111
    %v2513 = vpop.f32.mrb[0].mxu0
    %v2514 = vadd.f32 %v523, %v2513
    %v2515 = vpop.f32.mrb[0].mxu0
    %v2516 = vadd.f32 %v527, %v2515
    %v2517 = vpop.f32.mrb[0].mxu0
    %v2518 = vpop.f32.mrb[0].mxu0
    %2519 = vdwg.mxu0
    %2520 = vmatprep.subr.bf16.mxu0 %v1740
    %2521 = vmatpush1.bf16.msra.mxu0 %v1739
    %2522 = vmatprep.subr.bf16.mxu0 %v1747
    %2523 = vmatpush1.bf16.msra.mxu0 %v1746
    %2524 = vmatprep.subr.bf16.mxu0 %v1754
    %2525 = vmatpush1.bf16.msra.mxu0 %v1753
    %2526 = vmatprep.subr.bf16.mxu0 %v1761
    %2527 = vmatpush1.bf16.msra.mxu0 %v1760
    %2528 = vmatprep.subr.bf16.mxu0 %v1768
    %2529 = vmatpush1.bf16.msra.mxu0 %v1767
    %2530 = vmatprep.subr.bf16.mxu0 %v1775
    %2531 = vmatpush1.bf16.msra.mxu0 %v1774
    %2532 = vmatprep.subr.bf16.mxu0 %v1782
    %2533 = vmatpush1.bf16.msra.mxu0 %v1781
    %2534 = vmatprep.subr.bf16.mxu0 %v1789
    %2535 = vmatpush1.bf16.msra.mxu0 %v1788
    %2536 = vmatprep.subr.bf16.mxu0 %v1796
    %2537 = vmatpush1.bf16.msra.mxu0 %v1795
    %2538 = vmatprep.subr.bf16.mxu0 %v1803
    %2539 = vmatpush1.bf16.msra.mxu0 %v1802
    %2540 = vmatprep.subr.bf16.mxu0 %v1810
    %2541 = vmatpush1.bf16.msra.mxu0 %v1809
    %2542 = vmatprep.subr.bf16.mxu0 %v1817
    %2543 = vmatpush1.bf16.msra.mxu0 %v1816
    %2544 = vmatprep.subr.bf16.mxu0 %v1824
    %2545 = vmatpush1.bf16.msra.mxu0 %v1823
    %2546 = vmatprep.subr.bf16.mxu0 %v1831
    %2547 = vmatpush1.bf16.msra.mxu0 %v1830
    %2548 = vmatprep.subr.bf16.mxu0 %v1838
    %2549 = vmatpush1.bf16.msra.mxu0 %v1837
    %2550 = vmatprep.subr.bf16.mxu0 %v1845
    %2551 = vmatpush1.bf16.msra.mxu0 %v1844
    %2552 = vmatprep.mubr.bf16.mxu0 %v114
    %2553 = vmatmul.mubr.bf16.gmra.mrb[0].mxu0 %v113
    %v2554 = vpop.f32.mrb[0].mxu0
    %v2555 = vadd.f32 %v2514, %v2554
    %v2556 = vpop.f32.mrb[0].mxu0
    %v2557 = vadd.f32 %v2516, %v2556
    %v2558 = vpop.f32.mrb[0].mxu0
    %v2559 = vpop.f32.mrb[0].mxu0
    %2560 = vdwg.mxu0
    %2561 = vmatprep.subr.bf16.mxu0 %v1852
    %2562 = vmatpush1.bf16.msra.mxu0 %v1851
    %2563 = vmatprep.subr.bf16.mxu0 %v1859
    %2564 = vmatpush1.bf16.msra.mxu0 %v1858
    %2565 = vmatprep.subr.bf16.mxu0 %v1866
    %2566 = vmatpush1.bf16.msra.mxu0 %v1865
    %2567 = vmatprep.subr.bf16.mxu0 %v1873
    %2568 = vmatpush1.bf16.msra.mxu0 %v1872
    %2569 = vmatprep.subr.bf16.mxu0 %v1880
    %2570 = vmatpush1.bf16.msra.mxu0 %v1879
    %2571 = vmatprep.subr.bf16.mxu0 %v1887
    %2572 = vmatpush1.bf16.msra.mxu0 %v1886
    %2573 = vmatprep.subr.bf16.mxu0 %v1894
    %2574 = vmatpush1.bf16.msra.mxu0 %v1893
    %2575 = vmatprep.subr.bf16.mxu0 %v1901
    %2576 = vmatpush1.bf16.msra.mxu0 %v1900
    %2577 = vmatprep.subr.bf16.mxu0 %v1908
    %2578 = vmatpush1.bf16.msra.mxu0 %v1907
    %2579 = vmatprep.subr.bf16.mxu0 %v1915
    %2580 = vmatpush1.bf16.msra.mxu0 %v1914
    %2581 = vmatprep.subr.bf16.mxu0 %v1922
    %2582 = vmatpush1.bf16.msra.mxu0 %v1921
    %2583 = vmatprep.subr.bf16.mxu0 %v1929
    %2584 = vmatpush1.bf16.msra.mxu0 %v1928
    %2585 = vmatprep.subr.bf16.mxu0 %v1936
    %2586 = vmatpush1.bf16.msra.mxu0 %v1935
    %2587 = vmatprep.subr.bf16.mxu0 %v1943
    %2588 = vmatpush1.bf16.msra.mxu0 %v1942
    %2589 = vmatprep.subr.bf16.mxu0 %v1950
    %2590 = vmatpush1.bf16.msra.mxu0 %v1949
    %2591 = vmatprep.subr.bf16.mxu0 %v1957
    %2592 = vmatpush1.bf16.msra.mxu0 %v1956
    %2593 = vmatprep.mubr.bf16.mxu0 %v116
    %2594 = vmatmul.mubr.bf16.gmra.mrb[0].mxu0 %v115
    %v2595 = vpop.f32.mrb[0].mxu0
    %v2596 = vadd.f32 %v2555, %v2595
    %v2597 = vpop.f32.mrb[0].mxu0
    %v2598 = vadd.f32 %v2557, %v2597
    %v2599 = vpop.f32.mrb[0].mxu0
    %v2600 = vpop.f32.mrb[0].mxu0
    %2601 = vdwg.mxu0
    %2602 = vmatprep.subr.bf16.mxu0 %v1964
    %2603 = vmatpush1.bf16.msra.mxu0 %v1963
    %2604 = vmatprep.subr.bf16.mxu0 0
    %2605 = vmatpush1.bf16.msra.mxu0 0
    %2606 = vmatprep.subr.bf16.mxu0 0
    %2607 = vmatpush1.bf16.msra.mxu0 0
    %2608 = vmatprep.subr.bf16.mxu0 0
    %2609 = vmatpush1.bf16.msra.mxu0 0
    %2610 = vmatprep.subr.bf16.mxu0 0
    %2611 = vmatpush1.bf16.msra.mxu0 0
    %2612 = vmatprep.subr.bf16.mxu0 0
    %2613 = vmatpush1.bf16.msra.mxu0 0
    %2614 = vmatprep.subr.bf16.mxu0 0
    %2615 = vmatpush1.bf16.msra.mxu0 0
    %2616 = vmatprep.subr.bf16.mxu0 0
    %2617 = vmatpush1.bf16.msra.mxu0 0
    %2618 = vmatprep.subr.bf16.mxu0 0
    %2619 = vmatpush1.bf16.msra.mxu0 0
    %2620 = vmatprep.subr.bf16.mxu0 0
    %2621 = vmatpush1.bf16.msra.mxu0 0
    %2622 = vmatprep.subr.bf16.mxu0 0
    %2623 = vmatpush1.bf16.msra.mxu0 0
    %2624 = vmatprep.subr.bf16.mxu0 0
    %2625 = vmatpush1.bf16.msra.mxu0 0
    %2626 = vmatprep.subr.bf16.mxu0 0
    %2627 = vmatpush1.bf16.msra.mxu0 0
    %2628 = vmatprep.subr.bf16.mxu0 0
    %2629 = vmatpush1.bf16.msra.mxu0 0
    %2630 = vmatprep.subr.bf16.mxu0 0
    %2631 = vmatpush1.bf16.msra.mxu0 0
    %2632 = vmatprep.subr.bf16.mxu0 0
    %2633 = vmatpush1.bf16.msra.mxu0 0
    %2634 = vmatprep.mubr.bf16.mxu0 0
    %2635 = vmatmul.mubr.bf16.gmra.mrb[0].mxu0 %v2313
    %v2636 = vpop.f32.mrb[0].mxu0
    %v2637 = vadd.f32 %v2596, %v2636
    %v2638 = vpop.f32.mrb[0].mxu0
    %v2639 = vadd.f32 %v2598, %v2638
    %v2640 = vpop.f32.mrb[0].mxu0
    %v2641 = vpop.f32.mrb[0].mxu0
    %2642 = vdwg.mxu0
    %2643 = vmatprep.subr.bf16.mxu0 %v1630
    %2644 = vmatpush1.bf16.msra.mxu0 %v1629
    %2645 = vmatprep.subr.bf16.mxu0 %v1637
    %2646 = vmatpush1.bf16.msra.mxu0 %v1636
    %2647 = vmatprep.subr.bf16.mxu0 %v1644
    %2648 = vmatpush1.bf16.msra.mxu0 %v1643
    %2649 = vmatprep.subr.bf16.mxu0 %v1651
    %2650 = vmatpush1.bf16.msra.mxu0 %v1650
    %2651 = vmatprep.subr.bf16.mxu0 %v1658
    %2652 = vmatpush1.bf16.msra.mxu0 %v1657
    %2653 = vmatprep.subr.bf16.mxu0 %v1665
    %2654 = vmatpush1.bf16.msra.mxu0 %v1664
    %2655 = vmatprep.subr.bf16.mxu0 %v1672
    %2656 = vmatpush1.bf16.msra.mxu0 %v1671
    %2657 = vmatprep.subr.bf16.mxu0 %v1679
    %2658 = vmatpush1.bf16.msra.mxu0 %v1678
    %2659 = vmatprep.subr.bf16.mxu0 %v1686
    %2660 = vmatpush1.bf16.msra.mxu0 %v1685
    %2661 = vmatprep.subr.bf16.mxu0 %v1693
    %2662 = vmatpush1.bf16.msra.mxu0 %v1692
    %2663 = vmatprep.subr.bf16.mxu0 %v1700
    %2664 = vmatpush1.bf16.msra.mxu0 %v1699
    %2665 = vmatprep.subr.bf16.mxu0 %v1707
    %2666 = vmatpush1.bf16.msra.mxu0 %v1706
    %2667 = vmatprep.subr.bf16.mxu0 %v1714
    %2668 = vmatpush1.bf16.msra.mxu0 %v1713
    %2669 = vmatprep.subr.bf16.mxu0 %v1721
    %2670 = vmatpush1.bf16.msra.mxu0 %v1720
    %2671 = vmatprep.subr.bf16.mxu0 %v1728
    %2672 = vmatpush1.bf16.msra.mxu0 %v1727
    %2673 = vmatprep.subr.bf16.mxu0 %v1735
    %2674 = vmatpush1.bf16.msra.mxu0 %v1734
    %2675 = vmatprep.mubr.bf16.mxu0 %v112
    %2676 = vmatmul.mubr.bf16.gmra.mrb[0].mxu0 %v111
    %v2677 = vpop.f32.mrb[0].mxu0
    %v2678 = vadd.f32 %v531, %v2677
    %v2679 = vpop.f32.mrb[0].mxu0
    %v2680 = vadd.f32 %v535, %v2679
    %v2681 = vpop.f32.mrb[0].mxu0
    %v2682 = vpop.f32.mrb[0].mxu0
    %2683 = vdwg.mxu0
    %2684 = vmatprep.subr.bf16.mxu0 %v1742
    %2685 = vmatpush1.bf16.msra.mxu0 %v1741
    %2686 = vmatprep.subr.bf16.mxu0 %v1749
    %2687 = vmatpush1.bf16.msra.mxu0 %v1748
    %2688 = vmatprep.subr.bf16.mxu0 %v1756
    %2689 = vmatpush1.bf16.msra.mxu0 %v1755
    %2690 = vmatprep.subr.bf16.mxu0 %v1763
    %2691 = vmatpush1.bf16.msra.mxu0 %v1762
    %2692 = vmatprep.subr.bf16.mxu0 %v1770
    %2693 = vmatpush1.bf16.msra.mxu0 %v1769
    %2694 = vmatprep.subr.bf16.mxu0 %v1777
    %2695 = vmatpush1.bf16.msra.mxu0 %v1776
    %2696 = vmatprep.subr.bf16.mxu0 %v1784
    %2697 = vmatpush1.bf16.msra.mxu0 %v1783
    %2698 = vmatprep.subr.bf16.mxu0 %v1791
    %2699 = vmatpush1.bf16.msra.mxu0 %v1790
    %2700 = vmatprep.subr.bf16.mxu0 %v1798
    %2701 = vmatpush1.bf16.msra.mxu0 %v1797
    %2702 = vmatprep.subr.bf16.mxu0 %v1805
    %2703 = vmatpush1.bf16.msra.mxu0 %v1804
    %2704 = vmatprep.subr.bf16.mxu0 %v1812
    %2705 = vmatpush1.bf16.msra.mxu0 %v1811
    %2706 = vmatprep.subr.bf16.mxu0 %v1819
    %2707 = vmatpush1.bf16.msra.mxu0 %v1818
    %2708 = vmatprep.subr.bf16.mxu0 %v1826
    %2709 = vmatpush1.bf16.msra.mxu0 %v1825
    %2710 = vmatprep.subr.bf16.mxu0 %v1833
    %2711 = vmatpush1.bf16.msra.mxu0 %v1832
    %2712 = vmatprep.subr.bf16.mxu0 %v1840
    %2713 = vmatpush1.bf16.msra.mxu0 %v1839
    %2714 = vmatprep.subr.bf16.mxu0 %v1847
    %2715 = vmatpush1.bf16.msra.mxu0 %v1846
    %2716 = vmatprep.mubr.bf16.mxu0 %v114
    %2717 = vmatmul.mubr.bf16.gmra.mrb[0].mxu0 %v113
    %v2718 = vpop.f32.mrb[0].mxu0
    %v2719 = vadd.f32 %v2678, %v2718
    %v2720 = vpop.f32.mrb[0].mxu0
    %v2721 = vadd.f32 %v2680, %v2720
    %v2722 = vpop.f32.mrb[0].mxu0
    %v2723 = vpop.f32.mrb[0].mxu0
    %2724 = vdwg.mxu0
    %2725 = vmatprep.subr.bf16.mxu0 %v1854
    %2726 = vmatpush1.bf16.msra.mxu0 %v1853
    %2727 = vmatprep.subr.bf16.mxu0 %v1861
    %2728 = vmatpush1.bf16.msra.mxu0 %v1860
    %2729 = vmatprep.subr.bf16.mxu0 %v1868
    %2730 = vmatpush1.bf16.msra.mxu0 %v1867
    %2731 = vmatprep.subr.bf16.mxu0 %v1875
    %2732 = vmatpush1.bf16.msra.mxu0 %v1874
    %2733 = vmatprep.subr.bf16.mxu0 %v1882
    %2734 = vmatpush1.bf16.msra.mxu0 %v1881
    %2735 = vmatprep.subr.bf16.mxu0 %v1889
    %2736 = vmatpush1.bf16.msra.mxu0 %v1888
    %2737 = vmatprep.subr.bf16.mxu0 %v1896
    %2738 = vmatpush1.bf16.msra.mxu0 %v1895
    %2739 = vmatprep.subr.bf16.mxu0 %v1903
    %2740 = vmatpush1.bf16.msra.mxu0 %v1902
    %2741 = vmatprep.subr.bf16.mxu0 %v1910
    %2742 = vmatpush1.bf16.msra.mxu0 %v1909
    %2743 = vmatprep.subr.bf16.mxu0 %v1917
    %2744 = vmatpush1.bf16.msra.mxu0 %v1916
    %2745 = vmatprep.subr.bf16.mxu0 %v1924
    %2746 = vmatpush1.bf16.msra.mxu0 %v1923
    %2747 = vmatprep.subr.bf16.mxu0 %v1931
    %2748 = vmatpush1.bf16.msra.mxu0 %v1930
    %2749 = vmatprep.subr.bf16.mxu0 %v1938
    %2750 = vmatpush1.bf16.msra.mxu0 %v1937
    %2751 = vmatprep.subr.bf16.mxu0 %v1945
    %2752 = vmatpush1.bf16.msra.mxu0 %v1944
    %2753 = vmatprep.subr.bf16.mxu0 %v1952
    %2754 = vmatpush1.bf16.msra.mxu0 %v1951
    %2755 = vmatprep.subr.bf16.mxu0 %v1959
    %2756 = vmatpush1.bf16.msra.mxu0 %v1958
    %2757 = vmatprep.mubr.bf16.mxu0 %v116
    %2758 = vmatmul.mubr.bf16.gmra.mrb[0].mxu0 %v115
    %v2759 = vpop.f32.mrb[0].mxu0
    %v2760 = vadd.f32 %v2719, %v2759
    %v2761 = vpop.f32.mrb[0].mxu0
    %v2762 = vadd.f32 %v2721, %v2761
    %v2763 = vpop.f32.mrb[0].mxu0
    %v2764 = vpop.f32.mrb[0].mxu0
    %2765 = vdwg.mxu0
    %2766 = vmatprep.subr.bf16.mxu0 %v1966
    %2767 = vmatpush1.bf16.msra.mxu0 %v1965
    %2768 = vmatprep.subr.bf16.mxu0 0
    %2769 = vmatpush1.bf16.msra.mxu0 0
    %2770 = vmatprep.subr.bf16.mxu0 0
    %2771 = vmatpush1.bf16.msra.mxu0 0
    %2772 = vmatprep.subr.bf16.mxu0 0
    %2773 = vmatpush1.bf16.msra.mxu0 0
    %2774 = vmatprep.subr.bf16.mxu0 0
    %2775 = vmatpush1.bf16.msra.mxu0 0
    %2776 = vmatprep.subr.bf16.mxu0 0
    %2777 = vmatpush1.bf16.msra.mxu0 0
    %2778 = vmatprep.subr.bf16.mxu0 0
    %2779 = vmatpush1.bf16.msra.mxu0 0
    %2780 = vmatprep.subr.bf16.mxu0 0
    %2781 = vmatpush1.bf16.msra.mxu0 0
    %2782 = vmatprep.subr.bf16.mxu0 0
    %2783 = vmatpush1.bf16.msra.mxu0 0
    %2784 = vmatprep.subr.bf16.mxu0 0
    %2785 = vmatpush1.bf16.msra.mxu0 0
    %2786 = vmatprep.subr.bf16.mxu0 0
    %2787 = vmatpush1.bf16.msra.mxu0 0
    %2788 = vmatprep.subr.bf16.mxu0 0
    %2789 = vmatpush1.bf16.msra.mxu0 0
    %2790 = vmatprep.subr.bf16.mxu0 0
    %2791 = vmatpush1.bf16.msra.mxu0 0
    %2792 = vmatprep.subr.bf16.mxu0 0
    %2793 = vmatpush1.bf16.msra.mxu0 0
    %2794 = vmatprep.subr.bf16.mxu0 0
    %2795 = vmatpush1.bf16.msra.mxu0 0
    %2796 = vmatprep.subr.bf16.mxu0 0
    %2797 = vmatpush1.bf16.msra.mxu0 0
    %2798 = vmatprep.mubr.bf16.mxu0 0
    %2799 = vmatmul.mubr.bf16.gmra.mrb[0].mxu0 %v2313
    %v2800 = vpop.f32.mrb[0].mxu0
    %v2801 = vadd.f32 %v2760, %v2800
    %v2802 = vpop.f32.mrb[0].mxu0
    %v2803 = vadd.f32 %v2762, %v2802
    %v2804 = vpop.f32.mrb[0].mxu0
    %v2805 = vpop.f32.mrb[0].mxu0
    %2806 = vdwg.mxu0
    %2807 = vmatprep.subr.bf16.mxu0 0
    %2808 = vmatpush1.bf16.msra.mxu0 %v1631
    %2809 = vmatprep.subr.bf16.mxu0 0
    %2810 = vmatpush1.bf16.msra.mxu0 %v1638
    %2811 = vmatprep.subr.bf16.mxu0 0
    %2812 = vmatpush1.bf16.msra.mxu0 %v1645
    %2813 = vmatprep.subr.bf16.mxu0 0
    %2814 = vmatpush1.bf16.msra.mxu0 %v1652
    %2815 = vmatprep.subr.bf16.mxu0 0
    %2816 = vmatpush1.bf16.msra.mxu0 %v1659
    %2817 = vmatprep.subr.bf16.mxu0 0
    %2818 = vmatpush1.bf16.msra.mxu0 %v1666
    %2819 = vmatprep.subr.bf16.mxu0 0
    %2820 = vmatpush1.bf16.msra.mxu0 %v1673
    %2821 = vmatprep.subr.bf16.mxu0 0
    %2822 = vmatpush1.bf16.msra.mxu0 %v1680
    %2823 = vmatprep.subr.bf16.mxu0 0
    %2824 = vmatpush1.bf16.msra.mxu0 %v1687
    %2825 = vmatprep.subr.bf16.mxu0 0
    %2826 = vmatpush1.bf16.msra.mxu0 %v1694
    %2827 = vmatprep.subr.bf16.mxu0 0
    %2828 = vmatpush1.bf16.msra.mxu0 %v1701
    %2829 = vmatprep.subr.bf16.mxu0 0
    %2830 = vmatpush1.bf16.msra.mxu0 %v1708
    %2831 = vmatprep.subr.bf16.mxu0 0
    %2832 = vmatpush1.bf16.msra.mxu0 %v1715
    %2833 = vmatprep.subr.bf16.mxu0 0
    %2834 = vmatpush1.bf16.msra.mxu0 %v1722
    %2835 = vmatprep.subr.bf16.mxu0 0
    %2836 = vmatpush1.bf16.msra.mxu0 %v1729
    %2837 = vmatprep.subr.bf16.mxu0 0
    %2838 = vmatpush1.bf16.msra.mxu0 %v1736
    %2839 = vmatprep.mubr.bf16.mxu0 %v112
    %2840 = vmatmul.mubr.bf16.gmra.mrb[0].mxu0 %v111
    %v2841 = vpop.f32.mrb[0].mxu0
    %v2842 = vadd.f32 %v539, %v2841
    %v2843 = vpop.f32.mrb[0].mxu0
    %v2844 = vpop.f32.mrb[0].mxu0
    %v2845 = vpop.f32.mrb[0].mxu0
    %2846 = vdwg.mxu0
    %2847 = vmatprep.subr.bf16.mxu0 0
    %2848 = vmatpush1.bf16.msra.mxu0 %v1743
    %2849 = vmatprep.subr.bf16.mxu0 0
    %2850 = vmatpush1.bf16.msra.mxu0 %v1750
    %2851 = vmatprep.subr.bf16.mxu0 0
    %2852 = vmatpush1.bf16.msra.mxu0 %v1757
    %2853 = vmatprep.subr.bf16.mxu0 0
    %2854 = vmatpush1.bf16.msra.mxu0 %v1764
    %2855 = vmatprep.subr.bf16.mxu0 0
    %2856 = vmatpush1.bf16.msra.mxu0 %v1771
    %2857 = vmatprep.subr.bf16.mxu0 0
    %2858 = vmatpush1.bf16.msra.mxu0 %v1778
    %2859 = vmatprep.subr.bf16.mxu0 0
    %2860 = vmatpush1.bf16.msra.mxu0 %v1785
    %2861 = vmatprep.subr.bf16.mxu0 0
    %2862 = vmatpush1.bf16.msra.mxu0 %v1792
    %2863 = vmatprep.subr.bf16.mxu0 0
    %2864 = vmatpush1.bf16.msra.mxu0 %v1799
    %2865 = vmatprep.subr.bf16.mxu0 0
    %2866 = vmatpush1.bf16.msra.mxu0 %v1806
    %2867 = vmatprep.subr.bf16.mxu0 0
    %2868 = vmatpush1.bf16.msra.mxu0 %v1813
    %2869 = vmatprep.subr.bf16.mxu0 0
    %2870 = vmatpush1.bf16.msra.mxu0 %v1820
    %2871 = vmatprep.subr.bf16.mxu0 0
    %2872 = vmatpush1.bf16.msra.mxu0 %v1827
    %2873 = vmatprep.subr.bf16.mxu0 0
    %2874 = vmatpush1.bf16.msra.mxu0 %v1834
    %2875 = vmatprep.subr.bf16.mxu0 0
    %2876 = vmatpush1.bf16.msra.mxu0 %v1841
    %2877 = vmatprep.subr.bf16.mxu0 0
    %2878 = vmatpush1.bf16.msra.mxu0 %v1848
    %2879 = vmatprep.mubr.bf16.mxu0 %v114
    %2880 = vmatmul.mubr.bf16.gmra.mrb[0].mxu0 %v113
    %v2881 = vpop.f32.mrb[0].mxu0
    %v2882 = vadd.f32 %v2842, %v2881
    %v2883 = vpop.f32.mrb[0].mxu0
    %v2884 = vpop.f32.mrb[0].mxu0
    %v2885 = vpop.f32.mrb[0].mxu0
    %2886 = vdwg.mxu0
    %2887 = vmatprep.subr.bf16.mxu0 0
    %2888 = vmatpush1.bf16.msra.mxu0 %v1855
    %2889 = vmatprep.subr.bf16.mxu0 0
    %2890 = vmatpush1.bf16.msra.mxu0 %v1862
    %2891 = vmatprep.subr.bf16.mxu0 0
    %2892 = vmatpush1.bf16.msra.mxu0 %v1869
    %2893 = vmatprep.subr.bf16.mxu0 0
    %2894 = vmatpush1.bf16.msra.mxu0 %v1876
    %2895 = vmatprep.subr.bf16.mxu0 0
    %2896 = vmatpush1.bf16.msra.mxu0 %v1883
    %2897 = vmatprep.subr.bf16.mxu0 0
    %2898 = vmatpush1.bf16.msra.mxu0 %v1890
    %2899 = vmatprep.subr.bf16.mxu0 0
    %2900 = vmatpush1.bf16.msra.mxu0 %v1897
    %2901 = vmatprep.subr.bf16.mxu0 0
    %2902 = vmatpush1.bf16.msra.mxu0 %v1904
    %2903 = vmatprep.subr.bf16.mxu0 0
    %2904 = vmatpush1.bf16.msra.mxu0 %v1911
    %2905 = vmatprep.subr.bf16.mxu0 0
    %2906 = vmatpush1.bf16.msra.mxu0 %v1918
    %2907 = vmatprep.subr.bf16.mxu0 0
    %2908 = vmatpush1.bf16.msra.mxu0 %v1925
    %2909 = vmatprep.subr.bf16.mxu0 0
    %2910 = vmatpush1.bf16.msra.mxu0 %v1932
    %2911 = vmatprep.subr.bf16.mxu0 0
    %2912 = vmatpush1.bf16.msra.mxu0 %v1939
    %2913 = vmatprep.subr.bf16.mxu0 0
    %2914 = vmatpush1.bf16.msra.mxu0 %v1946
    %2915 = vmatprep.subr.bf16.mxu0 0
    %2916 = vmatpush1.bf16.msra.mxu0 %v1953
    %2917 = vmatprep.subr.bf16.mxu0 0
    %2918 = vmatpush1.bf16.msra.mxu0 %v1960
    %2919 = vmatprep.mubr.bf16.mxu0 %v116
    %2920 = vmatmul.mubr.bf16.gmra.mrb[0].mxu0 %v115
    %v2921 = vpop.f32.mrb[0].mxu0
    %v2922 = vadd.f32 %v2882, %v2921
    %v2923 = vpop.f32.mrb[0].mxu0
    %v2924 = vpop.f32.mrb[0].mxu0
    %v2925 = vpop.f32.mrb[0].mxu0
    %2926 = vdwg.mxu0
    %2927 = vmatprep.subr.bf16.mxu0 0
    %2928 = vmatpush1.bf16.msra.mxu0 %v1967
    %2929 = vmatprep.subr.bf16.mxu0 0
    %2930 = vmatpush1.bf16.msra.mxu0 0
    %2931 = vmatprep.subr.bf16.mxu0 0
    %2932 = vmatpush1.bf16.msra.mxu0 0
    %2933 = vmatprep.subr.bf16.mxu0 0
    %2934 = vmatpush1.bf16.msra.mxu0 0
    %2935 = vmatprep.subr.bf16.mxu0 0
    %2936 = vmatpush1.bf16.msra.mxu0 0
    %2937 = vmatprep.subr.bf16.mxu0 0
    %2938 = vmatpush1.bf16.msra.mxu0 0
    %2939 = vmatprep.subr.bf16.mxu0 0
    %2940 = vmatpush1.bf16.msra.mxu0 0
    %2941 = vmatprep.subr.bf16.mxu0 0
    %2942 = vmatpush1.bf16.msra.mxu0 0
    %2943 = vmatprep.subr.bf16.mxu0 0
    %2944 = vmatpush1.bf16.msra.mxu0 0
    %2945 = vmatprep.subr.bf16.mxu0 0
    %2946 = vmatpush1.bf16.msra.mxu0 0
    %2947 = vmatprep.subr.bf16.mxu0 0
    %2948 = vmatpush1.bf16.msra.mxu0 0
    %2949 = vmatprep.subr.bf16.mxu0 0
    %2950 = vmatpush1.bf16.msra.mxu0 0
    %2951 = vmatprep.subr.bf16.mxu0 0
    %2952 = vmatpush1.bf16.msra.mxu0 0
    %2953 = vmatprep.subr.bf16.mxu0 0
    %2954 = vmatpush1.bf16.msra.mxu0 0
    %2955 = vmatprep.subr.bf16.mxu0 0
    %2956 = vmatpush1.bf16.msra.mxu0 0
    %2957 = vmatprep.subr.bf16.mxu0 0
    %2958 = vmatpush1.bf16.msra.mxu0 0
    %2959 = vmatprep.mubr.bf16.mxu0 0
    %2960 = vmatmul.mubr.bf16.gmra.mrb[0].mxu0 %v2313
    %v2961 = vpop.f32.mrb[0].mxu0
    %v2962 = vadd.f32 %v2922, %v2961
    %v2963 = vpop.f32.mrb[0].mxu0
    %v2964 = vpop.f32.mrb[0].mxu0
    %v2965 = vpop.f32.mrb[0].mxu0
    %2966 = vdwg.mxu0
    %v2967 = vpack.c.bf16 %v2473, %v2473
    %v2968 = vpack.c.bf16 %v2475, %v2475
    %v2969 = vpack.c.bf16 %v2637, %v2637
    %v2970 = vpack.c.bf16 %v2639, %v2639
    %v2971 = vpack.c.bf16 %v2801, %v2801
    %v2972 = vpack.c.bf16 %v2803, %v2803
    %v2973 = vpack.c.bf16 %v2962, %v2962
    %v2974 = vtanh.bf16.pop %v2967
    %v2975 = vtanh.bf16.pop %v2968
    %v2976 = vtanh.bf16.pop %v2969
    %v2977 = vtanh.bf16.pop %v2970
    %v2978 = vtanh.bf16.pop %v2971
    %v2979 = vtanh.bf16.pop %v2972
    %v2980 = vtanh.bf16.pop %v2973
    %v2981 = vld [vmem:[#allocation7] sm:$0xff]
    %v2982 = vld [vmem:[#allocation7 + $0x8] sm:$0xff]
    %v2983 = vld [vmem:[#allocation7 + $0x10] sm:$0xff]
    %v2984 = vld [vmem:[#allocation7 + $0x18] sm:$0xf]
    %v2985 = vld [vmem:[#allocation7 + $0x1c] sm:$0xff]
    %v2986 = vld [vmem:[#allocation7 + $0x24] sm:$0xff]
    %v2987 = vld [vmem:[#allocation7 + $0x2c] sm:$0xff]
    %v2988 = vld [vmem:[#allocation7 + $0x34] sm:$0xf]
    %v2989 = vld [vmem:[#allocation7 + $0x38] sm:$0xff]
    %v2990 = vld [vmem:[#allocation7 + $0x40] sm:$0xff]
    %v2991 = vld [vmem:[#allocation7 + $0x48] sm:$0xff]
    %v2992 = vld [vmem:[#allocation7 + $0x50] sm:$0xf]
    %v2993 = vld [vmem:[#allocation7 + $0x54] sm:$0xff]
    %v2994 = vld [vmem:[#allocation7 + $0x5c] sm:$0xff]
    %v2995 = vld [vmem:[#allocation7 + $0x64] sm:$0xff]
    %v2996 = vld [vmem:[#allocation7 + $0x6c] sm:$0xf]
    %v2997 = vld [vmem:[#allocation7 + $0x70] sm:$0xff]
    %v2998 = vld [vmem:[#allocation7 + $0x78] sm:$0xff]
    %v2999 = vld [vmem:[#allocation7 + $0x80] sm:$0xff]
    %v3000 = vld [vmem:[#allocation7 + $0x88] sm:$0xf]
    %v3001 = vld [vmem:[#allocation7 + $0x8c] sm:$0xff]
    %v3002 = vld [vmem:[#allocation7 + $0x94] sm:$0xff]
    %v3003 = vld [vmem:[#allocation7 + $0x9c] sm:$0xff]
    %v3004 = vld [vmem:[#allocation7 + $0xa4] sm:$0xf]
    %v3005 = vld [vmem:[#allocation7 + $0xa8] sm:$0xff]
    %v3006 = vld [vmem:[#allocation7 + $0xb0] sm:$0xff]
    %v3007 = vld [vmem:[#allocation7 + $0xb8] sm:$0xff]
    %v3008 = vld [vmem:[#allocation7 + $0xc0] sm:$0xf]
    %v3009 = vld [vmem:[#allocation7 + $0xc4] sm:$0xff]
    %v3010 = vld [vmem:[#allocation7 + $0xcc] sm:$0xff]
    %v3011 = vld [vmem:[#allocation7 + $0xd4] sm:$0xff]
    %v3012 = vld [vmem:[#allocation7 + $0xdc] sm:$0xf]
    %v3013 = vld [vmem:[#allocation7 + $0xe0] sm:$0xff]
    %v3014 = vld [vmem:[#allocation7 + $0xe8] sm:$0xff]
    %v3015 = vld [vmem:[#allocation7 + $0xf0] sm:$0xff]
    %v3016 = vld [vmem:[#allocation7 + $0xf8] sm:$0xf]
    %v3017 = vld [vmem:[#allocation7 + $0xfc] sm:$0xff]
    %v3018 = vld [vmem:[#allocation7 + $0x104] sm:$0xff]
    %v3019 = vld [vmem:[#allocation7 + $0x10c] sm:$0xff]
    %v3020 = vld [vmem:[#allocation7 + $0x114] sm:$0xf]
    %v3021 = vld [vmem:[#allocation7 + $0x118] sm:$0xff]
    %v3022 = vld [vmem:[#allocation7 + $0x120] sm:$0xff]
    %v3023 = vld [vmem:[#allocation7 + $0x128] sm:$0xff]
    %v3024 = vld [vmem:[#allocation7 + $0x130] sm:$0xf]
    %v3025 = vld [vmem:[#allocation7 + $0x134] sm:$0xff]
    %v3026 = vld [vmem:[#allocation7 + $0x13c] sm:$0xff]
    %v3027 = vld [vmem:[#allocation7 + $0x144] sm:$0xff]
    %v3028 = vld [vmem:[#allocation7 + $0x14c] sm:$0xf]
    %v3029 = vld [vmem:[#allocation7 + $0x150] sm:$0xff]
    %v3030 = vld [vmem:[#allocation7 + $0x158] sm:$0xff]
    %v3031 = vld [vmem:[#allocation7 + $0x160] sm:$0xff]
    %v3032 = vld [vmem:[#allocation7 + $0x168] sm:$0xf]
    %v3033 = vld [vmem:[#allocation7 + $0x16c] sm:$0xff]
    %v3034 = vld [vmem:[#allocation7 + $0x174] sm:$0xff]
    %v3035 = vld [vmem:[#allocation7 + $0x17c] sm:$0xff]
    %v3036 = vld [vmem:[#allocation7 + $0x184] sm:$0xf]
    %v3037 = vld [vmem:[#allocation7 + $0x188] sm:$0xff]
    %v3038 = vld [vmem:[#allocation7 + $0x190] sm:$0xff]
    %v3039 = vld [vmem:[#allocation7 + $0x198] sm:$0xff]
    %v3040 = vld [vmem:[#allocation7 + $0x1a0] sm:$0xf]
    %v3041 = vld [vmem:[#allocation7 + $0x1a4] sm:$0xff]
    %v3042 = vld [vmem:[#allocation7 + $0x1ac] sm:$0xff]
    %v3043 = vld [vmem:[#allocation7 + $0x1b4] sm:$0xff]
    %v3044 = vld [vmem:[#allocation7 + $0x1bc] sm:$0xf]
    %v3045 = vld [vmem:[#allocation7 + $0x1c0] sm:$0xff]
    %v3046 = vld [vmem:[#allocation7 + $0x1c8] sm:$0xff]
    %v3047 = vld [vmem:[#allocation7 + $0x1d0] sm:$0xff]
    %v3048 = vld [vmem:[#allocation7 + $0x1d8] sm:$0xf]
    %v3049 = vld [vmem:[#allocation7 + $0x1dc] sm:$0xff]
    %v3050 = vld [vmem:[#allocation7 + $0x1e4] sm:$0xff]
    %v3051 = vld [vmem:[#allocation7 + $0x1ec] sm:$0xff]
    %v3052 = vld [vmem:[#allocation7 + $0x1f4] sm:$0xf]
    %v3053 = vld [vmem:[#allocation7 + $0x1f8] sm:$0xff]
    %v3054 = vld [vmem:[#allocation7 + $0x200] sm:$0xff]
    %v3055 = vld [vmem:[#allocation7 + $0x208] sm:$0xff]
    %v3056 = vld [vmem:[#allocation7 + $0x210] sm:$0xf]
    %v3057 = vld [vmem:[#allocation7 + $0x214] sm:$0xff]
    %v3058 = vld [vmem:[#allocation7 + $0x21c] sm:$0xff]
    %v3059 = vld [vmem:[#allocation7 + $0x224] sm:$0xff]
    %v3060 = vld [vmem:[#allocation7 + $0x22c] sm:$0xf]
    %v3061 = vld [vmem:[#allocation7 + $0x230] sm:$0xff]
    %v3062 = vld [vmem:[#allocation7 + $0x238] sm:$0xff]
    %v3063 = vld [vmem:[#allocation7 + $0x240] sm:$0xff]
    %v3064 = vld [vmem:[#allocation7 + $0x248] sm:$0xf]
    %v3065 = vld [vmem:[#allocation7 + $0x24c] sm:$0xff]
    %v3066 = vld [vmem:[#allocation7 + $0x254] sm:$0xff]
    %v3067 = vld [vmem:[#allocation7 + $0x25c] sm:$0xff]
    %v3068 = vld [vmem:[#allocation7 + $0x264] sm:$0xf]
    %v3069 = vld [vmem:[#allocation7 + $0x268] sm:$0xff]
    %v3070 = vld [vmem:[#allocation7 + $0x270] sm:$0xff]
    %v3071 = vld [vmem:[#allocation7 + $0x278] sm:$0xff]
    %v3072 = vld [vmem:[#allocation7 + $0x280] sm:$0xf]
    %v3073 = vld [vmem:[#allocation7 + $0x284] sm:$0xff]
    %v3074 = vld [vmem:[#allocation7 + $0x28c] sm:$0xff]
    %v3075 = vld [vmem:[#allocation7 + $0x294] sm:$0xff]
    %v3076 = vld [vmem:[#allocation7 + $0x29c] sm:$0xf]
    %v3077 = vld [vmem:[#allocation7 + $0x2a0] sm:$0xff]
    %v3078 = vld [vmem:[#allocation7 + $0x2a8] sm:$0xff]
    %v3079 = vld [vmem:[#allocation7 + $0x2b0] sm:$0xff]
    %v3080 = vld [vmem:[#allocation7 + $0x2b8] sm:$0xf]
    %v3081 = vld [vmem:[#allocation7 + $0x2bc] sm:$0xff]
    %v3082 = vld [vmem:[#allocation7 + $0x2c4] sm:$0xff]
    %v3083 = vld [vmem:[#allocation7 + $0x2cc] sm:$0xff]
    %v3084 = vld [vmem:[#allocation7 + $0x2d4] sm:$0xf]
    %v3085 = vld [vmem:[#allocation7 + $0x2d8] sm:$0xff]
    %v3086 = vld [vmem:[#allocation7 + $0x2e0] sm:$0xff]
    %v3087 = vld [vmem:[#allocation7 + $0x2e8] sm:$0xff]
    %v3088 = vld [vmem:[#allocation7 + $0x2f0] sm:$0xf]
    %v3089 = vld [vmem:[#allocation7 + $0x2f4] sm:$0xff]
    %v3090 = vld [vmem:[#allocation7 + $0x2fc] sm:$0xff]
    %v3091 = vld [vmem:[#allocation7 + $0x304] sm:$0xff]
    %v3092 = vld [vmem:[#allocation7 + $0x30c] sm:$0xf]
    %v3093 = vld [vmem:[#allocation7 + $0x310] sm:$0xff]
    %v3094 = vld [vmem:[#allocation7 + $0x318] sm:$0xff]
    %v3095 = vld [vmem:[#allocation7 + $0x320] sm:$0xff]
    %v3096 = vld [vmem:[#allocation7 + $0x328] sm:$0xf]
    %v3097 = vld [vmem:[#allocation7 + $0x32c] sm:$0xff]
    %v3098 = vld [vmem:[#allocation7 + $0x334] sm:$0xff]
    %v3099 = vld [vmem:[#allocation7 + $0x33c] sm:$0xff]
    %v3100 = vld [vmem:[#allocation7 + $0x344] sm:$0xf]
    %v3101 = vld [vmem:[#allocation7 + $0x348] sm:$0xff]
    %v3102 = vld [vmem:[#allocation7 + $0x350] sm:$0xff]
    %v3103 = vld [vmem:[#allocation7 + $0x358] sm:$0xff]
    %v3104 = vld [vmem:[#allocation7 + $0x360] sm:$0xf]
    %v3105 = vld [vmem:[#allocation7 + $0x364] sm:$0xff]
    %v3106 = vld [vmem:[#allocation7 + $0x36c] sm:$0xff]
    %v3107 = vld [vmem:[#allocation7 + $0x374] sm:$0xff]
    %v3108 = vld [vmem:[#allocation7 + $0x37c] sm:$0xf]
    %v3109 = vld [vmem:[#allocation7 + $0x380] sm:$0xff]
    %v3110 = vld [vmem:[#allocation7 + $0x388] sm:$0xff]
    %v3111 = vld [vmem:[#allocation7 + $0x390] sm:$0xff]
    %v3112 = vld [vmem:[#allocation7 + $0x398] sm:$0xf]
    %v3113 = vld [vmem:[#allocation7 + $0x39c] sm:$0xff]
    %v3114 = vld [vmem:[#allocation7 + $0x3a4] sm:$0xff]
    %v3115 = vld [vmem:[#allocation7 + $0x3ac] sm:$0xff]
    %v3116 = vld [vmem:[#allocation7 + $0x3b4] sm:$0xf]
    %v3117 = vld [vmem:[#allocation7 + $0x3b8] sm:$0xff]
    %v3118 = vld [vmem:[#allocation7 + $0x3c0] sm:$0xff]
    %v3119 = vld [vmem:[#allocation7 + $0x3c8] sm:$0xff]
    %v3120 = vld [vmem:[#allocation7 + $0x3d0] sm:$0xf]
    %v3121 = vld [vmem:[#allocation7 + $0x3d4] sm:$0xff]
    %v3122 = vld [vmem:[#allocation7 + $0x3dc] sm:$0xff]
    %v3123 = vld [vmem:[#allocation7 + $0x3e4] sm:$0xff]
    %v3124 = vld [vmem:[#allocation7 + $0x3ec] sm:$0xf]
    %v3125 = vld [vmem:[#allocation7 + $0x3f0] sm:$0xff]
    %v3126 = vld [vmem:[#allocation7 + $0x3f8] sm:$0xff]
    %v3127 = vld [vmem:[#allocation7 + $0x400] sm:$0xff]
    %v3128 = vld [vmem:[#allocation7 + $0x408] sm:$0xf]
    %v3129 = vld [vmem:[#allocation7 + $0x40c] sm:$0xff]
    %v3130 = vld [vmem:[#allocation7 + $0x414] sm:$0xff]
    %v3131 = vld [vmem:[#allocation7 + $0x41c] sm:$0xff]
    %v3132 = vld [vmem:[#allocation7 + $0x424] sm:$0xf]
    %v3133 = vld [vmem:[#allocation7 + $0x428] sm:$0xff]
    %v3134 = vld [vmem:[#allocation7 + $0x430] sm:$0xff]
    %v3135 = vld [vmem:[#allocation7 + $0x438] sm:$0xff]
    %v3136 = vld [vmem:[#allocation7 + $0x440] sm:$0xf]
    %v3137 = vld [vmem:[#allocation7 + $0x444] sm:$0xff]
    %v3138 = vld [vmem:[#allocation7 + $0x44c] sm:$0xff]
    %v3139 = vld [vmem:[#allocation7 + $0x454] sm:$0xff]
    %v3140 = vld [vmem:[#allocation7 + $0x45c] sm:$0xf]
    %v3141 = vld [vmem:[#allocation7 + $0x460] sm:$0xff]
    %v3142 = vld [vmem:[#allocation7 + $0x468] sm:$0xff]
    %v3143 = vld [vmem:[#allocation7 + $0x470] sm:$0xff]
    %v3144 = vld [vmem:[#allocation7 + $0x478] sm:$0xf]
    %v3145 = vld [vmem:[#allocation7 + $0x47c] sm:$0xff]
    %v3146 = vld [vmem:[#allocation7 + $0x484] sm:$0xff]
    %v3147 = vld [vmem:[#allocation7 + $0x48c] sm:$0xff]
    %v3148 = vld [vmem:[#allocation7 + $0x494] sm:$0xf]
    %v3149 = vld [vmem:[#allocation7 + $0x498] sm:$0xff]
    %v3150 = vld [vmem:[#allocation7 + $0x4a0] sm:$0xff]
    %v3151 = vld [vmem:[#allocation7 + $0x4a8] sm:$0xff]
    %v3152 = vld [vmem:[#allocation7 + $0x4b0] sm:$0xf]
    %v3153 = vld [vmem:[#allocation7 + $0x4b4] sm:$0xff]
    %v3154 = vld [vmem:[#allocation7 + $0x4bc] sm:$0xff]
    %v3155 = vld [vmem:[#allocation7 + $0x4c4] sm:$0xff]
    %v3156 = vld [vmem:[#allocation7 + $0x4cc] sm:$0xf]
    %v3157 = vld [vmem:[#allocation7 + $0x4d0] sm:$0xff]
    %v3158 = vld [vmem:[#allocation7 + $0x4d8] sm:$0xff]
    %v3159 = vld [vmem:[#allocation7 + $0x4e0] sm:$0xff]
    %v3160 = vld [vmem:[#allocation7 + $0x4e8] sm:$0xf]
    %v3161 = vld [vmem:[#allocation7 + $0x4ec] sm:$0xff]
    %v3162 = vld [vmem:[#allocation7 + $0x4f4] sm:$0xff]
    %v3163 = vld [vmem:[#allocation7 + $0x4fc] sm:$0xff]
    %v3164 = vld [vmem:[#allocation7 + $0x504] sm:$0xf]
    %v3165 = vld [vmem:[#allocation7 + $0x508] sm:$0xff]
    %v3166 = vld [vmem:[#allocation7 + $0x510] sm:$0xff]
    %v3167 = vld [vmem:[#allocation7 + $0x518] sm:$0xff]
    %v3168 = vld [vmem:[#allocation7 + $0x520] sm:$0xf]
    %v3169 = vld [vmem:[#allocation7 + $0x524] sm:$0xff]
    %v3170 = vld [vmem:[#allocation7 + $0x52c] sm:$0xff]
    %v3171 = vld [vmem:[#allocation7 + $0x534] sm:$0xff]
    %v3172 = vld [vmem:[#allocation7 + $0x53c] sm:$0xf]
    %v3173 = vld [vmem:[#allocation7 + $0x540] sm:$0xff]
    %v3174 = vld [vmem:[#allocation7 + $0x548] sm:$0xff]
    %v3175 = vld [vmem:[#allocation7 + $0x550] sm:$0xff]
    %v3176 = vld [vmem:[#allocation7 + $0x558] sm:$0xf]
    %v3177 = vld [vmem:[#allocation7 + $0x55c] sm:$0xff]
    %v3178 = vld [vmem:[#allocation7 + $0x564] sm:$0xff]
    %v3179 = vld [vmem:[#allocation7 + $0x56c] sm:$0xff]
    %v3180 = vld [vmem:[#allocation7 + $0x574] sm:$0xf]
    %v3181 = vld [vmem:[#allocation7 + $0x578] sm:$0xff]
    %v3182 = vld [vmem:[#allocation7 + $0x580] sm:$0xff]
    %v3183 = vld [vmem:[#allocation7 + $0x588] sm:$0xff]
    %v3184 = vld [vmem:[#allocation7 + $0x590] sm:$0xf]
    %v3185 = vld [vmem:[#allocation7 + $0x594] sm:$0xff]
    %v3186 = vld [vmem:[#allocation7 + $0x59c] sm:$0xff]
    %v3187 = vld [vmem:[#allocation7 + $0x5a4] sm:$0xff]
    %v3188 = vld [vmem:[#allocation7 + $0x5ac] sm:$0xf]
    %v3189 = vld [vmem:[#allocation7 + $0x5b0] sm:$0xff]
    %v3190 = vld [vmem:[#allocation7 + $0x5b8] sm:$0xff]
    %v3191 = vld [vmem:[#allocation7 + $0x5c0] sm:$0xff]
    %v3192 = vld [vmem:[#allocation7 + $0x5c8] sm:$0xf]
    %v3193 = vld [vmem:[#allocation7 + $0x5cc] sm:$0xff]
    %v3194 = vld [vmem:[#allocation7 + $0x5d4] sm:$0xff]
    %v3195 = vld [vmem:[#allocation7 + $0x5dc] sm:$0xff]
    %v3196 = vld [vmem:[#allocation7 + $0x5e4] sm:$0xf]
    %v3197 = vld [vmem:[#allocation7 + $0x5e8] sm:$0xff]
    %v3198 = vld [vmem:[#allocation7 + $0x5f0] sm:$0xff]
    %v3199 = vld [vmem:[#allocation7 + $0x5f8] sm:$0xff]
    %v3200 = vld [vmem:[#allocation7 + $0x600] sm:$0xf]
    %v3201 = vld [vmem:[#allocation7 + $0x604] sm:$0xff]
    %v3202 = vld [vmem:[#allocation7 + $0x60c] sm:$0xff]
    %v3203 = vld [vmem:[#allocation7 + $0x614] sm:$0xff]
    %v3204 = vld [vmem:[#allocation7 + $0x61c] sm:$0xf]
    %v3205 = vld [vmem:[#allocation7 + $0x620] sm:$0xff]
    %v3206 = vld [vmem:[#allocation7 + $0x628] sm:$0xff]
    %v3207 = vld [vmem:[#allocation7 + $0x630] sm:$0xff]
    %v3208 = vld [vmem:[#allocation7 + $0x638] sm:$0xf]
    %v3209 = vld [vmem:[#allocation7 + $0x63c] sm:$0xff]
    %v3210 = vld [vmem:[#allocation7 + $0x644] sm:$0xff]
    %v3211 = vld [vmem:[#allocation7 + $0x64c] sm:$0xff]
    %v3212 = vld [vmem:[#allocation7 + $0x654] sm:$0xf]
    %v3213 = vld [vmem:[#allocation7 + $0x658] sm:$0xff]
    %v3214 = vld [vmem:[#allocation7 + $0x660] sm:$0xff]
    %v3215 = vld [vmem:[#allocation7 + $0x668] sm:$0xff]
    %v3216 = vld [vmem:[#allocation7 + $0x670] sm:$0xf]
    %v3217 = vld [vmem:[#allocation7 + $0x674] sm:$0xff]
    %v3218 = vld [vmem:[#allocation7 + $0x67c] sm:$0xff]
    %v3219 = vld [vmem:[#allocation7 + $0x684] sm:$0xff]
    %v3220 = vld [vmem:[#allocation7 + $0x68c] sm:$0xf]
    %v3221 = vld [vmem:[#allocation7 + $0x690] sm:$0xff]
    %v3222 = vld [vmem:[#allocation7 + $0x698] sm:$0xff]
    %v3223 = vld [vmem:[#allocation7 + $0x6a0] sm:$0xff]
    %v3224 = vld [vmem:[#allocation7 + $0x6a8] sm:$0xf]
    %v3225 = vld [vmem:[#allocation7 + $0x6ac] sm:$0xff]
    %v3226 = vld [vmem:[#allocation7 + $0x6b4] sm:$0xff]
    %v3227 = vld [vmem:[#allocation7 + $0x6bc] sm:$0xff]
    %v3228 = vld [vmem:[#allocation7 + $0x6c4] sm:$0xf]
    %v3229 = vld [vmem:[#allocation7 + $0x6c8] sm:$0xff]
    %v3230 = vld [vmem:[#allocation7 + $0x6d0] sm:$0xff]
    %v3231 = vld [vmem:[#allocation7 + $0x6d8] sm:$0xff]
    %v3232 = vld [vmem:[#allocation7 + $0x6e0] sm:$0xf]
    %v3233 = vld [vmem:[#allocation7 + $0x6e4] sm:$0xff]
    %v3234 = vld [vmem:[#allocation7 + $0x6ec] sm:$0xff]
    %v3235 = vld [vmem:[#allocation7 + $0x6f4] sm:$0xff]
    %v3236 = vld [vmem:[#allocation7 + $0x6fc] sm:$0xf]
    %v3237 = vld [vmem:[#allocation7 + $0x700] sm:$0xff]
    %v3238 = vld [vmem:[#allocation7 + $0x708] sm:$0xff]
    %v3239 = vld [vmem:[#allocation7 + $0x710] sm:$0xff]
    %v3240 = vld [vmem:[#allocation7 + $0x718] sm:$0xf]
    %v3241 = vld [vmem:[#allocation7 + $0x71c] sm:$0xff]
    %v3242 = vld [vmem:[#allocation7 + $0x724] sm:$0xff]
    %v3243 = vld [vmem:[#allocation7 + $0x72c] sm:$0xff]
    %v3244 = vld [vmem:[#allocation7 + $0x734] sm:$0xf]
    %v3245 = vld [vmem:[#allocation7 + $0x738] sm:$0xff]
    %v3246 = vld [vmem:[#allocation7 + $0x740] sm:$0xff]
    %v3247 = vld [vmem:[#allocation7 + $0x748] sm:$0xff]
    %v3248 = vld [vmem:[#allocation7 + $0x750] sm:$0xf]
    %v3249 = vld [vmem:[#allocation7 + $0x754] sm:$0xff]
    %v3250 = vld [vmem:[#allocation7 + $0x75c] sm:$0xff]
    %v3251 = vld [vmem:[#allocation7 + $0x764] sm:$0xff]
    %v3252 = vld [vmem:[#allocation7 + $0x76c] sm:$0xf]
    %v3253 = vld [vmem:[#allocation7 + $0x770] sm:$0xff]
    %v3254 = vld [vmem:[#allocation7 + $0x778] sm:$0xff]
    %v3255 = vld [vmem:[#allocation7 + $0x780] sm:$0xff]
    %v3256 = vld [vmem:[#allocation7 + $0x788] sm:$0xf]
    %v3257 = vld [vmem:[#allocation7 + $0x78c] sm:$0xff]
    %v3258 = vld [vmem:[#allocation7 + $0x794] sm:$0xff]
    %v3259 = vld [vmem:[#allocation7 + $0x79c] sm:$0xff]
    %v3260 = vld [vmem:[#allocation7 + $0x7a4] sm:$0xf]
    %v3261 = vld [vmem:[#allocation7 + $0x7a8] sm:$0xff]
    %v3262 = vld [vmem:[#allocation7 + $0x7b0] sm:$0xff]
    %v3263 = vld [vmem:[#allocation7 + $0x7b8] sm:$0xff]
    %v3264 = vld [vmem:[#allocation7 + $0x7c0] sm:$0xf]
    %v3265 = vld [vmem:[#allocation7 + $0x7c4] sm:$0xff]
    %v3266 = vld [vmem:[#allocation7 + $0x7cc] sm:$0xff]
    %v3267 = vld [vmem:[#allocation7 + $0x7d4] sm:$0xff]
    %v3268 = vld [vmem:[#allocation7 + $0x7dc] sm:$0xf]
    %v3269 = vld [vmem:[#allocation7 + $0x7e0] sm:$0xff]
    %v3270 = vld [vmem:[#allocation7 + $0x7e8] sm:$0xff]
    %v3271 = vld [vmem:[#allocation7 + $0x7f0] sm:$0xff]
    %v3272 = vld [vmem:[#allocation7 + $0x7f8] sm:$0xf]
    %v3273 = vld [vmem:[#allocation7 + $0x7fc] sm:$0xff]
    %v3274 = vld [vmem:[#allocation7 + $0x804] sm:$0xff]
    %v3275 = vld [vmem:[#allocation7 + $0x80c] sm:$0xff]
    %v3276 = vld [vmem:[#allocation7 + $0x814] sm:$0xf]
    %v3277 = vld [vmem:[#allocation7 + $0x818] sm:$0xff]
    %v3278 = vld [vmem:[#allocation7 + $0x820] sm:$0xff]
    %v3279 = vld [vmem:[#allocation7 + $0x828] sm:$0xff]
    %v3280 = vld [vmem:[#allocation7 + $0x830] sm:$0xf]
    %v3281 = vld [vmem:[#allocation7 + $0x834] sm:$0xff]
    %v3282 = vld [vmem:[#allocation7 + $0x83c] sm:$0xff]
    %v3283 = vld [vmem:[#allocation7 + $0x844] sm:$0xff]
    %v3284 = vld [vmem:[#allocation7 + $0x84c] sm:$0xf]
    %v3285 = vld [vmem:[#allocation7 + $0x850] sm:$0xff]
    %v3286 = vld [vmem:[#allocation7 + $0x858] sm:$0xff]
    %v3287 = vld [vmem:[#allocation7 + $0x860] sm:$0xff]
    %v3288 = vld [vmem:[#allocation7 + $0x868] sm:$0xf]
    %v3289 = vld [vmem:[#allocation7 + $0x86c] sm:$0xff]
    %v3290 = vld [vmem:[#allocation7 + $0x874] sm:$0xff]
    %v3291 = vld [vmem:[#allocation7 + $0x87c] sm:$0xff]
    %v3292 = vld [vmem:[#allocation7 + $0x884] sm:$0xf]
    %v3293 = vld [vmem:[#allocation7 + $0x888] sm:$0xff]
    %v3294 = vld [vmem:[#allocation7 + $0x890] sm:$0xff]
    %v3295 = vld [vmem:[#allocation7 + $0x898] sm:$0xff]
    %v3296 = vld [vmem:[#allocation7 + $0x8a0] sm:$0xf]
    %v3297 = vld [vmem:[#allocation7 + $0x8a4] sm:$0xff]
    %v3298 = vld [vmem:[#allocation7 + $0x8ac] sm:$0xff]
    %v3299 = vld [vmem:[#allocation7 + $0x8b4] sm:$0xff]
    %v3300 = vld [vmem:[#allocation7 + $0x8bc] sm:$0xf]
    %v3301 = vld [vmem:[#allocation7 + $0x8c0] sm:$0xff]
    %v3302 = vld [vmem:[#allocation7 + $0x8c8] sm:$0xff]
    %v3303 = vld [vmem:[#allocation7 + $0x8d0] sm:$0xff]
    %v3304 = vld [vmem:[#allocation7 + $0x8d8] sm:$0xf]
    %v3305 = vld [vmem:[#allocation7 + $0x8dc] sm:$0xff]
    %v3306 = vld [vmem:[#allocation7 + $0x8e4] sm:$0xff]
    %v3307 = vld [vmem:[#allocation7 + $0x8ec] sm:$0xff]
    %v3308 = vld [vmem:[#allocation7 + $0x8f4] sm:$0xf]
    %v3309 = vld [vmem:[#allocation7 + $0x8f8] sm:$0xff]
    %v3310 = vld [vmem:[#allocation7 + $0x900] sm:$0xff]
    %v3311 = vld [vmem:[#allocation7 + $0x908] sm:$0xff]
    %v3312 = vld [vmem:[#allocation7 + $0x910] sm:$0xf]
    %v3313 = vld [vmem:[#allocation7 + $0x914] sm:$0xff]
    %v3314 = vld [vmem:[#allocation7 + $0x91c] sm:$0xff]
    %v3315 = vld [vmem:[#allocation7 + $0x924] sm:$0xff]
    %v3316 = vld [vmem:[#allocation7 + $0x92c] sm:$0xf]
    %v3317 = vld [vmem:[#allocation7 + $0x930] sm:$0xff]
    %v3318 = vld [vmem:[#allocation7 + $0x938] sm:$0xff]
    %v3319 = vld [vmem:[#allocation7 + $0x940] sm:$0xff]
    %v3320 = vld [vmem:[#allocation7 + $0x948] sm:$0xf]
    %v3321 = vld [vmem:[#allocation7 + $0x94c] sm:$0xff]
    %v3322 = vld [vmem:[#allocation7 + $0x954] sm:$0xff]
    %v3323 = vld [vmem:[#allocation7 + $0x95c] sm:$0xff]
    %v3324 = vld [vmem:[#allocation7 + $0x964] sm:$0xf]
    %v3325 = vld [vmem:[#allocation7 + $0x968] sm:$0xff]
    %v3326 = vld [vmem:[#allocation7 + $0x970] sm:$0xff]
    %v3327 = vld [vmem:[#allocation7 + $0x978] sm:$0xff]
    %v3328 = vld [vmem:[#allocation7 + $0x980] sm:$0xf]
    %v3329 = vld [vmem:[#allocation7 + $0x984] sm:$0xff]
    %v3330 = vld [vmem:[#allocation7 + $0x98c] sm:$0xff]
    %v3331 = vld [vmem:[#allocation7 + $0x994] sm:$0xff]
    %v3332 = vld [vmem:[#allocation7 + $0x99c] sm:$0xf]
    %v3333 = vld [vmem:[#allocation7 + $0x9a0] sm:$0xff]
    %v3334 = vld [vmem:[#allocation7 + $0x9a8] sm:$0xff]
    %v3335 = vld [vmem:[#allocation7 + $0x9b0] sm:$0xff]
    %v3336 = vld [vmem:[#allocation7 + $0x9b8] sm:$0xf]
    %v3337 = vld [vmem:[#allocation7 + $0x9bc] sm:$0xff]
    %v3338 = vld [vmem:[#allocation7 + $0x9c4] sm:$0xff]
    %v3339 = vld [vmem:[#allocation7 + $0x9cc] sm:$0xff]
    %v3340 = vld [vmem:[#allocation7 + $0x9d4] sm:$0xf]
    %v3341 = vld [vmem:[#allocation7 + $0x9d8] sm:$0xff]
    %v3342 = vld [vmem:[#allocation7 + $0x9e0] sm:$0xff]
    %v3343 = vld [vmem:[#allocation7 + $0x9e8] sm:$0xff]
    %v3344 = vld [vmem:[#allocation7 + $0x9f0] sm:$0xf]
    %v3345 = vld [vmem:[#allocation7 + $0x9f4] sm:$0xff]
    %v3346 = vld [vmem:[#allocation7 + $0x9fc] sm:$0xff]
    %v3347 = vld [vmem:[#allocation7 + $0xa04] sm:$0xff]
    %v3348 = vld [vmem:[#allocation7 + $0xa0c] sm:$0xf]
    %v3349 = vld [vmem:[#allocation7 + $0xa10] sm:$0xff]
    %v3350 = vld [vmem:[#allocation7 + $0xa18] sm:$0xff]
    %v3351 = vld [vmem:[#allocation7 + $0xa20] sm:$0xff]
    %v3352 = vld [vmem:[#allocation7 + $0xa28] sm:$0xf]
    %v3353 = vld [vmem:[#allocation7 + $0xa2c] sm:$0xff]
    %v3354 = vld [vmem:[#allocation7 + $0xa34] sm:$0xff]
    %v3355 = vld [vmem:[#allocation7 + $0xa3c] sm:$0xff]
    %v3356 = vld [vmem:[#allocation7 + $0xa44] sm:$0xf]
    %v3357 = vld [vmem:[#allocation7 + $0xa48] sm:$0xff]
    %v3358 = vld [vmem:[#allocation7 + $0xa50] sm:$0xff]
    %v3359 = vld [vmem:[#allocation7 + $0xa58] sm:$0xff]
    %v3360 = vld [vmem:[#allocation7 + $0xa60] sm:$0xf]
    %v3361 = vld [vmem:[#allocation7 + $0xa64] sm:$0xff]
    %v3362 = vld [vmem:[#allocation7 + $0xa6c] sm:$0xff]
    %v3363 = vld [vmem:[#allocation7 + $0xa74] sm:$0xff]
    %v3364 = vld [vmem:[#allocation7 + $0xa7c] sm:$0xf]
    %v3365 = vld [vmem:[#allocation7 + $0xa80] sm:$0xff]
    %v3366 = vld [vmem:[#allocation7 + $0xa88] sm:$0xff]
    %v3367 = vld [vmem:[#allocation7 + $0xa90] sm:$0xff]
    %v3368 = vld [vmem:[#allocation7 + $0xa98] sm:$0xf]
    %v3369 = vld [vmem:[#allocation7 + $0xa9c] sm:$0xff]
    %v3370 = vld [vmem:[#allocation7 + $0xaa4] sm:$0xff]
    %v3371 = vld [vmem:[#allocation7 + $0xaac] sm:$0xff]
    %v3372 = vld [vmem:[#allocation7 + $0xab4] sm:$0xf]
    %v3373 = vld [vmem:[#allocation7 + $0xab8] sm:$0xff]
    %v3374 = vld [vmem:[#allocation7 + $0xac0] sm:$0xff]
    %v3375 = vld [vmem:[#allocation7 + $0xac8] sm:$0xff]
    %v3376 = vld [vmem:[#allocation7 + $0xad0] sm:$0xf]
    %v3377 = vld [vmem:[#allocation7 + $0xad4] sm:$0xff]
    %v3378 = vld [vmem:[#allocation7 + $0xadc] sm:$0xff]
    %v3379 = vld [vmem:[#allocation7 + $0xae4] sm:$0xff]
    %v3380 = vld [vmem:[#allocation7 + $0xaec] sm:$0xf]
    %v3381 = vld [vmem:[#allocation7 + $0xaf0] sm:$0xff]
    %v3382 = vld [vmem:[#allocation7 + $0xaf8] sm:$0xff]
    %v3383 = vld [vmem:[#allocation7 + $0xb00] sm:$0xff]
    %v3384 = vld [vmem:[#allocation7 + $0xb08] sm:$0xf]
    %v3385 = vld [vmem:[#allocation7 + $0xb0c] sm:$0xff]
    %v3386 = vld [vmem:[#allocation7 + $0xb14] sm:$0xff]
    %v3387 = vld [vmem:[#allocation7 + $0xb1c] sm:$0xff]
    %v3388 = vld [vmem:[#allocation7 + $0xb24] sm:$0xf]
    %v3389 = vld [vmem:[#allocation7 + $0xb28] sm:$0xff]
    %v3390 = vld [vmem:[#allocation7 + $0xb30] sm:$0xff]
    %v3391 = vld [vmem:[#allocation7 + $0xb38] sm:$0xff]
    %v3392 = vld [vmem:[#allocation7 + $0xb40] sm:$0xf]
    %v3393 = vld [vmem:[#allocation7 + $0xb44] sm:$0xff]
    %v3394 = vld [vmem:[#allocation7 + $0xb4c] sm:$0xff]
    %v3395 = vld [vmem:[#allocation7 + $0xb54] sm:$0xff]
    %v3396 = vld [vmem:[#allocation7 + $0xb5c] sm:$0xf]
    %v3397 = vld [vmem:[#allocation7 + $0xb60] sm:$0xff]
    %v3398 = vld [vmem:[#allocation7 + $0xb68] sm:$0xff]
    %v3399 = vld [vmem:[#allocation7 + $0xb70] sm:$0xff]
    %v3400 = vld [vmem:[#allocation7 + $0xb78] sm:$0xf]
    %v3401 = vld [vmem:[#allocation7 + $0xb7c] sm:$0xff]
    %v3402 = vld [vmem:[#allocation7 + $0xb84] sm:$0xff]
    %v3403 = vld [vmem:[#allocation7 + $0xb8c] sm:$0xff]
    %v3404 = vld [vmem:[#allocation7 + $0xb94] sm:$0xf]
    %v3405 = vld [vmem:[#allocation7 + $0xb98] sm:$0xff]
    %v3406 = vld [vmem:[#allocation7 + $0xba0] sm:$0xff]
    %v3407 = vld [vmem:[#allocation7 + $0xba8] sm:$0xff]
    %v3408 = vld [vmem:[#allocation7 + $0xbb0] sm:$0xf]
    %v3409 = vld [vmem:[#allocation7 + $0xbb4] sm:$0xff]
    %v3410 = vld [vmem:[#allocation7 + $0xbbc] sm:$0xff]
    %v3411 = vld [vmem:[#allocation7 + $0xbc4] sm:$0xff]
    %v3412 = vld [vmem:[#allocation7 + $0xbcc] sm:$0xf]
    %v3413 = vld [vmem:[#allocation7 + $0xbd0] sm:$0xff]
    %v3414 = vld [vmem:[#allocation7 + $0xbd8] sm:$0xff]
    %v3415 = vld [vmem:[#allocation7 + $0xbe0] sm:$0xff]
    %v3416 = vld [vmem:[#allocation7 + $0xbe8] sm:$0xf]
    %v3417 = vld [vmem:[#allocation7 + $0xbec] sm:$0xff]
    %v3418 = vld [vmem:[#allocation7 + $0xbf4] sm:$0xff]
    %v3419 = vld [vmem:[#allocation7 + $0xbfc] sm:$0xff]
    %v3420 = vld [vmem:[#allocation7 + $0xc04] sm:$0xf]
    %v3421 = vld [vmem:[#allocation7 + $0xc08] sm:$0xff]
    %v3422 = vld [vmem:[#allocation7 + $0xc10] sm:$0xff]
    %v3423 = vld [vmem:[#allocation7 + $0xc18] sm:$0xff]
    %v3424 = vld [vmem:[#allocation7 + $0xc20] sm:$0xf]
    %v3425 = vld [vmem:[#allocation7 + $0xc24] sm:$0xff]
    %v3426 = vld [vmem:[#allocation7 + $0xc2c] sm:$0xff]
    %v3427 = vld [vmem:[#allocation7 + $0xc34] sm:$0xff]
    %v3428 = vld [vmem:[#allocation7 + $0xc3c] sm:$0xf]
    %v3429 = vld [vmem:[#allocation8] sm:$0xff]
    %v3431 = vlaneseq
    %v3432 = vshrl.u32 %v3431, 7
    %v3433 = vsub.s32 0, %v3432
    %v3434 = vrot.slane %v3429, %v3433
    %v3435 = vlaneseq
    %v3436 = vshrl.u32 %v3435, 7
    %v3437 = vsub.s32 1, %v3436
    %v3438 = vrot.slane %v3429, %v3437
    %v3439 = vlaneseq
    %v3440 = vshrl.u32 %v3439, 7
    %v3441 = vsub.s32 2, %v3440
    %v3442 = vrot.slane %v3429, %v3441
    %v3443 = vlaneseq
    %v3444 = vshrl.u32 %v3443, 7
    %v3445 = vsub.s32 3, %v3444
    %v3446 = vrot.slane %v3429, %v3445
    %v3447 = vlaneseq
    %v3448 = vshrl.u32 %v3447, 7
    %v3449 = vsub.s32 4, %v3448
    %v3450 = vrot.slane %v3429, %v3449
    %v3451 = vlaneseq
    %v3452 = vshrl.u32 %v3451, 7
    %v3453 = vsub.s32 5, %v3452
    %v3454 = vrot.slane %v3429, %v3453
    %v3455 = vlaneseq
    %v3456 = vshrl.u32 %v3455, 7
    %v3457 = vsub.s32 6, %v3456
    %v3458 = vrot.slane %v3429, %v3457
    %v3914 = vunpack.c.l.b16 %v2981
    %v3915 = vunpack.c.h.b16 %v2981
    %v3916 = vunpack.c.l.b16 %v2982
    %v3917 = vunpack.c.h.b16 %v2982
    %v3918 = vunpack.c.l.b16 %v2983
    %v3919 = vunpack.c.h.b16 %v2983
    %v3920 = vunpack.c.l.b16 %v2984
    %v3921 = vunpack.c.l.b16 %v2985
    %v3922 = vunpack.c.h.b16 %v2985
    %v3923 = vunpack.c.l.b16 %v2986
    %v3924 = vunpack.c.h.b16 %v2986
    %v3925 = vunpack.c.l.b16 %v2987
    %v3926 = vunpack.c.h.b16 %v2987
    %v3927 = vunpack.c.l.b16 %v2988
    %v3928 = vunpack.c.l.b16 %v2989
    %v3929 = vunpack.c.h.b16 %v2989
    %v3930 = vunpack.c.l.b16 %v2990
    %v3931 = vunpack.c.h.b16 %v2990
    %v3932 = vunpack.c.l.b16 %v2991
    %v3933 = vunpack.c.h.b16 %v2991
    %v3934 = vunpack.c.l.b16 %v2992
    %v3935 = vunpack.c.l.b16 %v2993
    %v3936 = vunpack.c.h.b16 %v2993
    %v3937 = vunpack.c.l.b16 %v2994
    %v3938 = vunpack.c.h.b16 %v2994
    %v3939 = vunpack.c.l.b16 %v2995
    %v3940 = vunpack.c.h.b16 %v2995
    %v3941 = vunpack.c.l.b16 %v2996
    %v3942 = vunpack.c.l.b16 %v2997
    %v3943 = vunpack.c.h.b16 %v2997
    %v3944 = vunpack.c.l.b16 %v2998
    %v3945 = vunpack.c.h.b16 %v2998
    %v3946 = vunpack.c.l.b16 %v2999
    %v3947 = vunpack.c.h.b16 %v2999
    %v3948 = vunpack.c.l.b16 %v3000
    %v3949 = vunpack.c.l.b16 %v3001
    %v3950 = vunpack.c.h.b16 %v3001
    %v3951 = vunpack.c.l.b16 %v3002
    %v3952 = vunpack.c.h.b16 %v3002
    %v3953 = vunpack.c.l.b16 %v3003
    %v3954 = vunpack.c.h.b16 %v3003
    %v3955 = vunpack.c.l.b16 %v3004
    %v3956 = vunpack.c.l.b16 %v3005
    %v3957 = vunpack.c.h.b16 %v3005
    %v3958 = vunpack.c.l.b16 %v3006
    %v3959 = vunpack.c.h.b16 %v3006
    %v3960 = vunpack.c.l.b16 %v3007
    %v3961 = vunpack.c.h.b16 %v3007
    %v3962 = vunpack.c.l.b16 %v3008
    %v3963 = vunpack.c.l.b16 %v3009
    %v3964 = vunpack.c.h.b16 %v3009
    %v3965 = vunpack.c.l.b16 %v3010
    %v3966 = vunpack.c.h.b16 %v3010
    %v3967 = vunpack.c.l.b16 %v3011
    %v3968 = vunpack.c.h.b16 %v3011
    %v3969 = vunpack.c.l.b16 %v3012
    %v3970 = vunpack.c.l.b16 %v3013
    %v3971 = vunpack.c.h.b16 %v3013
    %v3972 = vunpack.c.l.b16 %v3014
    %v3973 = vunpack.c.h.b16 %v3014
    %v3974 = vunpack.c.l.b16 %v3015
    %v3975 = vunpack.c.h.b16 %v3015
    %v3976 = vunpack.c.l.b16 %v3016
    %v3977 = vunpack.c.l.b16 %v3017
    %v3978 = vunpack.c.h.b16 %v3017
    %v3979 = vunpack.c.l.b16 %v3018
    %v3980 = vunpack.c.h.b16 %v3018
    %v3981 = vunpack.c.l.b16 %v3019
    %v3982 = vunpack.c.h.b16 %v3019
    %v3983 = vunpack.c.l.b16 %v3020
    %v3984 = vunpack.c.l.b16 %v3021
    %v3985 = vunpack.c.h.b16 %v3021
    %v3986 = vunpack.c.l.b16 %v3022
    %v3987 = vunpack.c.h.b16 %v3022
    %v3988 = vunpack.c.l.b16 %v3023
    %v3989 = vunpack.c.h.b16 %v3023
    %v3990 = vunpack.c.l.b16 %v3024
    %v3991 = vunpack.c.l.b16 %v3025
    %v3992 = vunpack.c.h.b16 %v3025
    %v3993 = vunpack.c.l.b16 %v3026
    %v3994 = vunpack.c.h.b16 %v3026
    %v3995 = vunpack.c.l.b16 %v3027
    %v3996 = vunpack.c.h.b16 %v3027
    %v3997 = vunpack.c.l.b16 %v3028
    %v3998 = vunpack.c.l.b16 %v3029
    %v3999 = vunpack.c.h.b16 %v3029
    %v4000 = vunpack.c.l.b16 %v3030
    %v4001 = vunpack.c.h.b16 %v3030
    %v4002 = vunpack.c.l.b16 %v3031
    %v4003 = vunpack.c.h.b16 %v3031
    %v4004 = vunpack.c.l.b16 %v3032
    %v4005 = vunpack.c.l.b16 %v3033
    %v4006 = vunpack.c.h.b16 %v3033
    %v4007 = vunpack.c.l.b16 %v3034
    %v4008 = vunpack.c.h.b16 %v3034
    %v4009 = vunpack.c.l.b16 %v3035
    %v4010 = vunpack.c.h.b16 %v3035
    %v4011 = vunpack.c.l.b16 %v3036
    %v4012 = vunpack.c.l.b16 %v3037
    %v4013 = vunpack.c.h.b16 %v3037
    %v4014 = vunpack.c.l.b16 %v3038
    %v4015 = vunpack.c.h.b16 %v3038
    %v4016 = vunpack.c.l.b16 %v3039
    %v4017 = vunpack.c.h.b16 %v3039
    %v4018 = vunpack.c.l.b16 %v3040
    %v4019 = vunpack.c.l.b16 %v3041
    %v4020 = vunpack.c.h.b16 %v3041
    %v4021 = vunpack.c.l.b16 %v3042
    %v4022 = vunpack.c.h.b16 %v3042
    %v4023 = vunpack.c.l.b16 %v3043
    %v4024 = vunpack.c.h.b16 %v3043
    %v4025 = vunpack.c.l.b16 %v3044
    %v4026 = vunpack.c.l.b16 %v3045
    %v4027 = vunpack.c.h.b16 %v3045
    %v4028 = vunpack.c.l.b16 %v3046
    %v4029 = vunpack.c.h.b16 %v3046
    %v4030 = vunpack.c.l.b16 %v3047
    %v4031 = vunpack.c.h.b16 %v3047
    %v4032 = vunpack.c.l.b16 %v3048
    %v4033 = vunpack.c.l.b16 %v3049
    %v4034 = vunpack.c.h.b16 %v3049
    %v4035 = vunpack.c.l.b16 %v3050
    %v4036 = vunpack.c.h.b16 %v3050
    %v4037 = vunpack.c.l.b16 %v3051
    %v4038 = vunpack.c.h.b16 %v3051
    %v4039 = vunpack.c.l.b16 %v3052
    %v4040 = vunpack.c.l.b16 %v3053
    %v4041 = vunpack.c.h.b16 %v3053
    %v4042 = vunpack.c.l.b16 %v3054
    %v4043 = vunpack.c.h.b16 %v3054
    %v4044 = vunpack.c.l.b16 %v3055
    %v4045 = vunpack.c.h.b16 %v3055
    %v4046 = vunpack.c.l.b16 %v3056
    %v4047 = vunpack.c.l.b16 %v3057
    %v4048 = vunpack.c.h.b16 %v3057
    %v4049 = vunpack.c.l.b16 %v3058
    %v4050 = vunpack.c.h.b16 %v3058
    %v4051 = vunpack.c.l.b16 %v3059
    %v4052 = vunpack.c.h.b16 %v3059
    %v4053 = vunpack.c.l.b16 %v3060
    %v4054 = vunpack.c.l.b16 %v3061
    %v4055 = vunpack.c.h.b16 %v3061
    %v4056 = vunpack.c.l.b16 %v3062
    %v4057 = vunpack.c.h.b16 %v3062
    %v4058 = vunpack.c.l.b16 %v3063
    %v4059 = vunpack.c.h.b16 %v3063
    %v4060 = vunpack.c.l.b16 %v3064
    %v4061 = vunpack.c.l.b16 %v3065
    %v4062 = vunpack.c.h.b16 %v3065
    %v4063 = vunpack.c.l.b16 %v3066
    %v4064 = vunpack.c.h.b16 %v3066
    %v4065 = vunpack.c.l.b16 %v3067
    %v4066 = vunpack.c.h.b16 %v3067
    %v4067 = vunpack.c.l.b16 %v3068
    %v4068 = vunpack.c.l.b16 %v3069
    %v4069 = vunpack.c.h.b16 %v3069
    %v4070 = vunpack.c.l.b16 %v3070
    %v4071 = vunpack.c.h.b16 %v3070
    %v4072 = vunpack.c.l.b16 %v3071
    %v4073 = vunpack.c.h.b16 %v3071
    %v4074 = vunpack.c.l.b16 %v3072
    %v4075 = vunpack.c.l.b16 %v3073
    %v4076 = vunpack.c.h.b16 %v3073
    %v4077 = vunpack.c.l.b16 %v3074
    %v4078 = vunpack.c.h.b16 %v3074
    %v4079 = vunpack.c.l.b16 %v3075
    %v4080 = vunpack.c.h.b16 %v3075
    %v4081 = vunpack.c.l.b16 %v3076
    %v4082 = vunpack.c.l.b16 %v3077
    %v4083 = vunpack.c.h.b16 %v3077
    %v4084 = vunpack.c.l.b16 %v3078
    %v4085 = vunpack.c.h.b16 %v3078
    %v4086 = vunpack.c.l.b16 %v3079
    %v4087 = vunpack.c.h.b16 %v3079
    %v4088 = vunpack.c.l.b16 %v3080
    %v4089 = vunpack.c.l.b16 %v3081
    %v4090 = vunpack.c.h.b16 %v3081
    %v4091 = vunpack.c.l.b16 %v3082
    %v4092 = vunpack.c.h.b16 %v3082
    %v4093 = vunpack.c.l.b16 %v3083
    %v4094 = vunpack.c.h.b16 %v3083
    %v4095 = vunpack.c.l.b16 %v3084
    %v4096 = vunpack.c.l.b16 %v3085
    %v4097 = vunpack.c.h.b16 %v3085
    %v4098 = vunpack.c.l.b16 %v3086
    %v4099 = vunpack.c.h.b16 %v3086
    %v4100 = vunpack.c.l.b16 %v3087
    %v4101 = vunpack.c.h.b16 %v3087
    %v4102 = vunpack.c.l.b16 %v3088
    %v4103 = vunpack.c.l.b16 %v3089
    %v4104 = vunpack.c.h.b16 %v3089
    %v4105 = vunpack.c.l.b16 %v3090
    %v4106 = vunpack.c.h.b16 %v3090
    %v4107 = vunpack.c.l.b16 %v3091
    %v4108 = vunpack.c.h.b16 %v3091
    %v4109 = vunpack.c.l.b16 %v3092
    %v4110 = vunpack.c.l.b16 %v3093
    %v4111 = vunpack.c.h.b16 %v3093
    %v4112 = vunpack.c.l.b16 %v3094
    %v4113 = vunpack.c.h.b16 %v3094
    %v4114 = vunpack.c.l.b16 %v3095
    %v4115 = vunpack.c.h.b16 %v3095
    %v4116 = vunpack.c.l.b16 %v3096
    %v4117 = vunpack.c.l.b16 %v3097
    %v4118 = vunpack.c.h.b16 %v3097
    %v4119 = vunpack.c.l.b16 %v3098
    %v4120 = vunpack.c.h.b16 %v3098
    %v4121 = vunpack.c.l.b16 %v3099
    %v4122 = vunpack.c.h.b16 %v3099
    %v4123 = vunpack.c.l.b16 %v3100
    %v4124 = vunpack.c.l.b16 %v3101
    %v4125 = vunpack.c.h.b16 %v3101
    %v4126 = vunpack.c.l.b16 %v3102
    %v4127 = vunpack.c.h.b16 %v3102
    %v4128 = vunpack.c.l.b16 %v3103
    %v4129 = vunpack.c.h.b16 %v3103
    %v4130 = vunpack.c.l.b16 %v3104
    %v4131 = vunpack.c.l.b16 %v3105
    %v4132 = vunpack.c.h.b16 %v3105
    %v4133 = vunpack.c.l.b16 %v3106
    %v4134 = vunpack.c.h.b16 %v3106
    %v4135 = vunpack.c.l.b16 %v3107
    %v4136 = vunpack.c.h.b16 %v3107
    %v4137 = vunpack.c.l.b16 %v3108
    %v4138 = vunpack.c.l.b16 %v3109
    %v4139 = vunpack.c.h.b16 %v3109
    %v4140 = vunpack.c.l.b16 %v3110
    %v4141 = vunpack.c.h.b16 %v3110
    %v4142 = vunpack.c.l.b16 %v3111
    %v4143 = vunpack.c.h.b16 %v3111
    %v4144 = vunpack.c.l.b16 %v3112
    %v4145 = vunpack.c.l.b16 %v3113
    %v4146 = vunpack.c.h.b16 %v3113
    %v4147 = vunpack.c.l.b16 %v3114
    %v4148 = vunpack.c.h.b16 %v3114
    %v4149 = vunpack.c.l.b16 %v3115
    %v4150 = vunpack.c.h.b16 %v3115
    %v4151 = vunpack.c.l.b16 %v3116
    %v4152 = vunpack.c.l.b16 %v3117
    %v4153 = vunpack.c.h.b16 %v3117
    %v4154 = vunpack.c.l.b16 %v3118
    %v4155 = vunpack.c.h.b16 %v3118
    %v4156 = vunpack.c.l.b16 %v3119
    %v4157 = vunpack.c.h.b16 %v3119
    %v4158 = vunpack.c.l.b16 %v3120
    %v4159 = vunpack.c.l.b16 %v3121
    %v4160 = vunpack.c.h.b16 %v3121
    %v4161 = vunpack.c.l.b16 %v3122
    %v4162 = vunpack.c.h.b16 %v3122
    %v4163 = vunpack.c.l.b16 %v3123
    %v4164 = vunpack.c.h.b16 %v3123
    %v4165 = vunpack.c.l.b16 %v3124
    %v4166 = vunpack.c.l.b16 %v3125
    %v4167 = vunpack.c.h.b16 %v3125
    %v4168 = vunpack.c.l.b16 %v3126
    %v4169 = vunpack.c.h.b16 %v3126
    %v4170 = vunpack.c.l.b16 %v3127
    %v4171 = vunpack.c.h.b16 %v3127
    %v4172 = vunpack.c.l.b16 %v3128
    %v4173 = vunpack.c.l.b16 %v3129
    %v4174 = vunpack.c.h.b16 %v3129
    %v4175 = vunpack.c.l.b16 %v3130
    %v4176 = vunpack.c.h.b16 %v3130
    %v4177 = vunpack.c.l.b16 %v3131
    %v4178 = vunpack.c.h.b16 %v3131
    %v4179 = vunpack.c.l.b16 %v3132
    %v4180 = vunpack.c.l.b16 %v3133
    %v4181 = vunpack.c.h.b16 %v3133
    %v4182 = vunpack.c.l.b16 %v3134
    %v4183 = vunpack.c.h.b16 %v3134
    %v4184 = vunpack.c.l.b16 %v3135
    %v4185 = vunpack.c.h.b16 %v3135
    %v4186 = vunpack.c.l.b16 %v3136
    %v4187 = vunpack.c.l.b16 %v3137
    %v4188 = vunpack.c.h.b16 %v3137
    %v4189 = vunpack.c.l.b16 %v3138
    %v4190 = vunpack.c.h.b16 %v3138
    %v4191 = vunpack.c.l.b16 %v3139
    %v4192 = vunpack.c.h.b16 %v3139
    %v4193 = vunpack.c.l.b16 %v3140
    %v4194 = vunpack.c.l.b16 %v3141
    %v4195 = vunpack.c.h.b16 %v3141
    %v4196 = vunpack.c.l.b16 %v3142
    %v4197 = vunpack.c.h.b16 %v3142
    %v4198 = vunpack.c.l.b16 %v3143
    %v4199 = vunpack.c.h.b16 %v3143
    %v4200 = vunpack.c.l.b16 %v3144
    %v4201 = vunpack.c.l.b16 %v3145
    %v4202 = vunpack.c.h.b16 %v3145
    %v4203 = vunpack.c.l.b16 %v3146
    %v4204 = vunpack.c.h.b16 %v3146
    %v4205 = vunpack.c.l.b16 %v3147
    %v4206 = vunpack.c.h.b16 %v3147
    %v4207 = vunpack.c.l.b16 %v3148
    %v4208 = vunpack.c.l.b16 %v3149
    %v4209 = vunpack.c.h.b16 %v3149
    %v4210 = vunpack.c.l.b16 %v3150
    %v4211 = vunpack.c.h.b16 %v3150
    %v4212 = vunpack.c.l.b16 %v3151
    %v4213 = vunpack.c.h.b16 %v3151
    %v4214 = vunpack.c.l.b16 %v3152
    %v4215 = vunpack.c.l.b16 %v3153
    %v4216 = vunpack.c.h.b16 %v3153
    %v4217 = vunpack.c.l.b16 %v3154
    %v4218 = vunpack.c.h.b16 %v3154
    %v4219 = vunpack.c.l.b16 %v3155
    %v4220 = vunpack.c.h.b16 %v3155
    %v4221 = vunpack.c.l.b16 %v3156
    %v4222 = vunpack.c.l.b16 %v3157
    %v4223 = vunpack.c.h.b16 %v3157
    %v4224 = vunpack.c.l.b16 %v3158
    %v4225 = vunpack.c.h.b16 %v3158
    %v4226 = vunpack.c.l.b16 %v3159
    %v4227 = vunpack.c.h.b16 %v3159
    %v4228 = vunpack.c.l.b16 %v3160
    %v4229 = vunpack.c.l.b16 %v3161
    %v4230 = vunpack.c.h.b16 %v3161
    %v4231 = vunpack.c.l.b16 %v3162
    %v4232 = vunpack.c.h.b16 %v3162
    %v4233 = vunpack.c.l.b16 %v3163
    %v4234 = vunpack.c.h.b16 %v3163
    %v4235 = vunpack.c.l.b16 %v3164
    %v4236 = vunpack.c.l.b16 %v3165
    %v4237 = vunpack.c.h.b16 %v3165
    %v4238 = vunpack.c.l.b16 %v3166
    %v4239 = vunpack.c.h.b16 %v3166
    %v4240 = vunpack.c.l.b16 %v3167
    %v4241 = vunpack.c.h.b16 %v3167
    %v4242 = vunpack.c.l.b16 %v3168
    %v4243 = vunpack.c.l.b16 %v3169
    %v4244 = vunpack.c.h.b16 %v3169
    %v4245 = vunpack.c.l.b16 %v3170
    %v4246 = vunpack.c.h.b16 %v3170
    %v4247 = vunpack.c.l.b16 %v3171
    %v4248 = vunpack.c.h.b16 %v3171
    %v4249 = vunpack.c.l.b16 %v3172
    %v4250 = vunpack.c.l.b16 %v3173
    %v4251 = vunpack.c.h.b16 %v3173
    %v4252 = vunpack.c.l.b16 %v3174
    %v4253 = vunpack.c.h.b16 %v3174
    %v4254 = vunpack.c.l.b16 %v3175
    %v4255 = vunpack.c.h.b16 %v3175
    %v4256 = vunpack.c.l.b16 %v3176
    %v4257 = vunpack.c.l.b16 %v3177
    %v4258 = vunpack.c.h.b16 %v3177
    %v4259 = vunpack.c.l.b16 %v3178
    %v4260 = vunpack.c.h.b16 %v3178
    %v4261 = vunpack.c.l.b16 %v3179
    %v4262 = vunpack.c.h.b16 %v3179
    %v4263 = vunpack.c.l.b16 %v3180
    %v4264 = vunpack.c.l.b16 %v3181
    %v4265 = vunpack.c.h.b16 %v3181
    %v4266 = vunpack.c.l.b16 %v3182
    %v4267 = vunpack.c.h.b16 %v3182
    %v4268 = vunpack.c.l.b16 %v3183
    %v4269 = vunpack.c.h.b16 %v3183
    %v4270 = vunpack.c.l.b16 %v3184
    %v4271 = vunpack.c.l.b16 %v3185
    %v4272 = vunpack.c.h.b16 %v3185
    %v4273 = vunpack.c.l.b16 %v3186
    %v4274 = vunpack.c.h.b16 %v3186
    %v4275 = vunpack.c.l.b16 %v3187
    %v4276 = vunpack.c.h.b16 %v3187
    %v4277 = vunpack.c.l.b16 %v3188
    %v4278 = vunpack.c.l.b16 %v3189
    %v4279 = vunpack.c.h.b16 %v3189
    %v4280 = vunpack.c.l.b16 %v3190
    %v4281 = vunpack.c.h.b16 %v3190
    %v4282 = vunpack.c.l.b16 %v3191
    %v4283 = vunpack.c.h.b16 %v3191
    %v4284 = vunpack.c.l.b16 %v3192
    %v4285 = vunpack.c.l.b16 %v3193
    %v4286 = vunpack.c.h.b16 %v3193
    %v4287 = vunpack.c.l.b16 %v3194
    %v4288 = vunpack.c.h.b16 %v3194
    %v4289 = vunpack.c.l.b16 %v3195
    %v4290 = vunpack.c.h.b16 %v3195
    %v4291 = vunpack.c.l.b16 %v3196
    %v4292 = vunpack.c.l.b16 %v3197
    %v4293 = vunpack.c.h.b16 %v3197
    %v4294 = vunpack.c.l.b16 %v3198
    %v4295 = vunpack.c.h.b16 %v3198
    %v4296 = vunpack.c.l.b16 %v3199
    %v4297 = vunpack.c.h.b16 %v3199
    %v4298 = vunpack.c.l.b16 %v3200
    %v4299 = vunpack.c.l.b16 %v3201
    %v4300 = vunpack.c.h.b16 %v3201
    %v4301 = vunpack.c.l.b16 %v3202
    %v4302 = vunpack.c.h.b16 %v3202
    %v4303 = vunpack.c.l.b16 %v3203
    %v4304 = vunpack.c.h.b16 %v3203
    %v4305 = vunpack.c.l.b16 %v3204
    %v4306 = vunpack.c.l.b16 %v3205
    %v4307 = vunpack.c.h.b16 %v3205
    %v4308 = vunpack.c.l.b16 %v3206
    %v4309 = vunpack.c.h.b16 %v3206
    %v4310 = vunpack.c.l.b16 %v3207
    %v4311 = vunpack.c.h.b16 %v3207
    %v4312 = vunpack.c.l.b16 %v3208
    %v4313 = vunpack.c.l.b16 %v3209
    %v4314 = vunpack.c.h.b16 %v3209
    %v4315 = vunpack.c.l.b16 %v3210
    %v4316 = vunpack.c.h.b16 %v3210
    %v4317 = vunpack.c.l.b16 %v3211
    %v4318 = vunpack.c.h.b16 %v3211
    %v4319 = vunpack.c.l.b16 %v3212
    %v4320 = vunpack.c.l.b16 %v3213
    %v4321 = vunpack.c.h.b16 %v3213
    %v4322 = vunpack.c.l.b16 %v3214
    %v4323 = vunpack.c.h.b16 %v3214
    %v4324 = vunpack.c.l.b16 %v3215
    %v4325 = vunpack.c.h.b16 %v3215
    %v4326 = vunpack.c.l.b16 %v3216
    %v4327 = vunpack.c.l.b16 %v3217
    %v4328 = vunpack.c.h.b16 %v3217
    %v4329 = vunpack.c.l.b16 %v3218
    %v4330 = vunpack.c.h.b16 %v3218
    %v4331 = vunpack.c.l.b16 %v3219
    %v4332 = vunpack.c.h.b16 %v3219
    %v4333 = vunpack.c.l.b16 %v3220
    %v4334 = vunpack.c.l.b16 %v3221
    %v4335 = vunpack.c.h.b16 %v3221
    %v4336 = vunpack.c.l.b16 %v3222
    %v4337 = vunpack.c.h.b16 %v3222
    %v4338 = vunpack.c.l.b16 %v3223
    %v4339 = vunpack.c.h.b16 %v3223
    %v4340 = vunpack.c.l.b16 %v3224
    %v4341 = vunpack.c.l.b16 %v3225
    %v4342 = vunpack.c.h.b16 %v3225
    %v4343 = vunpack.c.l.b16 %v3226
    %v4344 = vunpack.c.h.b16 %v3226
    %v4345 = vunpack.c.l.b16 %v3227
    %v4346 = vunpack.c.h.b16 %v3227
    %v4347 = vunpack.c.l.b16 %v3228
    %v4348 = vunpack.c.l.b16 %v3229
    %v4349 = vunpack.c.h.b16 %v3229
    %v4350 = vunpack.c.l.b16 %v3230
    %v4351 = vunpack.c.h.b16 %v3230
    %v4352 = vunpack.c.l.b16 %v3231
    %v4353 = vunpack.c.h.b16 %v3231
    %v4354 = vunpack.c.l.b16 %v3232
    %v4355 = vunpack.c.l.b16 %v3233
    %v4356 = vunpack.c.h.b16 %v3233
    %v4357 = vunpack.c.l.b16 %v3234
    %v4358 = vunpack.c.h.b16 %v3234
    %v4359 = vunpack.c.l.b16 %v3235
    %v4360 = vunpack.c.h.b16 %v3235
    %v4361 = vunpack.c.l.b16 %v3236
    %v4362 = vunpack.c.l.b16 %v3237
    %v4363 = vunpack.c.h.b16 %v3237
    %v4364 = vunpack.c.l.b16 %v3238
    %v4365 = vunpack.c.h.b16 %v3238
    %v4366 = vunpack.c.l.b16 %v3239
    %v4367 = vunpack.c.h.b16 %v3239
    %v4368 = vunpack.c.l.b16 %v3240
    %v4369 = vunpack.c.l.b16 %v3241
    %v4370 = vunpack.c.h.b16 %v3241
    %v4371 = vunpack.c.l.b16 %v3242
    %v4372 = vunpack.c.h.b16 %v3242
    %v4373 = vunpack.c.l.b16 %v3243
    %v4374 = vunpack.c.h.b16 %v3243
    %v4375 = vunpack.c.l.b16 %v3244
    %v4376 = vunpack.c.l.b16 %v3245
    %v4377 = vunpack.c.h.b16 %v3245
    %v4378 = vunpack.c.l.b16 %v3246
    %v4379 = vunpack.c.h.b16 %v3246
    %v4380 = vunpack.c.l.b16 %v3247
    %v4381 = vunpack.c.h.b16 %v3247
    %v4382 = vunpack.c.l.b16 %v3248
    %v4383 = vunpack.c.l.b16 %v3249
    %v4384 = vunpack.c.h.b16 %v3249
    %v4385 = vunpack.c.l.b16 %v3250
    %v4386 = vunpack.c.h.b16 %v3250
    %v4387 = vunpack.c.l.b16 %v3251
    %v4388 = vunpack.c.h.b16 %v3251
    %v4389 = vunpack.c.l.b16 %v3252
    %v4390 = vunpack.c.l.b16 %v3253
    %v4391 = vunpack.c.h.b16 %v3253
    %v4392 = vunpack.c.l.b16 %v3254
    %v4393 = vunpack.c.h.b16 %v3254
    %v4394 = vunpack.c.l.b16 %v3255
    %v4395 = vunpack.c.h.b16 %v3255
    %v4396 = vunpack.c.l.b16 %v3256
    %v4397 = vunpack.c.l.b16 %v3257
    %v4398 = vunpack.c.h.b16 %v3257
    %v4399 = vunpack.c.l.b16 %v3258
    %v4400 = vunpack.c.h.b16 %v3258
    %v4401 = vunpack.c.l.b16 %v3259
    %v4402 = vunpack.c.h.b16 %v3259
    %v4403 = vunpack.c.l.b16 %v3260
    %v4404 = vunpack.c.l.b16 %v3261
    %v4405 = vunpack.c.h.b16 %v3261
    %v4406 = vunpack.c.l.b16 %v3262
    %v4407 = vunpack.c.h.b16 %v3262
    %v4408 = vunpack.c.l.b16 %v3263
    %v4409 = vunpack.c.h.b16 %v3263
    %v4410 = vunpack.c.l.b16 %v3264
    %v4411 = vunpack.c.l.b16 %v3265
    %v4412 = vunpack.c.h.b16 %v3265
    %v4413 = vunpack.c.l.b16 %v3266
    %v4414 = vunpack.c.h.b16 %v3266
    %v4415 = vunpack.c.l.b16 %v3267
    %v4416 = vunpack.c.h.b16 %v3267
    %v4417 = vunpack.c.l.b16 %v3268
    %v4418 = vunpack.c.l.b16 %v3269
    %v4419 = vunpack.c.h.b16 %v3269
    %v4420 = vunpack.c.l.b16 %v3270
    %v4421 = vunpack.c.h.b16 %v3270
    %v4422 = vunpack.c.l.b16 %v3271
    %v4423 = vunpack.c.h.b16 %v3271
    %v4424 = vunpack.c.l.b16 %v3272
    %v4425 = vunpack.c.l.b16 %v3273
    %v4426 = vunpack.c.h.b16 %v3273
    %v4427 = vunpack.c.l.b16 %v3274
    %v4428 = vunpack.c.h.b16 %v3274
    %v4429 = vunpack.c.l.b16 %v3275
    %v4430 = vunpack.c.h.b16 %v3275
    %v4431 = vunpack.c.l.b16 %v3276
    %v4432 = vunpack.c.l.b16 %v3277
    %v4433 = vunpack.c.h.b16 %v3277
    %v4434 = vunpack.c.l.b16 %v3278
    %v4435 = vunpack.c.h.b16 %v3278
    %v4436 = vunpack.c.l.b16 %v3279
    %v4437 = vunpack.c.h.b16 %v3279
    %v4438 = vunpack.c.l.b16 %v3280
    %v4439 = vunpack.c.l.b16 %v3281
    %v4440 = vunpack.c.h.b16 %v3281
    %v4441 = vunpack.c.l.b16 %v3282
    %v4442 = vunpack.c.h.b16 %v3282
    %v4443 = vunpack.c.l.b16 %v3283
    %v4444 = vunpack.c.h.b16 %v3283
    %v4445 = vunpack.c.l.b16 %v3284
    %v4446 = vunpack.c.l.b16 %v3285
    %v4447 = vunpack.c.h.b16 %v3285
    %v4448 = vunpack.c.l.b16 %v3286
    %v4449 = vunpack.c.h.b16 %v3286
    %v4450 = vunpack.c.l.b16 %v3287
    %v4451 = vunpack.c.h.b16 %v3287
    %v4452 = vunpack.c.l.b16 %v3288
    %v4453 = vunpack.c.l.b16 %v3289
    %v4454 = vunpack.c.h.b16 %v3289
    %v4455 = vunpack.c.l.b16 %v3290
    %v4456 = vunpack.c.h.b16 %v3290
    %v4457 = vunpack.c.l.b16 %v3291
    %v4458 = vunpack.c.h.b16 %v3291
    %v4459 = vunpack.c.l.b16 %v3292
    %v4460 = vunpack.c.l.b16 %v3293
    %v4461 = vunpack.c.h.b16 %v3293
    %v4462 = vunpack.c.l.b16 %v3294
    %v4463 = vunpack.c.h.b16 %v3294
    %v4464 = vunpack.c.l.b16 %v3295
    %v4465 = vunpack.c.h.b16 %v3295
    %v4466 = vunpack.c.l.b16 %v3296
    %v4467 = vunpack.c.l.b16 %v3297
    %v4468 = vunpack.c.h.b16 %v3297
    %v4469 = vunpack.c.l.b16 %v3298
    %v4470 = vunpack.c.h.b16 %v3298
    %v4471 = vunpack.c.l.b16 %v3299
    %v4472 = vunpack.c.h.b16 %v3299
    %v4473 = vunpack.c.l.b16 %v3300
    %v4474 = vunpack.c.l.b16 %v3301
    %v4475 = vunpack.c.h.b16 %v3301
    %v4476 = vunpack.c.l.b16 %v3302
    %v4477 = vunpack.c.h.b16 %v3302
    %v4478 = vunpack.c.l.b16 %v3303
    %v4479 = vunpack.c.h.b16 %v3303
    %v4480 = vunpack.c.l.b16 %v3304
    %v4481 = vunpack.c.l.b16 %v3305
    %v4482 = vunpack.c.h.b16 %v3305
    %v4483 = vunpack.c.l.b16 %v3306
    %v4484 = vunpack.c.h.b16 %v3306
    %v4485 = vunpack.c.l.b16 %v3307
    %v4486 = vunpack.c.h.b16 %v3307
    %v4487 = vunpack.c.l.b16 %v3308
    %v4488 = vunpack.c.l.b16 %v3309
    %v4489 = vunpack.c.h.b16 %v3309
    %v4490 = vunpack.c.l.b16 %v3310
    %v4491 = vunpack.c.h.b16 %v3310
    %v4492 = vunpack.c.l.b16 %v3311
    %v4493 = vunpack.c.h.b16 %v3311
    %v4494 = vunpack.c.l.b16 %v3312
    %v4495 = vunpack.c.l.b16 %v3313
    %v4496 = vunpack.c.h.b16 %v3313
    %v4497 = vunpack.c.l.b16 %v3314
    %v4498 = vunpack.c.h.b16 %v3314
    %v4499 = vunpack.c.l.b16 %v3315
    %v4500 = vunpack.c.h.b16 %v3315
    %v4501 = vunpack.c.l.b16 %v3316
    %v4502 = vunpack.c.l.b16 %v3317
    %v4503 = vunpack.c.h.b16 %v3317
    %v4504 = vunpack.c.l.b16 %v3318
    %v4505 = vunpack.c.h.b16 %v3318
    %v4506 = vunpack.c.l.b16 %v3319
    %v4507 = vunpack.c.h.b16 %v3319
    %v4508 = vunpack.c.l.b16 %v3320
    %v4509 = vunpack.c.l.b16 %v3321
    %v4510 = vunpack.c.h.b16 %v3321
    %v4511 = vunpack.c.l.b16 %v3322
    %v4512 = vunpack.c.h.b16 %v3322
    %v4513 = vunpack.c.l.b16 %v3323
    %v4514 = vunpack.c.h.b16 %v3323
    %v4515 = vunpack.c.l.b16 %v3324
    %v4516 = vunpack.c.l.b16 %v3325
    %v4517 = vunpack.c.h.b16 %v3325
    %v4518 = vunpack.c.l.b16 %v3326
    %v4519 = vunpack.c.h.b16 %v3326
    %v4520 = vunpack.c.l.b16 %v3327
    %v4521 = vunpack.c.h.b16 %v3327
    %v4522 = vunpack.c.l.b16 %v3328
    %v4523 = vunpack.c.l.b16 %v3329
    %v4524 = vunpack.c.h.b16 %v3329
    %v4525 = vunpack.c.l.b16 %v3330
    %v4526 = vunpack.c.h.b16 %v3330
    %v4527 = vunpack.c.l.b16 %v3331
    %v4528 = vunpack.c.h.b16 %v3331
    %v4529 = vunpack.c.l.b16 %v3332
    %v4530 = vunpack.c.l.b16 %v3333
    %v4531 = vunpack.c.h.b16 %v3333
    %v4532 = vunpack.c.l.b16 %v3334
    %v4533 = vunpack.c.h.b16 %v3334
    %v4534 = vunpack.c.l.b16 %v3335
    %v4535 = vunpack.c.h.b16 %v3335
    %v4536 = vunpack.c.l.b16 %v3336
    %v4537 = vunpack.c.l.b16 %v3337
    %v4538 = vunpack.c.h.b16 %v3337
    %v4539 = vunpack.c.l.b16 %v3338
    %v4540 = vunpack.c.h.b16 %v3338
    %v4541 = vunpack.c.l.b16 %v3339
    %v4542 = vunpack.c.h.b16 %v3339
    %v4543 = vunpack.c.l.b16 %v3340
    %v4544 = vunpack.c.l.b16 %v3341
    %v4545 = vunpack.c.h.b16 %v3341
    %v4546 = vunpack.c.l.b16 %v3342
    %v4547 = vunpack.c.h.b16 %v3342
    %v4548 = vunpack.c.l.b16 %v3343
    %v4549 = vunpack.c.h.b16 %v3343
    %v4550 = vunpack.c.l.b16 %v3344
    %v4551 = vunpack.c.l.b16 %v3345
    %v4552 = vunpack.c.h.b16 %v3345
    %v4553 = vunpack.c.l.b16 %v3346
    %v4554 = vunpack.c.h.b16 %v3346
    %v4555 = vunpack.c.l.b16 %v3347
    %v4556 = vunpack.c.h.b16 %v3347
    %v4557 = vunpack.c.l.b16 %v3348
    %v4558 = vunpack.c.l.b16 %v3349
    %v4559 = vunpack.c.h.b16 %v3349
    %v4560 = vunpack.c.l.b16 %v3350
    %v4561 = vunpack.c.h.b16 %v3350
    %v4562 = vunpack.c.l.b16 %v3351
    %v4563 = vunpack.c.h.b16 %v3351
    %v4564 = vunpack.c.l.b16 %v3352
    %v4565 = vunpack.c.l.b16 %v3353
    %v4566 = vunpack.c.h.b16 %v3353
    %v4567 = vunpack.c.l.b16 %v3354
    %v4568 = vunpack.c.h.b16 %v3354
    %v4569 = vunpack.c.l.b16 %v3355
    %v4570 = vunpack.c.h.b16 %v3355
    %v4571 = vunpack.c.l.b16 %v3356
    %v4572 = vunpack.c.l.b16 %v3357
    %v4573 = vunpack.c.h.b16 %v3357
    %v4574 = vunpack.c.l.b16 %v3358
    %v4575 = vunpack.c.h.b16 %v3358
    %v4576 = vunpack.c.l.b16 %v3359
    %v4577 = vunpack.c.h.b16 %v3359
    %v4578 = vunpack.c.l.b16 %v3360
    %v4579 = vunpack.c.l.b16 %v3361
    %v4580 = vunpack.c.h.b16 %v3361
    %v4581 = vunpack.c.l.b16 %v3362
    %v4582 = vunpack.c.h.b16 %v3362
    %v4583 = vunpack.c.l.b16 %v3363
    %v4584 = vunpack.c.h.b16 %v3363
    %v4585 = vunpack.c.l.b16 %v3364
    %v4586 = vunpack.c.l.b16 %v3365
    %v4587 = vunpack.c.h.b16 %v3365
    %v4588 = vunpack.c.l.b16 %v3366
    %v4589 = vunpack.c.h.b16 %v3366
    %v4590 = vunpack.c.l.b16 %v3367
    %v4591 = vunpack.c.h.b16 %v3367
    %v4592 = vunpack.c.l.b16 %v3368
    %v4593 = vunpack.c.l.b16 %v3369
    %v4594 = vunpack.c.h.b16 %v3369
    %v4595 = vunpack.c.l.b16 %v3370
    %v4596 = vunpack.c.h.b16 %v3370
    %v4597 = vunpack.c.l.b16 %v3371
    %v4598 = vunpack.c.h.b16 %v3371
    %v4599 = vunpack.c.l.b16 %v3372
    %v4600 = vunpack.c.l.b16 %v3373
    %v4601 = vunpack.c.h.b16 %v3373
    %v4602 = vunpack.c.l.b16 %v3374
    %v4603 = vunpack.c.h.b16 %v3374
    %v4604 = vunpack.c.l.b16 %v3375
    %v4605 = vunpack.c.h.b16 %v3375
    %v4606 = vunpack.c.l.b16 %v3376
    %v4607 = vunpack.c.l.b16 %v3377
    %v4608 = vunpack.c.h.b16 %v3377
    %v4609 = vunpack.c.l.b16 %v3378
    %v4610 = vunpack.c.h.b16 %v3378
    %v4611 = vunpack.c.l.b16 %v3379
    %v4612 = vunpack.c.h.b16 %v3379
    %v4613 = vunpack.c.l.b16 %v3380
    %v4614 = vunpack.c.l.b16 %v3381
    %v4615 = vunpack.c.h.b16 %v3381
    %v4616 = vunpack.c.l.b16 %v3382
    %v4617 = vunpack.c.h.b16 %v3382
    %v4618 = vunpack.c.l.b16 %v3383
    %v4619 = vunpack.c.h.b16 %v3383
    %v4620 = vunpack.c.l.b16 %v3384
    %v4621 = vunpack.c.l.b16 %v3385
    %v4622 = vunpack.c.h.b16 %v3385
    %v4623 = vunpack.c.l.b16 %v3386
    %v4624 = vunpack.c.h.b16 %v3386
    %v4625 = vunpack.c.l.b16 %v3387
    %v4626 = vunpack.c.h.b16 %v3387
    %v4627 = vunpack.c.l.b16 %v3388
    %v4628 = vunpack.c.l.b16 %v3389
    %v4629 = vunpack.c.h.b16 %v3389
    %v4630 = vunpack.c.l.b16 %v3390
    %v4631 = vunpack.c.h.b16 %v3390
    %v4632 = vunpack.c.l.b16 %v3391
    %v4633 = vunpack.c.h.b16 %v3391
    %v4634 = vunpack.c.l.b16 %v3392
    %v4635 = vunpack.c.l.b16 %v3393
    %v4636 = vunpack.c.h.b16 %v3393
    %v4637 = vunpack.c.l.b16 %v3394
    %v4638 = vunpack.c.h.b16 %v3394
    %v4639 = vunpack.c.l.b16 %v3395
    %v4640 = vunpack.c.h.b16 %v3395
    %v4641 = vunpack.c.l.b16 %v3396
    %v4642 = vunpack.c.l.b16 %v3397
    %v4643 = vunpack.c.h.b16 %v3397
    %v4644 = vunpack.c.l.b16 %v3398
    %v4645 = vunpack.c.h.b16 %v3398
    %v4646 = vunpack.c.l.b16 %v3399
    %v4647 = vunpack.c.h.b16 %v3399
    %v4648 = vunpack.c.l.b16 %v3400
    %v4649 = vunpack.c.l.b16 %v3401
    %v4650 = vunpack.c.h.b16 %v3401
    %v4651 = vunpack.c.l.b16 %v3402
    %v4652 = vunpack.c.h.b16 %v3402
    %v4653 = vunpack.c.l.b16 %v3403
    %v4654 = vunpack.c.h.b16 %v3403
    %v4655 = vunpack.c.l.b16 %v3404
    %v4656 = vunpack.c.l.b16 %v3405
    %v4657 = vunpack.c.h.b16 %v3405
    %v4658 = vunpack.c.l.b16 %v3406
    %v4659 = vunpack.c.h.b16 %v3406
    %v4660 = vunpack.c.l.b16 %v3407
    %v4661 = vunpack.c.h.b16 %v3407
    %v4662 = vunpack.c.l.b16 %v3408
    %v4663 = vunpack.c.l.b16 %v3409
    %v4664 = vunpack.c.h.b16 %v3409
    %v4665 = vunpack.c.l.b16 %v3410
    %v4666 = vunpack.c.h.b16 %v3410
    %v4667 = vunpack.c.l.b16 %v3411
    %v4668 = vunpack.c.h.b16 %v3411
    %v4669 = vunpack.c.l.b16 %v3412
    %v4670 = vunpack.c.l.b16 %v3413
    %v4671 = vunpack.c.h.b16 %v3413
    %v4672 = vunpack.c.l.b16 %v3414
    %v4673 = vunpack.c.h.b16 %v3414
    %v4674 = vunpack.c.l.b16 %v3415
    %v4675 = vunpack.c.h.b16 %v3415
    %v4676 = vunpack.c.l.b16 %v3416
    %v4677 = vunpack.c.l.b16 %v3417
    %v4678 = vunpack.c.h.b16 %v3417
    %v4679 = vunpack.c.l.b16 %v3418
    %v4680 = vunpack.c.h.b16 %v3418
    %v4681 = vunpack.c.l.b16 %v3419
    %v4682 = vunpack.c.h.b16 %v3419
    %v4683 = vunpack.c.l.b16 %v3420
    %v4684 = vunpack.c.l.b16 %v3421
    %v4685 = vunpack.c.h.b16 %v3421
    %v4686 = vunpack.c.l.b16 %v3422
    %v4687 = vunpack.c.h.b16 %v3422
    %v4688 = vunpack.c.l.b16 %v3423
    %v4689 = vunpack.c.h.b16 %v3423
    %v4690 = vunpack.c.l.b16 %v3424
    %v4691 = vunpack.c.l.b16 %v3425
    %v4692 = vunpack.c.h.b16 %v3425
    %v4693 = vunpack.c.l.b16 %v3426
    %v4694 = vunpack.c.h.b16 %v3426
    %v4695 = vunpack.c.l.b16 %v3427
    %v4696 = vunpack.c.h.b16 %v3427
    %v4697 = vunpack.c.l.b16 %v3428
    %v4698 = vpack.c.b16 %v3921, %v3914
    %v4699 = vpack.c.b16 %v3922, %v3915
    %v4700 = vpack.c.b16 %v3923, %v3916
    %v4701 = vpack.c.b16 %v3924, %v3917
    %v4702 = vpack.c.b16 %v3925, %v3918
    %v4703 = vpack.c.b16 %v3926, %v3919
    %v4704 = vpack.c.b16 %v3927, %v3920
    %v4705 = vpack.c.b16 %v3935, %v3928
    %v4706 = vpack.c.b16 %v3936, %v3929
    %v4707 = vpack.c.b16 %v3937, %v3930
    %v4708 = vpack.c.b16 %v3938, %v3931
    %v4709 = vpack.c.b16 %v3939, %v3932
    %v4710 = vpack.c.b16 %v3940, %v3933
    %v4711 = vpack.c.b16 %v3941, %v3934
    %v4712 = vpack.c.b16 %v3949, %v3942
    %v4713 = vpack.c.b16 %v3950, %v3943
    %v4714 = vpack.c.b16 %v3951, %v3944
    %v4715 = vpack.c.b16 %v3952, %v3945
    %v4716 = vpack.c.b16 %v3953, %v3946
    %v4717 = vpack.c.b16 %v3954, %v3947
    %v4718 = vpack.c.b16 %v3955, %v3948
    %v4719 = vpack.c.b16 %v3963, %v3956
    %v4720 = vpack.c.b16 %v3964, %v3957
    %v4721 = vpack.c.b16 %v3965, %v3958
    %v4722 = vpack.c.b16 %v3966, %v3959
    %v4723 = vpack.c.b16 %v3967, %v3960
    %v4724 = vpack.c.b16 %v3968, %v3961
    %v4725 = vpack.c.b16 %v3969, %v3962
    %v4726 = vpack.c.b16 %v3977, %v3970
    %v4727 = vpack.c.b16 %v3978, %v3971
    %v4728 = vpack.c.b16 %v3979, %v3972
    %v4729 = vpack.c.b16 %v3980, %v3973
    %v4730 = vpack.c.b16 %v3981, %v3974
    %v4731 = vpack.c.b16 %v3982, %v3975
    %v4732 = vpack.c.b16 %v3983, %v3976
    %v4733 = vpack.c.b16 %v3991, %v3984
    %v4734 = vpack.c.b16 %v3992, %v3985
    %v4735 = vpack.c.b16 %v3993, %v3986
    %v4736 = vpack.c.b16 %v3994, %v3987
    %v4737 = vpack.c.b16 %v3995, %v3988
    %v4738 = vpack.c.b16 %v3996, %v3989
    %v4739 = vpack.c.b16 %v3997, %v3990
    %v4740 = vpack.c.b16 %v4005, %v3998
    %v4741 = vpack.c.b16 %v4006, %v3999
    %v4742 = vpack.c.b16 %v4007, %v4000
    %v4743 = vpack.c.b16 %v4008, %v4001
    %v4744 = vpack.c.b16 %v4009, %v4002
    %v4745 = vpack.c.b16 %v4010, %v4003
    %v4746 = vpack.c.b16 %v4011, %v4004
    %v4747 = vpack.c.b16 %v4019, %v4012
    %v4748 = vpack.c.b16 %v4020, %v4013
    %v4749 = vpack.c.b16 %v4021, %v4014
    %v4750 = vpack.c.b16 %v4022, %v4015
    %v4751 = vpack.c.b16 %v4023, %v4016
    %v4752 = vpack.c.b16 %v4024, %v4017
    %v4753 = vpack.c.b16 %v4025, %v4018
    %v4754 = vpack.c.b16 %v4033, %v4026
    %v4755 = vpack.c.b16 %v4034, %v4027
    %v4756 = vpack.c.b16 %v4035, %v4028
    %v4757 = vpack.c.b16 %v4036, %v4029
    %v4758 = vpack.c.b16 %v4037, %v4030
    %v4759 = vpack.c.b16 %v4038, %v4031
    %v4760 = vpack.c.b16 %v4039, %v4032
    %v4761 = vpack.c.b16 %v4047, %v4040
    %v4762 = vpack.c.b16 %v4048, %v4041
    %v4763 = vpack.c.b16 %v4049, %v4042
    %v4764 = vpack.c.b16 %v4050, %v4043
    %v4765 = vpack.c.b16 %v4051, %v4044
    %v4766 = vpack.c.b16 %v4052, %v4045
    %v4767 = vpack.c.b16 %v4053, %v4046
    %v4768 = vpack.c.b16 %v4061, %v4054
    %v4769 = vpack.c.b16 %v4062, %v4055
    %v4770 = vpack.c.b16 %v4063, %v4056
    %v4771 = vpack.c.b16 %v4064, %v4057
    %v4772 = vpack.c.b16 %v4065, %v4058
    %v4773 = vpack.c.b16 %v4066, %v4059
    %v4774 = vpack.c.b16 %v4067, %v4060
    %v4775 = vpack.c.b16 %v4075, %v4068
    %v4776 = vpack.c.b16 %v4076, %v4069
    %v4777 = vpack.c.b16 %v4077, %v4070
    %v4778 = vpack.c.b16 %v4078, %v4071
    %v4779 = vpack.c.b16 %v4079, %v4072
    %v4780 = vpack.c.b16 %v4080, %v4073
    %v4781 = vpack.c.b16 %v4081, %v4074
    %v4782 = vpack.c.b16 %v4089, %v4082
    %v4783 = vpack.c.b16 %v4090, %v4083
    %v4784 = vpack.c.b16 %v4091, %v4084
    %v4785 = vpack.c.b16 %v4092, %v4085
    %v4786 = vpack.c.b16 %v4093, %v4086
    %v4787 = vpack.c.b16 %v4094, %v4087
    %v4788 = vpack.c.b16 %v4095, %v4088
    %v4789 = vpack.c.b16 %v4103, %v4096
    %v4790 = vpack.c.b16 %v4104, %v4097
    %v4791 = vpack.c.b16 %v4105, %v4098
    %v4792 = vpack.c.b16 %v4106, %v4099
    %v4793 = vpack.c.b16 %v4107, %v4100
    %v4794 = vpack.c.b16 %v4108, %v4101
    %v4795 = vpack.c.b16 %v4109, %v4102
    %v4796 = vpack.c.b16 %v4117, %v4110
    %v4797 = vpack.c.b16 %v4118, %v4111
    %v4798 = vpack.c.b16 %v4119, %v4112
    %v4799 = vpack.c.b16 %v4120, %v4113
    %v4800 = vpack.c.b16 %v4121, %v4114
    %v4801 = vpack.c.b16 %v4122, %v4115
    %v4802 = vpack.c.b16 %v4123, %v4116
    %v4803 = vpack.c.b16 %v4131, %v4124
    %v4804 = vpack.c.b16 %v4132, %v4125
    %v4805 = vpack.c.b16 %v4133, %v4126
    %v4806 = vpack.c.b16 %v4134, %v4127
    %v4807 = vpack.c.b16 %v4135, %v4128
    %v4808 = vpack.c.b16 %v4136, %v4129
    %v4809 = vpack.c.b16 %v4137, %v4130
    %v4810 = vpack.c.b16 %v4145, %v4138
    %v4811 = vpack.c.b16 %v4146, %v4139
    %v4812 = vpack.c.b16 %v4147, %v4140
    %v4813 = vpack.c.b16 %v4148, %v4141
    %v4814 = vpack.c.b16 %v4149, %v4142
    %v4815 = vpack.c.b16 %v4150, %v4143
    %v4816 = vpack.c.b16 %v4151, %v4144
    %v4817 = vpack.c.b16 %v4159, %v4152
    %v4818 = vpack.c.b16 %v4160, %v4153
    %v4819 = vpack.c.b16 %v4161, %v4154
    %v4820 = vpack.c.b16 %v4162, %v4155
    %v4821 = vpack.c.b16 %v4163, %v4156
    %v4822 = vpack.c.b16 %v4164, %v4157
    %v4823 = vpack.c.b16 %v4165, %v4158
    %v4824 = vpack.c.b16 %v4173, %v4166
    %v4825 = vpack.c.b16 %v4174, %v4167
    %v4826 = vpack.c.b16 %v4175, %v4168
    %v4827 = vpack.c.b16 %v4176, %v4169
    %v4828 = vpack.c.b16 %v4177, %v4170
    %v4829 = vpack.c.b16 %v4178, %v4171
    %v4830 = vpack.c.b16 %v4179, %v4172
    %v4831 = vpack.c.b16 %v4187, %v4180
    %v4832 = vpack.c.b16 %v4188, %v4181
    %v4833 = vpack.c.b16 %v4189, %v4182
    %v4834 = vpack.c.b16 %v4190, %v4183
    %v4835 = vpack.c.b16 %v4191, %v4184
    %v4836 = vpack.c.b16 %v4192, %v4185
    %v4837 = vpack.c.b16 %v4193, %v4186
    %v4838 = vpack.c.b16 %v4201, %v4194
    %v4839 = vpack.c.b16 %v4202, %v4195
    %v4840 = vpack.c.b16 %v4203, %v4196
    %v4841 = vpack.c.b16 %v4204, %v4197
    %v4842 = vpack.c.b16 %v4205, %v4198
    %v4843 = vpack.c.b16 %v4206, %v4199
    %v4844 = vpack.c.b16 %v4207, %v4200
    %v4845 = vpack.c.b16 %v4215, %v4208
    %v4846 = vpack.c.b16 %v4216, %v4209
    %v4847 = vpack.c.b16 %v4217, %v4210
    %v4848 = vpack.c.b16 %v4218, %v4211
    %v4849 = vpack.c.b16 %v4219, %v4212
    %v4850 = vpack.c.b16 %v4220, %v4213
    %v4851 = vpack.c.b16 %v4221, %v4214
    %v4852 = vpack.c.b16 %v4229, %v4222
    %v4853 = vpack.c.b16 %v4230, %v4223
    %v4854 = vpack.c.b16 %v4231, %v4224
    %v4855 = vpack.c.b16 %v4232, %v4225
    %v4856 = vpack.c.b16 %v4233, %v4226
    %v4857 = vpack.c.b16 %v4234, %v4227
    %v4858 = vpack.c.b16 %v4235, %v4228
    %v4859 = vpack.c.b16 %v4243, %v4236
    %v4860 = vpack.c.b16 %v4244, %v4237
    %v4861 = vpack.c.b16 %v4245, %v4238
    %v4862 = vpack.c.b16 %v4246, %v4239
    %v4863 = vpack.c.b16 %v4247, %v4240
    %v4864 = vpack.c.b16 %v4248, %v4241
    %v4865 = vpack.c.b16 %v4249, %v4242
    %v4866 = vpack.c.b16 %v4257, %v4250
    %v4867 = vpack.c.b16 %v4258, %v4251
    %v4868 = vpack.c.b16 %v4259, %v4252
    %v4869 = vpack.c.b16 %v4260, %v4253
    %v4870 = vpack.c.b16 %v4261, %v4254
    %v4871 = vpack.c.b16 %v4262, %v4255
    %v4872 = vpack.c.b16 %v4263, %v4256
    %v4873 = vpack.c.b16 %v4271, %v4264
    %v4874 = vpack.c.b16 %v4272, %v4265
    %v4875 = vpack.c.b16 %v4273, %v4266
    %v4876 = vpack.c.b16 %v4274, %v4267
    %v4877 = vpack.c.b16 %v4275, %v4268
    %v4878 = vpack.c.b16 %v4276, %v4269
    %v4879 = vpack.c.b16 %v4277, %v4270
    %v4880 = vpack.c.b16 %v4285, %v4278
    %v4881 = vpack.c.b16 %v4286, %v4279
    %v4882 = vpack.c.b16 %v4287, %v4280
    %v4883 = vpack.c.b16 %v4288, %v4281
    %v4884 = vpack.c.b16 %v4289, %v4282
    %v4885 = vpack.c.b16 %v4290, %v4283
    %v4886 = vpack.c.b16 %v4291, %v4284
    %v4887 = vpack.c.b16 %v4299, %v4292
    %v4888 = vpack.c.b16 %v4300, %v4293
    %v4889 = vpack.c.b16 %v4301, %v4294
    %v4890 = vpack.c.b16 %v4302, %v4295
    %v4891 = vpack.c.b16 %v4303, %v4296
    %v4892 = vpack.c.b16 %v4304, %v4297
    %v4893 = vpack.c.b16 %v4305, %v4298
    %v4894 = vpack.c.b16 %v4313, %v4306
    %v4895 = vpack.c.b16 %v4314, %v4307
    %v4896 = vpack.c.b16 %v4315, %v4308
    %v4897 = vpack.c.b16 %v4316, %v4309
    %v4898 = vpack.c.b16 %v4317, %v4310
    %v4899 = vpack.c.b16 %v4318, %v4311
    %v4900 = vpack.c.b16 %v4319, %v4312
    %v4901 = vpack.c.b16 %v4327, %v4320
    %v4902 = vpack.c.b16 %v4328, %v4321
    %v4903 = vpack.c.b16 %v4329, %v4322
    %v4904 = vpack.c.b16 %v4330, %v4323
    %v4905 = vpack.c.b16 %v4331, %v4324
    %v4906 = vpack.c.b16 %v4332, %v4325
    %v4907 = vpack.c.b16 %v4333, %v4326
    %v4908 = vpack.c.b16 %v4341, %v4334
    %v4909 = vpack.c.b16 %v4342, %v4335
    %v4910 = vpack.c.b16 %v4343, %v4336
    %v4911 = vpack.c.b16 %v4344, %v4337
    %v4912 = vpack.c.b16 %v4345, %v4338
    %v4913 = vpack.c.b16 %v4346, %v4339
    %v4914 = vpack.c.b16 %v4347, %v4340
    %v4915 = vpack.c.b16 %v4355, %v4348
    %v4916 = vpack.c.b16 %v4356, %v4349
    %v4917 = vpack.c.b16 %v4357, %v4350
    %v4918 = vpack.c.b16 %v4358, %v4351
    %v4919 = vpack.c.b16 %v4359, %v4352
    %v4920 = vpack.c.b16 %v4360, %v4353
    %v4921 = vpack.c.b16 %v4361, %v4354
    %v4922 = vpack.c.b16 %v4369, %v4362
    %v4923 = vpack.c.b16 %v4370, %v4363
    %v4924 = vpack.c.b16 %v4371, %v4364
    %v4925 = vpack.c.b16 %v4372, %v4365
    %v4926 = vpack.c.b16 %v4373, %v4366
    %v4927 = vpack.c.b16 %v4374, %v4367
    %v4928 = vpack.c.b16 %v4375, %v4368
    %v4929 = vpack.c.b16 %v4383, %v4376
    %v4930 = vpack.c.b16 %v4384, %v4377
    %v4931 = vpack.c.b16 %v4385, %v4378
    %v4932 = vpack.c.b16 %v4386, %v4379
    %v4933 = vpack.c.b16 %v4387, %v4380
    %v4934 = vpack.c.b16 %v4388, %v4381
    %v4935 = vpack.c.b16 %v4389, %v4382
    %v4936 = vpack.c.b16 %v4397, %v4390
    %v4937 = vpack.c.b16 %v4398, %v4391
    %v4938 = vpack.c.b16 %v4399, %v4392
    %v4939 = vpack.c.b16 %v4400, %v4393
    %v4940 = vpack.c.b16 %v4401, %v4394
    %v4941 = vpack.c.b16 %v4402, %v4395
    %v4942 = vpack.c.b16 %v4403, %v4396
    %v4943 = vpack.c.b16 %v4411, %v4404
    %v4944 = vpack.c.b16 %v4412, %v4405
    %v4945 = vpack.c.b16 %v4413, %v4406
    %v4946 = vpack.c.b16 %v4414, %v4407
    %v4947 = vpack.c.b16 %v4415, %v4408
    %v4948 = vpack.c.b16 %v4416, %v4409
    %v4949 = vpack.c.b16 %v4417, %v4410
    %v4950 = vpack.c.b16 %v4425, %v4418
    %v4951 = vpack.c.b16 %v4426, %v4419
    %v4952 = vpack.c.b16 %v4427, %v4420
    %v4953 = vpack.c.b16 %v4428, %v4421
    %v4954 = vpack.c.b16 %v4429, %v4422
    %v4955 = vpack.c.b16 %v4430, %v4423
    %v4956 = vpack.c.b16 %v4431, %v4424
    %v4957 = vpack.c.b16 %v4439, %v4432
    %v4958 = vpack.c.b16 %v4440, %v4433
    %v4959 = vpack.c.b16 %v4441, %v4434
    %v4960 = vpack.c.b16 %v4442, %v4435
    %v4961 = vpack.c.b16 %v4443, %v4436
    %v4962 = vpack.c.b16 %v4444, %v4437
    %v4963 = vpack.c.b16 %v4445, %v4438
    %v4964 = vpack.c.b16 %v4453, %v4446
    %v4965 = vpack.c.b16 %v4454, %v4447
    %v4966 = vpack.c.b16 %v4455, %v4448
    %v4967 = vpack.c.b16 %v4456, %v4449
    %v4968 = vpack.c.b16 %v4457, %v4450
    %v4969 = vpack.c.b16 %v4458, %v4451
    %v4970 = vpack.c.b16 %v4459, %v4452
    %v4971 = vpack.c.b16 %v4467, %v4460
    %v4972 = vpack.c.b16 %v4468, %v4461
    %v4973 = vpack.c.b16 %v4469, %v4462
    %v4974 = vpack.c.b16 %v4470, %v4463
    %v4975 = vpack.c.b16 %v4471, %v4464
    %v4976 = vpack.c.b16 %v4472, %v4465
    %v4977 = vpack.c.b16 %v4473, %v4466
    %v4978 = vpack.c.b16 %v4481, %v4474
    %v4979 = vpack.c.b16 %v4482, %v4475
    %v4980 = vpack.c.b16 %v4483, %v4476
    %v4981 = vpack.c.b16 %v4484, %v4477
    %v4982 = vpack.c.b16 %v4485, %v4478
    %v4983 = vpack.c.b16 %v4486, %v4479
    %v4984 = vpack.c.b16 %v4487, %v4480
    %v4985 = vpack.c.b16 %v4495, %v4488
    %v4986 = vpack.c.b16 %v4496, %v4489
    %v4987 = vpack.c.b16 %v4497, %v4490
    %v4988 = vpack.c.b16 %v4498, %v4491
    %v4989 = vpack.c.b16 %v4499, %v4492
    %v4990 = vpack.c.b16 %v4500, %v4493
    %v4991 = vpack.c.b16 %v4501, %v4494
    %v4992 = vpack.c.b16 %v4509, %v4502
    %v4993 = vpack.c.b16 %v4510, %v4503
    %v4994 = vpack.c.b16 %v4511, %v4504
    %v4995 = vpack.c.b16 %v4512, %v4505
    %v4996 = vpack.c.b16 %v4513, %v4506
    %v4997 = vpack.c.b16 %v4514, %v4507
    %v4998 = vpack.c.b16 %v4515, %v4508
    %v4999 = vpack.c.b16 %v4523, %v4516
    %v5000 = vpack.c.b16 %v4524, %v4517
    %v5001 = vpack.c.b16 %v4525, %v4518
    %v5002 = vpack.c.b16 %v4526, %v4519
    %v5003 = vpack.c.b16 %v4527, %v4520
    %v5004 = vpack.c.b16 %v4528, %v4521
    %v5005 = vpack.c.b16 %v4529, %v4522
    %v5006 = vpack.c.b16 %v4537, %v4530
    %v5007 = vpack.c.b16 %v4538, %v4531
    %v5008 = vpack.c.b16 %v4539, %v4532
    %v5009 = vpack.c.b16 %v4540, %v4533
    %v5010 = vpack.c.b16 %v4541, %v4534
    %v5011 = vpack.c.b16 %v4542, %v4535
    %v5012 = vpack.c.b16 %v4543, %v4536
    %v5013 = vpack.c.b16 %v4551, %v4544
    %v5014 = vpack.c.b16 %v4552, %v4545
    %v5015 = vpack.c.b16 %v4553, %v4546
    %v5016 = vpack.c.b16 %v4554, %v4547
    %v5017 = vpack.c.b16 %v4555, %v4548
    %v5018 = vpack.c.b16 %v4556, %v4549
    %v5019 = vpack.c.b16 %v4557, %v4550
    %v5020 = vpack.c.b16 %v4565, %v4558
    %v5021 = vpack.c.b16 %v4566, %v4559
    %v5022 = vpack.c.b16 %v4567, %v4560
    %v5023 = vpack.c.b16 %v4568, %v4561
    %v5024 = vpack.c.b16 %v4569, %v4562
    %v5025 = vpack.c.b16 %v4570, %v4563
    %v5026 = vpack.c.b16 %v4571, %v4564
    %v5027 = vpack.c.b16 %v4579, %v4572
    %v5028 = vpack.c.b16 %v4580, %v4573
    %v5029 = vpack.c.b16 %v4581, %v4574
    %v5030 = vpack.c.b16 %v4582, %v4575
    %v5031 = vpack.c.b16 %v4583, %v4576
    %v5032 = vpack.c.b16 %v4584, %v4577
    %v5033 = vpack.c.b16 %v4585, %v4578
    %v5034 = vpack.c.b16 %v4593, %v4586
    %v5035 = vpack.c.b16 %v4594, %v4587
    %v5036 = vpack.c.b16 %v4595, %v4588
    %v5037 = vpack.c.b16 %v4596, %v4589
    %v5038 = vpack.c.b16 %v4597, %v4590
    %v5039 = vpack.c.b16 %v4598, %v4591
    %v5040 = vpack.c.b16 %v4599, %v4592
    %v5041 = vpack.c.b16 %v4607, %v4600
    %v5042 = vpack.c.b16 %v4608, %v4601
    %v5043 = vpack.c.b16 %v4609, %v4602
    %v5044 = vpack.c.b16 %v4610, %v4603
    %v5045 = vpack.c.b16 %v4611, %v4604
    %v5046 = vpack.c.b16 %v4612, %v4605
    %v5047 = vpack.c.b16 %v4613, %v4606
    %v5048 = vpack.c.b16 %v4621, %v4614
    %v5049 = vpack.c.b16 %v4622, %v4615
    %v5050 = vpack.c.b16 %v4623, %v4616
    %v5051 = vpack.c.b16 %v4624, %v4617
    %v5052 = vpack.c.b16 %v4625, %v4618
    %v5053 = vpack.c.b16 %v4626, %v4619
    %v5054 = vpack.c.b16 %v4627, %v4620
    %v5055 = vpack.c.b16 %v4635, %v4628
    %v5056 = vpack.c.b16 %v4636, %v4629
    %v5057 = vpack.c.b16 %v4637, %v4630
    %v5058 = vpack.c.b16 %v4638, %v4631
    %v5059 = vpack.c.b16 %v4639, %v4632
    %v5060 = vpack.c.b16 %v4640, %v4633
    %v5061 = vpack.c.b16 %v4641, %v4634
    %v5062 = vpack.c.b16 %v4649, %v4642
    %v5063 = vpack.c.b16 %v4650, %v4643
    %v5064 = vpack.c.b16 %v4651, %v4644
    %v5065 = vpack.c.b16 %v4652, %v4645
    %v5066 = vpack.c.b16 %v4653, %v4646
    %v5067 = vpack.c.b16 %v4654, %v4647
    %v5068 = vpack.c.b16 %v4655, %v4648
    %v5069 = vpack.c.b16 %v4663, %v4656
    %v5070 = vpack.c.b16 %v4664, %v4657
    %v5071 = vpack.c.b16 %v4665, %v4658
    %v5072 = vpack.c.b16 %v4666, %v4659
    %v5073 = vpack.c.b16 %v4667, %v4660
    %v5074 = vpack.c.b16 %v4668, %v4661
    %v5075 = vpack.c.b16 %v4669, %v4662
    %v5076 = vpack.c.b16 %v4677, %v4670
    %v5077 = vpack.c.b16 %v4678, %v4671
    %v5078 = vpack.c.b16 %v4679, %v4672
    %v5079 = vpack.c.b16 %v4680, %v4673
    %v5080 = vpack.c.b16 %v4681, %v4674
    %v5081 = vpack.c.b16 %v4682, %v4675
    %v5082 = vpack.c.b16 %v4683, %v4676
    %v5083 = vpack.c.b16 %v4691, %v4684
    %v5084 = vpack.c.b16 %v4692, %v4685
    %v5085 = vpack.c.b16 %v4693, %v4686
    %v5086 = vpack.c.b16 %v4694, %v4687
    %v5087 = vpack.c.b16 %v4695, %v4688
    %v5088 = vpack.c.b16 %v4696, %v4689
    %v5089 = vpack.c.b16 %v4697, %v4690
    %5482 = vmatprep.subr.bf16.mxu0 %v4699
    %5483 = vmatpush1.bf16.msra.mxu0 %v4698
    %5484 = vmatprep.subr.bf16.mxu0 %v4706
    %5485 = vmatpush1.bf16.msra.mxu0 %v4705
    %5486 = vmatprep.subr.bf16.mxu0 %v4713
    %5487 = vmatpush1.bf16.msra.mxu0 %v4712
    %5488 = vmatprep.subr.bf16.mxu0 %v4720
    %5489 = vmatpush1.bf16.msra.mxu0 %v4719
    %5490 = vmatprep.subr.bf16.mxu0 %v4727
    %5491 = vmatpush1.bf16.msra.mxu0 %v4726
    %5492 = vmatprep.subr.bf16.mxu0 %v4734
    %5493 = vmatpush1.bf16.msra.mxu0 %v4733
    %5494 = vmatprep.subr.bf16.mxu0 %v4741
    %5495 = vmatpush1.bf16.msra.mxu0 %v4740
    %5496 = vmatprep.subr.bf16.mxu0 %v4748
    %5497 = vmatpush1.bf16.msra.mxu0 %v4747
    %5498 = vmatprep.subr.bf16.mxu0 %v4755
    %5499 = vmatpush1.bf16.msra.mxu0 %v4754
    %5500 = vmatprep.subr.bf16.mxu0 %v4762
    %5501 = vmatpush1.bf16.msra.mxu0 %v4761
    %5502 = vmatprep.subr.bf16.mxu0 %v4769
    %5503 = vmatpush1.bf16.msra.mxu0 %v4768
    %5504 = vmatprep.subr.bf16.mxu0 %v4776
    %5505 = vmatpush1.bf16.msra.mxu0 %v4775
    %5506 = vmatprep.subr.bf16.mxu0 %v4783
    %5507 = vmatpush1.bf16.msra.mxu0 %v4782
    %5508 = vmatprep.subr.bf16.mxu0 %v4790
    %5509 = vmatpush1.bf16.msra.mxu0 %v4789
    %5510 = vmatprep.subr.bf16.mxu0 %v4797
    %5511 = vmatpush1.bf16.msra.mxu0 %v4796
    %5512 = vmatprep.subr.bf16.mxu0 %v4804
    %5513 = vmatpush1.bf16.msra.mxu0 %v4803
    %5514 = vmatprep.mubr.bf16.mxu0 %v2975
    %5515 = vmatmul.mubr.bf16.gmra.mrb[0].mxu0 %v2974
    %v5516 = vpop.f32.mrb[0].mxu0
    %v5517 = vadd.f32 %v3434, %v5516
    %v5518 = vpop.f32.mrb[0].mxu0
    %v5519 = vadd.f32 %v3438, %v5518
    %v5520 = vpop.f32.mrb[0].mxu0
    %v5521 = vpop.f32.mrb[0].mxu0
    %5522 = vdwg.mxu0
    %5523 = vmatprep.subr.bf16.mxu0 %v4811
    %5524 = vmatpush1.bf16.msra.mxu0 %v4810
    %5525 = vmatprep.subr.bf16.mxu0 %v4818
    %5526 = vmatpush1.bf16.msra.mxu0 %v4817
    %5527 = vmatprep.subr.bf16.mxu0 %v4825
    %5528 = vmatpush1.bf16.msra.mxu0 %v4824
    %5529 = vmatprep.subr.bf16.mxu0 %v4832
    %5530 = vmatpush1.bf16.msra.mxu0 %v4831
    %5531 = vmatprep.subr.bf16.mxu0 %v4839
    %5532 = vmatpush1.bf16.msra.mxu0 %v4838
    %5533 = vmatprep.subr.bf16.mxu0 %v4846
    %5534 = vmatpush1.bf16.msra.mxu0 %v4845
    %5535 = vmatprep.subr.bf16.mxu0 %v4853
    %5536 = vmatpush1.bf16.msra.mxu0 %v4852
    %5537 = vmatprep.subr.bf16.mxu0 %v4860
    %5538 = vmatpush1.bf16.msra.mxu0 %v4859
    %5539 = vmatprep.subr.bf16.mxu0 %v4867
    %5540 = vmatpush1.bf16.msra.mxu0 %v4866
    %5541 = vmatprep.subr.bf16.mxu0 %v4874
    %5542 = vmatpush1.bf16.msra.mxu0 %v4873
    %5543 = vmatprep.subr.bf16.mxu0 %v4881
    %5544 = vmatpush1.bf16.msra.mxu0 %v4880
    %5545 = vmatprep.subr.bf16.mxu0 %v4888
    %5546 = vmatpush1.bf16.msra.mxu0 %v4887
    %5547 = vmatprep.subr.bf16.mxu0 %v4895
    %5548 = vmatpush1.bf16.msra.mxu0 %v4894
    %5549 = vmatprep.subr.bf16.mxu0 %v4902
    %5550 = vmatpush1.bf16.msra.mxu0 %v4901
    %5551 = vmatprep.subr.bf16.mxu0 %v4909
    %5552 = vmatpush1.bf16.msra.mxu0 %v4908
    %5553 = vmatprep.subr.bf16.mxu0 %v4916
    %5554 = vmatpush1.bf16.msra.mxu0 %v4915
    %5555 = vmatprep.mubr.bf16.mxu0 %v2977
    %5556 = vmatmul.mubr.bf16.gmra.mrb[0].mxu0 %v2976
    %v5557 = vpop.f32.mrb[0].mxu0
    %v5558 = vadd.f32 %v5517, %v5557
    %v5559 = vpop.f32.mrb[0].mxu0
    %v5560 = vadd.f32 %v5519, %v5559
    %v5561 = vpop.f32.mrb[0].mxu0
    %v5562 = vpop.f32.mrb[0].mxu0
    %5563 = vdwg.mxu0
    %5564 = vmatprep.subr.bf16.mxu0 %v4923
    %5565 = vmatpush1.bf16.msra.mxu0 %v4922
    %5566 = vmatprep.subr.bf16.mxu0 %v4930
    %5567 = vmatpush1.bf16.msra.mxu0 %v4929
    %5568 = vmatprep.subr.bf16.mxu0 %v4937
    %5569 = vmatpush1.bf16.msra.mxu0 %v4936
    %5570 = vmatprep.subr.bf16.mxu0 %v4944
    %5571 = vmatpush1.bf16.msra.mxu0 %v4943
    %5572 = vmatprep.subr.bf16.mxu0 %v4951
    %5573 = vmatpush1.bf16.msra.mxu0 %v4950
    %5574 = vmatprep.subr.bf16.mxu0 %v4958
    %5575 = vmatpush1.bf16.msra.mxu0 %v4957
    %5576 = vmatprep.subr.bf16.mxu0 %v4965
    %5577 = vmatpush1.bf16.msra.mxu0 %v4964
    %5578 = vmatprep.subr.bf16.mxu0 %v4972
    %5579 = vmatpush1.bf16.msra.mxu0 %v4971
    %5580 = vmatprep.subr.bf16.mxu0 %v4979
    %5581 = vmatpush1.bf16.msra.mxu0 %v4978
    %5582 = vmatprep.subr.bf16.mxu0 %v4986
    %5583 = vmatpush1.bf16.msra.mxu0 %v4985
    %5584 = vmatprep.subr.bf16.mxu0 %v4993
    %5585 = vmatpush1.bf16.msra.mxu0 %v4992
    %5586 = vmatprep.subr.bf16.mxu0 %v5000
    %5587 = vmatpush1.bf16.msra.mxu0 %v4999
    %5588 = vmatprep.subr.bf16.mxu0 %v5007
    %5589 = vmatpush1.bf16.msra.mxu0 %v5006
    %5590 = vmatprep.subr.bf16.mxu0 %v5014
    %5591 = vmatpush1.bf16.msra.mxu0 %v5013
    %5592 = vmatprep.subr.bf16.mxu0 %v5021
    %5593 = vmatpush1.bf16.msra.mxu0 %v5020
    %5594 = vmatprep.subr.bf16.mxu0 %v5028
    %5595 = vmatpush1.bf16.msra.mxu0 %v5027
    %5596 = vmatprep.mubr.bf16.mxu0 %v2979
    %5597 = vmatmul.mubr.bf16.gmra.mrb[0].mxu0 %v2978
    %v5598 = vpop.f32.mrb[0].mxu0
    %v5599 = vadd.f32 %v5558, %v5598
    %v5600 = vpop.f32.mrb[0].mxu0
    %v5601 = vadd.f32 %v5560, %v5600
    %v5602 = vpop.f32.mrb[0].mxu0
    %v5603 = vpop.f32.mrb[0].mxu0
    %5604 = vdwg.mxu0
    %5605 = vmatprep.subr.bf16.mxu0 %v5035
    %5606 = vmatpush1.bf16.msra.mxu0 %v5034
    %5607 = vmatprep.subr.bf16.mxu0 %v5042
    %5608 = vmatpush1.bf16.msra.mxu0 %v5041
    %5609 = vmatprep.subr.bf16.mxu0 %v5049
    %5610 = vmatpush1.bf16.msra.mxu0 %v5048
    %5611 = vmatprep.subr.bf16.mxu0 %v5056
    %5612 = vmatpush1.bf16.msra.mxu0 %v5055
    %5613 = vmatprep.subr.bf16.mxu0 %v5063
    %5614 = vmatpush1.bf16.msra.mxu0 %v5062
    %5615 = vmatprep.subr.bf16.mxu0 %v5070
    %5616 = vmatpush1.bf16.msra.mxu0 %v5069
    %5617 = vmatprep.subr.bf16.mxu0 %v5077
    %5618 = vmatpush1.bf16.msra.mxu0 %v5076
    %5619 = vmatprep.subr.bf16.mxu0 %v5084
    %5620 = vmatpush1.bf16.msra.mxu0 %v5083
    %5621 = vmatprep.subr.bf16.mxu0 0
    %5622 = vmatpush1.bf16.msra.mxu0 0
    %5623 = vmatprep.subr.bf16.mxu0 0
    %5624 = vmatpush1.bf16.msra.mxu0 0
    %5625 = vmatprep.subr.bf16.mxu0 0
    %5626 = vmatpush1.bf16.msra.mxu0 0
    %5627 = vmatprep.subr.bf16.mxu0 0
    %5628 = vmatpush1.bf16.msra.mxu0 0
    %5629 = vmatprep.subr.bf16.mxu0 0
    %5630 = vmatpush1.bf16.msra.mxu0 0
    %5631 = vmatprep.subr.bf16.mxu0 0
    %5632 = vmatpush1.bf16.msra.mxu0 0
    %5633 = vmatprep.subr.bf16.mxu0 0
    %5634 = vmatpush1.bf16.msra.mxu0 0
    %5635 = vmatprep.subr.bf16.mxu0 0
    %5636 = vmatpush1.bf16.msra.mxu0 0
    %5637 = vmatprep.mubr.bf16.mxu0 0
    %5638 = vmatmul.mubr.bf16.gmra.mrb[0].mxu0 %v2980
    %v5639 = vpop.f32.mrb[0].mxu0
    %v5640 = vadd.f32 %v5599, %v5639
    %v5641 = vpop.f32.mrb[0].mxu0
    %v5642 = vadd.f32 %v5601, %v5641
    %v5643 = vpop.f32.mrb[0].mxu0
    %v5644 = vpop.f32.mrb[0].mxu0
    %5645 = vdwg.mxu0
    %5646 = vmatprep.subr.bf16.mxu0 %v4701
    %5647 = vmatpush1.bf16.msra.mxu0 %v4700
    %5648 = vmatprep.subr.bf16.mxu0 %v4708
    %5649 = vmatpush1.bf16.msra.mxu0 %v4707
    %5650 = vmatprep.subr.bf16.mxu0 %v4715
    %5651 = vmatpush1.bf16.msra.mxu0 %v4714
    %5652 = vmatprep.subr.bf16.mxu0 %v4722
    %5653 = vmatpush1.bf16.msra.mxu0 %v4721
    %5654 = vmatprep.subr.bf16.mxu0 %v4729
    %5655 = vmatpush1.bf16.msra.mxu0 %v4728
    %5656 = vmatprep.subr.bf16.mxu0 %v4736
    %5657 = vmatpush1.bf16.msra.mxu0 %v4735
    %5658 = vmatprep.subr.bf16.mxu0 %v4743
    %5659 = vmatpush1.bf16.msra.mxu0 %v4742
    %5660 = vmatprep.subr.bf16.mxu0 %v4750
    %5661 = vmatpush1.bf16.msra.mxu0 %v4749
    %5662 = vmatprep.subr.bf16.mxu0 %v4757
    %5663 = vmatpush1.bf16.msra.mxu0 %v4756
    %5664 = vmatprep.subr.bf16.mxu0 %v4764
    %5665 = vmatpush1.bf16.msra.mxu0 %v4763
    %5666 = vmatprep.subr.bf16.mxu0 %v4771
    %5667 = vmatpush1.bf16.msra.mxu0 %v4770
    %5668 = vmatprep.subr.bf16.mxu0 %v4778
    %5669 = vmatpush1.bf16.msra.mxu0 %v4777
    %5670 = vmatprep.subr.bf16.mxu0 %v4785
    %5671 = vmatpush1.bf16.msra.mxu0 %v4784
    %5672 = vmatprep.subr.bf16.mxu0 %v4792
    %5673 = vmatpush1.bf16.msra.mxu0 %v4791
    %5674 = vmatprep.subr.bf16.mxu0 %v4799
    %5675 = vmatpush1.bf16.msra.mxu0 %v4798
    %5676 = vmatprep.subr.bf16.mxu0 %v4806
    %5677 = vmatpush1.bf16.msra.mxu0 %v4805
    %5678 = vmatprep.mubr.bf16.mxu0 %v2975
    %5679 = vmatmul.mubr.bf16.gmra.mrb[0].mxu0 %v2974
    %v5680 = vpop.f32.mrb[0].mxu0
    %v5681 = vadd.f32 %v3442, %v5680
    %v5682 = vpop.f32.mrb[0].mxu0
    %v5683 = vadd.f32 %v3446, %v5682
    %v5684 = vpop.f32.mrb[0].mxu0
    %v5685 = vpop.f32.mrb[0].mxu0
    %5686 = vdwg.mxu0
    %5687 = vmatprep.subr.bf16.mxu0 %v4813
    %5688 = vmatpush1.bf16.msra.mxu0 %v4812
    %5689 = vmatprep.subr.bf16.mxu0 %v4820
    %5690 = vmatpush1.bf16.msra.mxu0 %v4819
    %5691 = vmatprep.subr.bf16.mxu0 %v4827
    %5692 = vmatpush1.bf16.msra.mxu0 %v4826
    %5693 = vmatprep.subr.bf16.mxu0 %v4834
    %5694 = vmatpush1.bf16.msra.mxu0 %v4833
    %5695 = vmatprep.subr.bf16.mxu0 %v4841
    %5696 = vmatpush1.bf16.msra.mxu0 %v4840
    %5697 = vmatprep.subr.bf16.mxu0 %v4848
    %5698 = vmatpush1.bf16.msra.mxu0 %v4847
    %5699 = vmatprep.subr.bf16.mxu0 %v4855
    %5700 = vmatpush1.bf16.msra.mxu0 %v4854
    %5701 = vmatprep.subr.bf16.mxu0 %v4862
    %5702 = vmatpush1.bf16.msra.mxu0 %v4861
    %5703 = vmatprep.subr.bf16.mxu0 %v4869
    %5704 = vmatpush1.bf16.msra.mxu0 %v4868
    %5705 = vmatprep.subr.bf16.mxu0 %v4876
    %5706 = vmatpush1.bf16.msra.mxu0 %v4875
    %5707 = vmatprep.subr.bf16.mxu0 %v4883
    %5708 = vmatpush1.bf16.msra.mxu0 %v4882
    %5709 = vmatprep.subr.bf16.mxu0 %v4890
    %5710 = vmatpush1.bf16.msra.mxu0 %v4889
    %5711 = vmatprep.subr.bf16.mxu0 %v4897
    %5712 = vmatpush1.bf16.msra.mxu0 %v4896
    %5713 = vmatprep.subr.bf16.mxu0 %v4904
    %5714 = vmatpush1.bf16.msra.mxu0 %v4903
    %5715 = vmatprep.subr.bf16.mxu0 %v4911
    %5716 = vmatpush1.bf16.msra.mxu0 %v4910
    %5717 = vmatprep.subr.bf16.mxu0 %v4918
    %5718 = vmatpush1.bf16.msra.mxu0 %v4917
    %5719 = vmatprep.mubr.bf16.mxu0 %v2977
    %5720 = vmatmul.mubr.bf16.gmra.mrb[0].mxu0 %v2976
    %v5721 = vpop.f32.mrb[0].mxu0
    %v5722 = vadd.f32 %v5681, %v5721
    %v5723 = vpop.f32.mrb[0].mxu0
    %v5724 = vadd.f32 %v5683, %v5723
    %v5725 = vpop.f32.mrb[0].mxu0
    %v5726 = vpop.f32.mrb[0].mxu0
    %5727 = vdwg.mxu0
    %5728 = vmatprep.subr.bf16.mxu0 %v4925
    %5729 = vmatpush1.bf16.msra.mxu0 %v4924
    %5730 = vmatprep.subr.bf16.mxu0 %v4932
    %5731 = vmatpush1.bf16.msra.mxu0 %v4931
    %5732 = vmatprep.subr.bf16.mxu0 %v4939
    %5733 = vmatpush1.bf16.msra.mxu0 %v4938
    %5734 = vmatprep.subr.bf16.mxu0 %v4946
    %5735 = vmatpush1.bf16.msra.mxu0 %v4945
    %5736 = vmatprep.subr.bf16.mxu0 %v4953
    %5737 = vmatpush1.bf16.msra.mxu0 %v4952
    %5738 = vmatprep.subr.bf16.mxu0 %v4960
    %5739 = vmatpush1.bf16.msra.mxu0 %v4959
    %5740 = vmatprep.subr.bf16.mxu0 %v4967
    %5741 = vmatpush1.bf16.msra.mxu0 %v4966
    %5742 = vmatprep.subr.bf16.mxu0 %v4974
    %5743 = vmatpush1.bf16.msra.mxu0 %v4973
    %5744 = vmatprep.subr.bf16.mxu0 %v4981
    %5745 = vmatpush1.bf16.msra.mxu0 %v4980
    %5746 = vmatprep.subr.bf16.mxu0 %v4988
    %5747 = vmatpush1.bf16.msra.mxu0 %v4987
    %5748 = vmatprep.subr.bf16.mxu0 %v4995
    %5749 = vmatpush1.bf16.msra.mxu0 %v4994
    %5750 = vmatprep.subr.bf16.mxu0 %v5002
    %5751 = vmatpush1.bf16.msra.mxu0 %v5001
    %5752 = vmatprep.subr.bf16.mxu0 %v5009
    %5753 = vmatpush1.bf16.msra.mxu0 %v5008
    %5754 = vmatprep.subr.bf16.mxu0 %v5016
    %5755 = vmatpush1.bf16.msra.mxu0 %v5015
    %5756 = vmatprep.subr.bf16.mxu0 %v5023
    %5757 = vmatpush1.bf16.msra.mxu0 %v5022
    %5758 = vmatprep.subr.bf16.mxu0 %v5030
    %5759 = vmatpush1.bf16.msra.mxu0 %v5029
    %5760 = vmatprep.mubr.bf16.mxu0 %v2979
    %5761 = vmatmul.mubr.bf16.gmra.mrb[0].mxu0 %v2978
    %v5762 = vpop.f32.mrb[0].mxu0
    %v5763 = vadd.f32 %v5722, %v5762
    %v5764 = vpop.f32.mrb[0].mxu0
    %v5765 = vadd.f32 %v5724, %v5764
    %v5766 = vpop.f32.mrb[0].mxu0
    %v5767 = vpop.f32.mrb[0].mxu0
    %5768 = vdwg.mxu0
    %5769 = vmatprep.subr.bf16.mxu0 %v5037
    %5770 = vmatpush1.bf16.msra.mxu0 %v5036
    %5771 = vmatprep.subr.bf16.mxu0 %v5044
    %5772 = vmatpush1.bf16.msra.mxu0 %v5043
    %5773 = vmatprep.subr.bf16.mxu0 %v5051
    %5774 = vmatpush1.bf16.msra.mxu0 %v5050
    %5775 = vmatprep.subr.bf16.mxu0 %v5058
    %5776 = vmatpush1.bf16.msra.mxu0 %v5057
    %5777 = vmatprep.subr.bf16.mxu0 %v5065
    %5778 = vmatpush1.bf16.msra.mxu0 %v5064
    %5779 = vmatprep.subr.bf16.mxu0 %v5072
    %5780 = vmatpush1.bf16.msra.mxu0 %v5071
    %5781 = vmatprep.subr.bf16.mxu0 %v5079
    %5782 = vmatpush1.bf16.msra.mxu0 %v5078
    %5783 = vmatprep.subr.bf16.mxu0 %v5086
    %5784 = vmatpush1.bf16.msra.mxu0 %v5085
    %5785 = vmatprep.subr.bf16.mxu0 0
    %5786 = vmatpush1.bf16.msra.mxu0 0
    %5787 = vmatprep.subr.bf16.mxu0 0
    %5788 = vmatpush1.bf16.msra.mxu0 0
    %5789 = vmatprep.subr.bf16.mxu0 0
    %5790 = vmatpush1.bf16.msra.mxu0 0
    %5791 = vmatprep.subr.bf16.mxu0 0
    %5792 = vmatpush1.bf16.msra.mxu0 0
    %5793 = vmatprep.subr.bf16.mxu0 0
    %5794 = vmatpush1.bf16.msra.mxu0 0
    %5795 = vmatprep.subr.bf16.mxu0 0
    %5796 = vmatpush1.bf16.msra.mxu0 0
    %5797 = vmatprep.subr.bf16.mxu0 0
    %5798 = vmatpush1.bf16.msra.mxu0 0
    %5799 = vmatprep.subr.bf16.mxu0 0
    %5800 = vmatpush1.bf16.msra.mxu0 0
    %5801 = vmatprep.mubr.bf16.mxu0 0
    %5802 = vmatmul.mubr.bf16.gmra.mrb[0].mxu0 %v2980
    %v5803 = vpop.f32.mrb[0].mxu0
    %v5804 = vadd.f32 %v5763, %v5803
    %v5805 = vpop.f32.mrb[0].mxu0
    %v5806 = vadd.f32 %v5765, %v5805
    %v5807 = vpop.f32.mrb[0].mxu0
    %v5808 = vpop.f32.mrb[0].mxu0
    %5809 = vdwg.mxu0
    %5810 = vmatprep.subr.bf16.mxu0 %v4703
    %5811 = vmatpush1.bf16.msra.mxu0 %v4702
    %5812 = vmatprep.subr.bf16.mxu0 %v4710
    %5813 = vmatpush1.bf16.msra.mxu0 %v4709
    %5814 = vmatprep.subr.bf16.mxu0 %v4717
    %5815 = vmatpush1.bf16.msra.mxu0 %v4716
    %5816 = vmatprep.subr.bf16.mxu0 %v4724
    %5817 = vmatpush1.bf16.msra.mxu0 %v4723
    %5818 = vmatprep.subr.bf16.mxu0 %v4731
    %5819 = vmatpush1.bf16.msra.mxu0 %v4730
    %5820 = vmatprep.subr.bf16.mxu0 %v4738
    %5821 = vmatpush1.bf16.msra.mxu0 %v4737
    %5822 = vmatprep.subr.bf16.mxu0 %v4745
    %5823 = vmatpush1.bf16.msra.mxu0 %v4744
    %5824 = vmatprep.subr.bf16.mxu0 %v4752
    %5825 = vmatpush1.bf16.msra.mxu0 %v4751
    %5826 = vmatprep.subr.bf16.mxu0 %v4759
    %5827 = vmatpush1.bf16.msra.mxu0 %v4758
    %5828 = vmatprep.subr.bf16.mxu0 %v4766
    %5829 = vmatpush1.bf16.msra.mxu0 %v4765
    %5830 = vmatprep.subr.bf16.mxu0 %v4773
    %5831 = vmatpush1.bf16.msra.mxu0 %v4772
    %5832 = vmatprep.subr.bf16.mxu0 %v4780
    %5833 = vmatpush1.bf16.msra.mxu0 %v4779
    %5834 = vmatprep.subr.bf16.mxu0 %v4787
    %5835 = vmatpush1.bf16.msra.mxu0 %v4786
    %5836 = vmatprep.subr.bf16.mxu0 %v4794
    %5837 = vmatpush1.bf16.msra.mxu0 %v4793
    %5838 = vmatprep.subr.bf16.mxu0 %v4801
    %5839 = vmatpush1.bf16.msra.mxu0 %v4800
    %5840 = vmatprep.subr.bf16.mxu0 %v4808
    %5841 = vmatpush1.bf16.msra.mxu0 %v4807
    %5842 = vmatprep.mubr.bf16.mxu0 %v2975
    %5843 = vmatmul.mubr.bf16.gmra.mrb[0].mxu0 %v2974
    %v5844 = vpop.f32.mrb[0].mxu0
    %v5845 = vadd.f32 %v3450, %v5844
    %v5846 = vpop.f32.mrb[0].mxu0
    %v5847 = vadd.f32 %v3454, %v5846
    %v5848 = vpop.f32.mrb[0].mxu0
    %v5849 = vpop.f32.mrb[0].mxu0
    %5850 = vdwg.mxu0
    %5851 = vmatprep.subr.bf16.mxu0 %v4815
    %5852 = vmatpush1.bf16.msra.mxu0 %v4814
    %5853 = vmatprep.subr.bf16.mxu0 %v4822
    %5854 = vmatpush1.bf16.msra.mxu0 %v4821
    %5855 = vmatprep.subr.bf16.mxu0 %v4829
    %5856 = vmatpush1.bf16.msra.mxu0 %v4828
    %5857 = vmatprep.subr.bf16.mxu0 %v4836
    %5858 = vmatpush1.bf16.msra.mxu0 %v4835
    %5859 = vmatprep.subr.bf16.mxu0 %v4843
    %5860 = vmatpush1.bf16.msra.mxu0 %v4842
    %5861 = vmatprep.subr.bf16.mxu0 %v4850
    %5862 = vmatpush1.bf16.msra.mxu0 %v4849
    %5863 = vmatprep.subr.bf16.mxu0 %v4857
    %5864 = vmatpush1.bf16.msra.mxu0 %v4856
    %5865 = vmatprep.subr.bf16.mxu0 %v4864
    %5866 = vmatpush1.bf16.msra.mxu0 %v4863
    %5867 = vmatprep.subr.bf16.mxu0 %v4871
    %5868 = vmatpush1.bf16.msra.mxu0 %v4870
    %5869 = vmatprep.subr.bf16.mxu0 %v4878
    %5870 = vmatpush1.bf16.msra.mxu0 %v4877
    %5871 = vmatprep.subr.bf16.mxu0 %v4885
    %5872 = vmatpush1.bf16.msra.mxu0 %v4884
    %5873 = vmatprep.subr.bf16.mxu0 %v4892
    %5874 = vmatpush1.bf16.msra.mxu0 %v4891
    %5875 = vmatprep.subr.bf16.mxu0 %v4899
    %5876 = vmatpush1.bf16.msra.mxu0 %v4898
    %5877 = vmatprep.subr.bf16.mxu0 %v4906
    %5878 = vmatpush1.bf16.msra.mxu0 %v4905
    %5879 = vmatprep.subr.bf16.mxu0 %v4913
    %5880 = vmatpush1.bf16.msra.mxu0 %v4912
    %5881 = vmatprep.subr.bf16.mxu0 %v4920
    %5882 = vmatpush1.bf16.msra.mxu0 %v4919
    %5883 = vmatprep.mubr.bf16.mxu0 %v2977
    %5884 = vmatmul.mubr.bf16.gmra.mrb[0].mxu0 %v2976
    %v5885 = vpop.f32.mrb[0].mxu0
    %v5886 = vadd.f32 %v5845, %v5885
    %v5887 = vpop.f32.mrb[0].mxu0
    %v5888 = vadd.f32 %v5847, %v5887
    %v5889 = vpop.f32.mrb[0].mxu0
    %v5890 = vpop.f32.mrb[0].mxu0
    %5891 = vdwg.mxu0
    %5892 = vmatprep.subr.bf16.mxu0 %v4927
    %5893 = vmatpush1.bf16.msra.mxu0 %v4926
    %5894 = vmatprep.subr.bf16.mxu0 %v4934
    %5895 = vmatpush1.bf16.msra.mxu0 %v4933
    %5896 = vmatprep.subr.bf16.mxu0 %v4941
    %5897 = vmatpush1.bf16.msra.mxu0 %v4940
    %5898 = vmatprep.subr.bf16.mxu0 %v4948
    %5899 = vmatpush1.bf16.msra.mxu0 %v4947
    %5900 = vmatprep.subr.bf16.mxu0 %v4955
    %5901 = vmatpush1.bf16.msra.mxu0 %v4954
    %5902 = vmatprep.subr.bf16.mxu0 %v4962
    %5903 = vmatpush1.bf16.msra.mxu0 %v4961
    %5904 = vmatprep.subr.bf16.mxu0 %v4969
    %5905 = vmatpush1.bf16.msra.mxu0 %v4968
    %5906 = vmatprep.subr.bf16.mxu0 %v4976
    %5907 = vmatpush1.bf16.msra.mxu0 %v4975
    %5908 = vmatprep.subr.bf16.mxu0 %v4983
    %5909 = vmatpush1.bf16.msra.mxu0 %v4982
    %5910 = vmatprep.subr.bf16.mxu0 %v4990
    %5911 = vmatpush1.bf16.msra.mxu0 %v4989
    %5912 = vmatprep.subr.bf16.mxu0 %v4997
    %5913 = vmatpush1.bf16.msra.mxu0 %v4996
    %5914 = vmatprep.subr.bf16.mxu0 %v5004
    %5915 = vmatpush1.bf16.msra.mxu0 %v5003
    %5916 = vmatprep.subr.bf16.mxu0 %v5011
    %5917 = vmatpush1.bf16.msra.mxu0 %v5010
    %5918 = vmatprep.subr.bf16.mxu0 %v5018
    %5919 = vmatpush1.bf16.msra.mxu0 %v5017
    %5920 = vmatprep.subr.bf16.mxu0 %v5025
    %5921 = vmatpush1.bf16.msra.mxu0 %v5024
    %5922 = vmatprep.subr.bf16.mxu0 %v5032
    %5923 = vmatpush1.bf16.msra.mxu0 %v5031
    %5924 = vmatprep.mubr.bf16.mxu0 %v2979
    %5925 = vmatmul.mubr.bf16.gmra.mrb[0].mxu0 %v2978
    %v5926 = vpop.f32.mrb[0].mxu0
    %v5927 = vadd.f32 %v5886, %v5926
    %v5928 = vpop.f32.mrb[0].mxu0
    %v5929 = vadd.f32 %v5888, %v5928
    %v5930 = vpop.f32.mrb[0].mxu0
    %v5931 = vpop.f32.mrb[0].mxu0
    %5932 = vdwg.mxu0
    %5933 = vmatprep.subr.bf16.mxu0 %v5039
    %5934 = vmatpush1.bf16.msra.mxu0 %v5038
    %5935 = vmatprep.subr.bf16.mxu0 %v5046
    %5936 = vmatpush1.bf16.msra.mxu0 %v5045
    %5937 = vmatprep.subr.bf16.mxu0 %v5053
    %5938 = vmatpush1.bf16.msra.mxu0 %v5052
    %5939 = vmatprep.subr.bf16.mxu0 %v5060
    %5940 = vmatpush1.bf16.msra.mxu0 %v5059
    %5941 = vmatprep.subr.bf16.mxu0 %v5067
    %5942 = vmatpush1.bf16.msra.mxu0 %v5066
    %5943 = vmatprep.subr.bf16.mxu0 %v5074
    %5944 = vmatpush1.bf16.msra.mxu0 %v5073
    %5945 = vmatprep.subr.bf16.mxu0 %v5081
    %5946 = vmatpush1.bf16.msra.mxu0 %v5080
    %5947 = vmatprep.subr.bf16.mxu0 %v5088
    %5948 = vmatpush1.bf16.msra.mxu0 %v5087
    %5949 = vmatprep.subr.bf16.mxu0 0
    %5950 = vmatpush1.bf16.msra.mxu0 0
    %5951 = vmatprep.subr.bf16.mxu0 0
    %5952 = vmatpush1.bf16.msra.mxu0 0
    %5953 = vmatprep.subr.bf16.mxu0 0
    %5954 = vmatpush1.bf16.msra.mxu0 0
    %5955 = vmatprep.subr.bf16.mxu0 0
    %5956 = vmatpush1.bf16.msra.mxu0 0
    %5957 = vmatprep.subr.bf16.mxu0 0
    %5958 = vmatpush1.bf16.msra.mxu0 0
    %5959 = vmatprep.subr.bf16.mxu0 0
    %5960 = vmatpush1.bf16.msra.mxu0 0
    %5961 = vmatprep.subr.bf16.mxu0 0
    %5962 = vmatpush1.bf16.msra.mxu0 0
    %5963 = vmatprep.subr.bf16.mxu0 0
    %5964 = vmatpush1.bf16.msra.mxu0 0
    %5965 = vmatprep.mubr.bf16.mxu0 0
    %5966 = vmatmul.mubr.bf16.gmra.mrb[0].mxu0 %v2980
    %v5967 = vpop.f32.mrb[0].mxu0
    %v5968 = vadd.f32 %v5927, %v5967
    %v5969 = vpop.f32.mrb[0].mxu0
    %v5970 = vadd.f32 %v5929, %v5969
    %v5971 = vpop.f32.mrb[0].mxu0
    %v5972 = vpop.f32.mrb[0].mxu0
    %5973 = vdwg.mxu0
    %5974 = vmatprep.subr.bf16.mxu0 0
    %5975 = vmatpush1.bf16.msra.mxu0 %v4704
    %5976 = vmatprep.subr.bf16.mxu0 0
    %5977 = vmatpush1.bf16.msra.mxu0 %v4711
    %5978 = vmatprep.subr.bf16.mxu0 0
    %5979 = vmatpush1.bf16.msra.mxu0 %v4718
    %5980 = vmatprep.subr.bf16.mxu0 0
    %5981 = vmatpush1.bf16.msra.mxu0 %v4725
    %5982 = vmatprep.subr.bf16.mxu0 0
    %5983 = vmatpush1.bf16.msra.mxu0 %v4732
    %5984 = vmatprep.subr.bf16.mxu0 0
    %5985 = vmatpush1.bf16.msra.mxu0 %v4739
    %5986 = vmatprep.subr.bf16.mxu0 0
    %5987 = vmatpush1.bf16.msra.mxu0 %v4746
    %5988 = vmatprep.subr.bf16.mxu0 0
    %5989 = vmatpush1.bf16.msra.mxu0 %v4753
    %5990 = vmatprep.subr.bf16.mxu0 0
    %5991 = vmatpush1.bf16.msra.mxu0 %v4760
    %5992 = vmatprep.subr.bf16.mxu0 0
    %5993 = vmatpush1.bf16.msra.mxu0 %v4767
    %5994 = vmatprep.subr.bf16.mxu0 0
    %5995 = vmatpush1.bf16.msra.mxu0 %v4774
    %5996 = vmatprep.subr.bf16.mxu0 0
    %5997 = vmatpush1.bf16.msra.mxu0 %v4781
    %5998 = vmatprep.subr.bf16.mxu0 0
    %5999 = vmatpush1.bf16.msra.mxu0 %v4788
    %6000 = vmatprep.subr.bf16.mxu0 0
    %6001 = vmatpush1.bf16.msra.mxu0 %v4795
    %6002 = vmatprep.subr.bf16.mxu0 0
    %6003 = vmatpush1.bf16.msra.mxu0 %v4802
    %6004 = vmatprep.subr.bf16.mxu0 0
    %6005 = vmatpush1.bf16.msra.mxu0 %v4809
    %6006 = vmatprep.mubr.bf16.mxu0 %v2975
    %6007 = vmatmul.mubr.bf16.gmra.mrb[0].mxu0 %v2974
    %v6008 = vpop.f32.mrb[0].mxu0
    %v6009 = vadd.f32 %v3458, %v6008
    %v6010 = vpop.f32.mrb[0].mxu0
    %v6011 = vpop.f32.mrb[0].mxu0
    %v6012 = vpop.f32.mrb[0].mxu0
    %6013 = vdwg.mxu0
    %6014 = vmatprep.subr.bf16.mxu0 0
    %6015 = vmatpush1.bf16.msra.mxu0 %v4816
    %6016 = vmatprep.subr.bf16.mxu0 0
    %6017 = vmatpush1.bf16.msra.mxu0 %v4823
    %6018 = vmatprep.subr.bf16.mxu0 0
    %6019 = vmatpush1.bf16.msra.mxu0 %v4830
    %6020 = vmatprep.subr.bf16.mxu0 0
    %6021 = vmatpush1.bf16.msra.mxu0 %v4837
    %6022 = vmatprep.subr.bf16.mxu0 0
    %6023 = vmatpush1.bf16.msra.mxu0 %v4844
    %6024 = vmatprep.subr.bf16.mxu0 0
    %6025 = vmatpush1.bf16.msra.mxu0 %v4851
    %6026 = vmatprep.subr.bf16.mxu0 0
    %6027 = vmatpush1.bf16.msra.mxu0 %v4858
    %6028 = vmatprep.subr.bf16.mxu0 0
    %6029 = vmatpush1.bf16.msra.mxu0 %v4865
    %6030 = vmatprep.subr.bf16.mxu0 0
    %6031 = vmatpush1.bf16.msra.mxu0 %v4872
    %6032 = vmatprep.subr.bf16.mxu0 0
    %6033 = vmatpush1.bf16.msra.mxu0 %v4879
    %6034 = vmatprep.subr.bf16.mxu0 0
    %6035 = vmatpush1.bf16.msra.mxu0 %v4886
    %6036 = vmatprep.subr.bf16.mxu0 0
    %6037 = vmatpush1.bf16.msra.mxu0 %v4893
    %6038 = vmatprep.subr.bf16.mxu0 0
    %6039 = vmatpush1.bf16.msra.mxu0 %v4900
    %6040 = vmatprep.subr.bf16.mxu0 0
    %6041 = vmatpush1.bf16.msra.mxu0 %v4907
    %6042 = vmatprep.subr.bf16.mxu0 0
    %6043 = vmatpush1.bf16.msra.mxu0 %v4914
    %6044 = vmatprep.subr.bf16.mxu0 0
    %6045 = vmatpush1.bf16.msra.mxu0 %v4921
    %6046 = vmatprep.mubr.bf16.mxu0 %v2977
    %6047 = vmatmul.mubr.bf16.gmra.mrb[0].mxu0 %v2976
    %v6048 = vpop.f32.mrb[0].mxu0
    %v6049 = vadd.f32 %v6009, %v6048
    %v6050 = vpop.f32.mrb[0].mxu0
    %v6051 = vpop.f32.mrb[0].mxu0
    %v6052 = vpop.f32.mrb[0].mxu0
    %6053 = vdwg.mxu0
    %6054 = vmatprep.subr.bf16.mxu0 0
    %6055 = vmatpush1.bf16.msra.mxu0 %v4928
    %6056 = vmatprep.subr.bf16.mxu0 0
    %6057 = vmatpush1.bf16.msra.mxu0 %v4935
    %6058 = vmatprep.subr.bf16.mxu0 0
    %6059 = vmatpush1.bf16.msra.mxu0 %v4942
    %6060 = vmatprep.subr.bf16.mxu0 0
    %6061 = vmatpush1.bf16.msra.mxu0 %v4949
    %6062 = vmatprep.subr.bf16.mxu0 0
    %6063 = vmatpush1.bf16.msra.mxu0 %v4956
    %6064 = vmatprep.subr.bf16.mxu0 0
    %6065 = vmatpush1.bf16.msra.mxu0 %v4963
    %6066 = vmatprep.subr.bf16.mxu0 0
    %6067 = vmatpush1.bf16.msra.mxu0 %v4970
    %6068 = vmatprep.subr.bf16.mxu0 0
    %6069 = vmatpush1.bf16.msra.mxu0 %v4977
    %6070 = vmatprep.subr.bf16.mxu0 0
    %6071 = vmatpush1.bf16.msra.mxu0 %v4984
    %6072 = vmatprep.subr.bf16.mxu0 0
    %6073 = vmatpush1.bf16.msra.mxu0 %v4991
    %6074 = vmatprep.subr.bf16.mxu0 0
    %6075 = vmatpush1.bf16.msra.mxu0 %v4998
    %6076 = vmatprep.subr.bf16.mxu0 0
    %6077 = vmatpush1.bf16.msra.mxu0 %v5005
    %6078 = vmatprep.subr.bf16.mxu0 0
    %6079 = vmatpush1.bf16.msra.mxu0 %v5012
    %6080 = vmatprep.subr.bf16.mxu0 0
    %6081 = vmatpush1.bf16.msra.mxu0 %v5019
    %6082 = vmatprep.subr.bf16.mxu0 0
    %6083 = vmatpush1.bf16.msra.mxu0 %v5026
    %6084 = vmatprep.subr.bf16.mxu0 0
    %6085 = vmatpush1.bf16.msra.mxu0 %v5033
    %6086 = vmatprep.mubr.bf16.mxu0 %v2979
    %6087 = vmatmul.mubr.bf16.gmra.mrb[0].mxu0 %v2978
    %v6088 = vpop.f32.mrb[0].mxu0
    %v6089 = vadd.f32 %v6049, %v6088
    %v6090 = vpop.f32.mrb[0].mxu0
    %v6091 = vpop.f32.mrb[0].mxu0
    %v6092 = vpop.f32.mrb[0].mxu0
    %6093 = vdwg.mxu0
    %6094 = vmatprep.subr.bf16.mxu0 0
    %6095 = vmatpush1.bf16.msra.mxu0 %v5040
    %6096 = vmatprep.subr.bf16.mxu0 0
    %6097 = vmatpush1.bf16.msra.mxu0 %v5047
    %6098 = vmatprep.subr.bf16.mxu0 0
    %6099 = vmatpush1.bf16.msra.mxu0 %v5054
    %6100 = vmatprep.subr.bf16.mxu0 0
    %6101 = vmatpush1.bf16.msra.mxu0 %v5061
    %6102 = vmatprep.subr.bf16.mxu0 0
    %6103 = vmatpush1.bf16.msra.mxu0 %v5068
    %6104 = vmatprep.subr.bf16.mxu0 0
    %6105 = vmatpush1.bf16.msra.mxu0 %v5075
    %6106 = vmatprep.subr.bf16.mxu0 0
    %6107 = vmatpush1.bf16.msra.mxu0 %v5082
    %6108 = vmatprep.subr.bf16.mxu0 0
    %6109 = vmatpush1.bf16.msra.mxu0 %v5089
    %6110 = vmatprep.subr.bf16.mxu0 0
    %6111 = vmatpush1.bf16.msra.mxu0 0
    %6112 = vmatprep.subr.bf16.mxu0 0
    %6113 = vmatpush1.bf16.msra.mxu0 0
    %6114 = vmatprep.subr.bf16.mxu0 0
    %6115 = vmatpush1.bf16.msra.mxu0 0
    %6116 = vmatprep.subr.bf16.mxu0 0
    %6117 = vmatpush1.bf16.msra.mxu0 0
    %6118 = vmatprep.subr.bf16.mxu0 0
    %6119 = vmatpush1.bf16.msra.mxu0 0
    %6120 = vmatprep.subr.bf16.mxu0 0
    %6121 = vmatpush1.bf16.msra.mxu0 0
    %6122 = vmatprep.subr.bf16.mxu0 0
    %6123 = vmatpush1.bf16.msra.mxu0 0
    %6124 = vmatprep.subr.bf16.mxu0 0
    %6125 = vmatpush1.bf16.msra.mxu0 0
    %6126 = vmatprep.mubr.bf16.mxu0 0
    %6127 = vmatmul.mubr.bf16.gmra.mrb[0].mxu0 %v2980
    %v6128 = vpop.f32.mrb[0].mxu0
    %v6129 = vadd.f32 %v6089, %v6128
    %v6130 = vpop.f32.mrb[0].mxu0
    %v6131 = vpop.f32.mrb[0].mxu0
    %v6132 = vpop.f32.mrb[0].mxu0
    %6133 = vdwg.mxu0
    %v6134 = vpack.c.bf16 %v5640, %v5640
    %v6135 = vpack.c.bf16 %v5642, %v5642
    %v6136 = vpack.c.bf16 %v5804, %v5804
    %v6137 = vpack.c.bf16 %v5806, %v5806
    %v6138 = vpack.c.bf16 %v5968, %v5968
    %v6139 = vpack.c.bf16 %v5970, %v5970
    %v6140 = vpack.c.bf16 %v6129, %v6129
    %v6141 = vtanh.bf16.pop %v6134
    %v6142 = vtanh.bf16.pop %v6135
    %v6143 = vtanh.bf16.pop %v6136
    %v6144 = vtanh.bf16.pop %v6137
    %v6145 = vtanh.bf16.pop %v6138
    %v6146 = vtanh.bf16.pop %v6139
    %v6147 = vtanh.bf16.pop %v6140
    %v6148 = vld [vmem:[#allocation10] sm:$0xf]
    %v6149 = vld [vmem:[#allocation10 + $0x4] sm:$0xf]
    %v6150 = vld [vmem:[#allocation10 + $0x8] sm:$0xf]
    %v6151 = vld [vmem:[#allocation10 + $0xc] sm:$0xf]
    %v6152 = vld [vmem:[#allocation10 + $0x10] sm:$0xf]
    %v6153 = vld [vmem:[#allocation10 + $0x14] sm:$0xf]
    %v6154 = vld [vmem:[#allocation10 + $0x18] sm:$0xf]
    %v6155 = vld [vmem:[#allocation10 + $0x1c] sm:$0xf]
    %v6156 = vld [vmem:[#allocation10 + $0x20] sm:$0xf]
    %v6157 = vld [vmem:[#allocation10 + $0x24] sm:$0xf]
    %v6158 = vld [vmem:[#allocation10 + $0x28] sm:$0xf]
    %v6159 = vld [vmem:[#allocation10 + $0x2c] sm:$0xf]
    %v6160 = vld [vmem:[#allocation10 + $0x30] sm:$0xf]
    %v6161 = vld [vmem:[#allocation10 + $0x34] sm:$0xf]
    %v6162 = vld [vmem:[#allocation10 + $0x38] sm:$0xf]
    %v6163 = vld [vmem:[#allocation10 + $0x3c] sm:$0xf]
    %v6164 = vld [vmem:[#allocation10 + $0x40] sm:$0xf]
    %v6165 = vld [vmem:[#allocation10 + $0x44] sm:$0xf]
    %v6166 = vld [vmem:[#allocation10 + $0x48] sm:$0xf]
    %v6167 = vld [vmem:[#allocation10 + $0x4c] sm:$0xf]
    %v6168 = vld [vmem:[#allocation10 + $0x50] sm:$0xf]
    %v6169 = vld [vmem:[#allocation10 + $0x54] sm:$0xf]
    %v6170 = vld [vmem:[#allocation10 + $0x58] sm:$0xf]
    %v6171 = vld [vmem:[#allocation10 + $0x5c] sm:$0xf]
    %v6172 = vld [vmem:[#allocation10 + $0x60] sm:$0xf]
    %v6173 = vld [vmem:[#allocation10 + $0x64] sm:$0xf]
    %v6174 = vld [vmem:[#allocation10 + $0x68] sm:$0xf]
    %v6175 = vld [vmem:[#allocation10 + $0x6c] sm:$0xf]
    %v6176 = vld [vmem:[#allocation10 + $0x70] sm:$0xf]
    %v6177 = vld [vmem:[#allocation10 + $0x74] sm:$0xf]
    %v6178 = vld [vmem:[#allocation10 + $0x78] sm:$0xf]
    %v6179 = vld [vmem:[#allocation10 + $0x7c] sm:$0xf]
    %v6180 = vld [vmem:[#allocation10 + $0x80] sm:$0xf]
    %v6181 = vld [vmem:[#allocation10 + $0x84] sm:$0xf]
    %v6182 = vld [vmem:[#allocation10 + $0x88] sm:$0xf]
    %v6183 = vld [vmem:[#allocation10 + $0x8c] sm:$0xf]
    %v6184 = vld [vmem:[#allocation10 + $0x90] sm:$0xf]
    %v6185 = vld [vmem:[#allocation10 + $0x94] sm:$0xf]
    %v6186 = vld [vmem:[#allocation10 + $0x98] sm:$0xf]
    %v6187 = vld [vmem:[#allocation10 + $0x9c] sm:$0xf]
    %v6188 = vld [vmem:[#allocation10 + $0xa0] sm:$0xf]
    %v6189 = vld [vmem:[#allocation10 + $0xa4] sm:$0xf]
    %v6190 = vld [vmem:[#allocation10 + $0xa8] sm:$0xf]
    %v6191 = vld [vmem:[#allocation10 + $0xac] sm:$0xf]
    %v6192 = vld [vmem:[#allocation10 + $0xb0] sm:$0xf]
    %v6193 = vld [vmem:[#allocation10 + $0xb4] sm:$0xf]
    %v6194 = vld [vmem:[#allocation10 + $0xb8] sm:$0xf]
    %v6195 = vld [vmem:[#allocation10 + $0xbc] sm:$0xf]
    %v6196 = vld [vmem:[#allocation10 + $0xc0] sm:$0xf]
    %v6197 = vld [vmem:[#allocation10 + $0xc4] sm:$0xf]
    %v6198 = vld [vmem:[#allocation10 + $0xc8] sm:$0xf]
    %v6199 = vld [vmem:[#allocation10 + $0xcc] sm:$0xf]
    %v6200 = vld [vmem:[#allocation10 + $0xd0] sm:$0xf]
    %v6201 = vld [vmem:[#allocation10 + $0xd4] sm:$0xf]
    %v6202 = vld [vmem:[#allocation10 + $0xd8] sm:$0xf]
    %v6203 = vld [vmem:[#allocation10 + $0xdc] sm:$0xf]
    %v6204 = vld [vmem:[#allocation10 + $0xe0] sm:$0xf]
    %v6205 = vld [vmem:[#allocation10 + $0xe4] sm:$0xf]
    %v6206 = vld [vmem:[#allocation10 + $0xe8] sm:$0xf]
    %v6207 = vld [vmem:[#allocation10 + $0xec] sm:$0xf]
    %v6208 = vld [vmem:[#allocation10 + $0xf0] sm:$0xf]
    %v6209 = vld [vmem:[#allocation10 + $0xf4] sm:$0xf]
    %v6210 = vld [vmem:[#allocation10 + $0xf8] sm:$0xf]
    %v6211 = vld [vmem:[#allocation10 + $0xfc] sm:$0xf]
    %v6212 = vld [vmem:[#allocation10 + $0x100] sm:$0xf]
    %v6213 = vld [vmem:[#allocation10 + $0x104] sm:$0xf]
    %v6214 = vld [vmem:[#allocation10 + $0x108] sm:$0xf]
    %v6215 = vld [vmem:[#allocation10 + $0x10c] sm:$0xf]
    %v6216 = vld [vmem:[#allocation10 + $0x110] sm:$0xf]
    %v6217 = vld [vmem:[#allocation10 + $0x114] sm:$0xf]
    %v6218 = vld [vmem:[#allocation10 + $0x118] sm:$0xf]
    %v6219 = vld [vmem:[#allocation10 + $0x11c] sm:$0xf]
    %v6220 = vld [vmem:[#allocation10 + $0x120] sm:$0xf]
    %v6221 = vld [vmem:[#allocation10 + $0x124] sm:$0xf]
    %v6222 = vld [vmem:[#allocation10 + $0x128] sm:$0xf]
    %v6223 = vld [vmem:[#allocation10 + $0x12c] sm:$0xf]
    %v6224 = vld [vmem:[#allocation10 + $0x130] sm:$0xf]
    %v6225 = vld [vmem:[#allocation10 + $0x134] sm:$0xf]
    %v6226 = vld [vmem:[#allocation10 + $0x138] sm:$0xf]
    %v6227 = vld [vmem:[#allocation10 + $0x13c] sm:$0xf]
    %v6228 = vld [vmem:[#allocation10 + $0x140] sm:$0xf]
    %v6229 = vld [vmem:[#allocation10 + $0x144] sm:$0xf]
    %v6230 = vld [vmem:[#allocation10 + $0x148] sm:$0xf]
    %v6231 = vld [vmem:[#allocation10 + $0x14c] sm:$0xf]
    %v6232 = vld [vmem:[#allocation10 + $0x150] sm:$0xf]
    %v6233 = vld [vmem:[#allocation10 + $0x154] sm:$0xf]
    %v6234 = vld [vmem:[#allocation10 + $0x158] sm:$0xf]
    %v6235 = vld [vmem:[#allocation10 + $0x15c] sm:$0xf]
    %v6236 = vld [vmem:[#allocation10 + $0x160] sm:$0xf]
    %v6237 = vld [vmem:[#allocation10 + $0x164] sm:$0xf]
    %v6238 = vld [vmem:[#allocation10 + $0x168] sm:$0xf]
    %v6239 = vld [vmem:[#allocation10 + $0x16c] sm:$0xf]
    %v6240 = vld [vmem:[#allocation10 + $0x170] sm:$0xf]
    %v6241 = vld [vmem:[#allocation10 + $0x174] sm:$0xf]
    %v6242 = vld [vmem:[#allocation10 + $0x178] sm:$0xf]
    %v6243 = vld [vmem:[#allocation10 + $0x17c] sm:$0xf]
    %v6244 = vld [vmem:[#allocation10 + $0x180] sm:$0xf]
    %v6245 = vld [vmem:[#allocation10 + $0x184] sm:$0xf]
    %v6246 = vld [vmem:[#allocation10 + $0x188] sm:$0xf]
    %v6247 = vld [vmem:[#allocation10 + $0x18c] sm:$0xf]
    %v6248 = vld [vmem:[#allocation10 + $0x190] sm:$0xf]
    %v6249 = vld [vmem:[#allocation10 + $0x194] sm:$0xf]
    %v6250 = vld [vmem:[#allocation10 + $0x198] sm:$0xf]
    %v6251 = vld [vmem:[#allocation10 + $0x19c] sm:$0xf]
    %v6252 = vld [vmem:[#allocation10 + $0x1a0] sm:$0xf]
    %v6253 = vld [vmem:[#allocation10 + $0x1a4] sm:$0xf]
    %v6254 = vld [vmem:[#allocation10 + $0x1a8] sm:$0xf]
    %v6255 = vld [vmem:[#allocation10 + $0x1ac] sm:$0xf]
    %v6256 = vld [vmem:[#allocation10 + $0x1b0] sm:$0xf]
    %v6257 = vld [vmem:[#allocation10 + $0x1b4] sm:$0xf]
    %v6258 = vld [vmem:[#allocation10 + $0x1b8] sm:$0xf]
    %v6259 = vld [vmem:[#allocation10 + $0x1bc] sm:$0xf]
    %v6260 = vld [vmem:[#allocation11] sm:$0x1]
    %v6262 = vlaneseq
    %v6263 = vshrl.u32 %v6262, 7
    %v6264 = vsub.s32 0, %v6263
    %v6265 = vrot.slane %v6260, %v6264
    %v6379 = vunpack.c.l.b16 %v6148
    %v6380 = vunpack.c.l.b16 %v6149
    %v6381 = vunpack.c.l.b16 %v6150
    %v6382 = vunpack.c.l.b16 %v6151
    %v6383 = vunpack.c.l.b16 %v6152
    %v6384 = vunpack.c.l.b16 %v6153
    %v6385 = vunpack.c.l.b16 %v6154
    %v6386 = vunpack.c.l.b16 %v6155
    %v6387 = vunpack.c.l.b16 %v6156
    %v6388 = vunpack.c.l.b16 %v6157
    %v6389 = vunpack.c.l.b16 %v6158
    %v6390 = vunpack.c.l.b16 %v6159
    %v6391 = vunpack.c.l.b16 %v6160
    %v6392 = vunpack.c.l.b16 %v6161
    %v6393 = vunpack.c.l.b16 %v6162
    %v6394 = vunpack.c.l.b16 %v6163
    %v6395 = vunpack.c.l.b16 %v6164
    %v6396 = vunpack.c.l.b16 %v6165
    %v6397 = vunpack.c.l.b16 %v6166
    %v6398 = vunpack.c.l.b16 %v6167
    %v6399 = vunpack.c.l.b16 %v6168
    %v6400 = vunpack.c.l.b16 %v6169
    %v6401 = vunpack.c.l.b16 %v6170
    %v6402 = vunpack.c.l.b16 %v6171
    %v6403 = vunpack.c.l.b16 %v6172
    %v6404 = vunpack.c.l.b16 %v6173
    %v6405 = vunpack.c.l.b16 %v6174
    %v6406 = vunpack.c.l.b16 %v6175
    %v6407 = vunpack.c.l.b16 %v6176
    %v6408 = vunpack.c.l.b16 %v6177
    %v6409 = vunpack.c.l.b16 %v6178
    %v6410 = vunpack.c.l.b16 %v6179
    %v6411 = vunpack.c.l.b16 %v6180
    %v6412 = vunpack.c.l.b16 %v6181
    %v6413 = vunpack.c.l.b16 %v6182
    %v6414 = vunpack.c.l.b16 %v6183
    %v6415 = vunpack.c.l.b16 %v6184
    %v6416 = vunpack.c.l.b16 %v6185
    %v6417 = vunpack.c.l.b16 %v6186
    %v6418 = vunpack.c.l.b16 %v6187
    %v6419 = vunpack.c.l.b16 %v6188
    %v6420 = vunpack.c.l.b16 %v6189
    %v6421 = vunpack.c.l.b16 %v6190
    %v6422 = vunpack.c.l.b16 %v6191
    %v6423 = vunpack.c.l.b16 %v6192
    %v6424 = vunpack.c.l.b16 %v6193
    %v6425 = vunpack.c.l.b16 %v6194
    %v6426 = vunpack.c.l.b16 %v6195
    %v6427 = vunpack.c.l.b16 %v6196
    %v6428 = vunpack.c.l.b16 %v6197
    %v6429 = vunpack.c.l.b16 %v6198
    %v6430 = vunpack.c.l.b16 %v6199
    %v6431 = vunpack.c.l.b16 %v6200
    %v6432 = vunpack.c.l.b16 %v6201
    %v6433 = vunpack.c.l.b16 %v6202
    %v6434 = vunpack.c.l.b16 %v6203
    %v6435 = vunpack.c.l.b16 %v6204
    %v6436 = vunpack.c.l.b16 %v6205
    %v6437 = vunpack.c.l.b16 %v6206
    %v6438 = vunpack.c.l.b16 %v6207
    %v6439 = vunpack.c.l.b16 %v6208
    %v6440 = vunpack.c.l.b16 %v6209
    %v6441 = vunpack.c.l.b16 %v6210
    %v6442 = vunpack.c.l.b16 %v6211
    %v6443 = vunpack.c.l.b16 %v6212
    %v6444 = vunpack.c.l.b16 %v6213
    %v6445 = vunpack.c.l.b16 %v6214
    %v6446 = vunpack.c.l.b16 %v6215
    %v6447 = vunpack.c.l.b16 %v6216
    %v6448 = vunpack.c.l.b16 %v6217
    %v6449 = vunpack.c.l.b16 %v6218
    %v6450 = vunpack.c.l.b16 %v6219
    %v6451 = vunpack.c.l.b16 %v6220
    %v6452 = vunpack.c.l.b16 %v6221
    %v6453 = vunpack.c.l.b16 %v6222
    %v6454 = vunpack.c.l.b16 %v6223
    %v6455 = vunpack.c.l.b16 %v6224
    %v6456 = vunpack.c.l.b16 %v6225
    %v6457 = vunpack.c.l.b16 %v6226
    %v6458 = vunpack.c.l.b16 %v6227
    %v6459 = vunpack.c.l.b16 %v6228
    %v6460 = vunpack.c.l.b16 %v6229
    %v6461 = vunpack.c.l.b16 %v6230
    %v6462 = vunpack.c.l.b16 %v6231
    %v6463 = vunpack.c.l.b16 %v6232
    %v6464 = vunpack.c.l.b16 %v6233
    %v6465 = vunpack.c.l.b16 %v6234
    %v6466 = vunpack.c.l.b16 %v6235
    %v6467 = vunpack.c.l.b16 %v6236
    %v6468 = vunpack.c.l.b16 %v6237
    %v6469 = vunpack.c.l.b16 %v6238
    %v6470 = vunpack.c.l.b16 %v6239
    %v6471 = vunpack.c.l.b16 %v6240
    %v6472 = vunpack.c.l.b16 %v6241
    %v6473 = vunpack.c.l.b16 %v6242
    %v6474 = vunpack.c.l.b16 %v6243
    %v6475 = vunpack.c.l.b16 %v6244
    %v6476 = vunpack.c.l.b16 %v6245
    %v6477 = vunpack.c.l.b16 %v6246
    %v6478 = vunpack.c.l.b16 %v6247
    %v6479 = vunpack.c.l.b16 %v6248
    %v6480 = vunpack.c.l.b16 %v6249
    %v6481 = vunpack.c.l.b16 %v6250
    %v6482 = vunpack.c.l.b16 %v6251
    %v6483 = vunpack.c.l.b16 %v6252
    %v6484 = vunpack.c.l.b16 %v6253
    %v6485 = vunpack.c.l.b16 %v6254
    %v6486 = vunpack.c.l.b16 %v6255
    %v6487 = vunpack.c.l.b16 %v6256
    %v6488 = vunpack.c.l.b16 %v6257
    %v6489 = vunpack.c.l.b16 %v6258
    %v6490 = vunpack.c.l.b16 %v6259
    %v6491 = vpack.c.b16 %v6380, %v6379
    %v6492 = vpack.c.b16 %v6382, %v6381
    %v6493 = vpack.c.b16 %v6384, %v6383
    %v6494 = vpack.c.b16 %v6386, %v6385
    %v6495 = vpack.c.b16 %v6388, %v6387
    %v6496 = vpack.c.b16 %v6390, %v6389
    %v6497 = vpack.c.b16 %v6392, %v6391
    %v6498 = vpack.c.b16 %v6394, %v6393
    %v6499 = vpack.c.b16 %v6396, %v6395
    %v6500 = vpack.c.b16 %v6398, %v6397
    %v6501 = vpack.c.b16 %v6400, %v6399
    %v6502 = vpack.c.b16 %v6402, %v6401
    %v6503 = vpack.c.b16 %v6404, %v6403
    %v6504 = vpack.c.b16 %v6406, %v6405
    %v6505 = vpack.c.b16 %v6408, %v6407
    %v6506 = vpack.c.b16 %v6410, %v6409
    %v6507 = vpack.c.b16 %v6412, %v6411
    %v6508 = vpack.c.b16 %v6414, %v6413
    %v6509 = vpack.c.b16 %v6416, %v6415
    %v6510 = vpack.c.b16 %v6418, %v6417
    %v6511 = vpack.c.b16 %v6420, %v6419
    %v6512 = vpack.c.b16 %v6422, %v6421
    %v6513 = vpack.c.b16 %v6424, %v6423
    %v6514 = vpack.c.b16 %v6426, %v6425
    %v6515 = vpack.c.b16 %v6428, %v6427
    %v6516 = vpack.c.b16 %v6430, %v6429
    %v6517 = vpack.c.b16 %v6432, %v6431
    %v6518 = vpack.c.b16 %v6434, %v6433
    %v6519 = vpack.c.b16 %v6436, %v6435
    %v6520 = vpack.c.b16 %v6438, %v6437
    %v6521 = vpack.c.b16 %v6440, %v6439
    %v6522 = vpack.c.b16 %v6442, %v6441
    %v6523 = vpack.c.b16 %v6444, %v6443
    %v6524 = vpack.c.b16 %v6446, %v6445
    %v6525 = vpack.c.b16 %v6448, %v6447
    %v6526 = vpack.c.b16 %v6450, %v6449
    %v6527 = vpack.c.b16 %v6452, %v6451
    %v6528 = vpack.c.b16 %v6454, %v6453
    %v6529 = vpack.c.b16 %v6456, %v6455
    %v6530 = vpack.c.b16 %v6458, %v6457
    %v6531 = vpack.c.b16 %v6460, %v6459
    %v6532 = vpack.c.b16 %v6462, %v6461
    %v6533 = vpack.c.b16 %v6464, %v6463
    %v6534 = vpack.c.b16 %v6466, %v6465
    %v6535 = vpack.c.b16 %v6468, %v6467
    %v6536 = vpack.c.b16 %v6470, %v6469
    %v6537 = vpack.c.b16 %v6472, %v6471
    %v6538 = vpack.c.b16 %v6474, %v6473
    %v6539 = vpack.c.b16 %v6476, %v6475
    %v6540 = vpack.c.b16 %v6478, %v6477
    %v6541 = vpack.c.b16 %v6480, %v6479
    %v6542 = vpack.c.b16 %v6482, %v6481
    %v6543 = vpack.c.b16 %v6484, %v6483
    %v6544 = vpack.c.b16 %v6486, %v6485
    %v6545 = vpack.c.b16 %v6488, %v6487
    %v6546 = vpack.c.b16 %v6490, %v6489
    %6603 = vmatprep.subr.bf16.mxu0 0
    %6604 = vmatpush1.bf16.msra.mxu0 %v6491
    %6605 = vmatprep.subr.bf16.mxu0 0
    %6606 = vmatpush1.bf16.msra.mxu0 %v6492
    %6607 = vmatprep.subr.bf16.mxu0 0
    %6608 = vmatpush1.bf16.msra.mxu0 %v6493
    %6609 = vmatprep.subr.bf16.mxu0 0
    %6610 = vmatpush1.bf16.msra.mxu0 %v6494
    %6611 = vmatprep.subr.bf16.mxu0 0
    %6612 = vmatpush1.bf16.msra.mxu0 %v6495
    %6613 = vmatprep.subr.bf16.mxu0 0
    %6614 = vmatpush1.bf16.msra.mxu0 %v6496
    %6615 = vmatprep.subr.bf16.mxu0 0
    %6616 = vmatpush1.bf16.msra.mxu0 %v6497
    %6617 = vmatprep.subr.bf16.mxu0 0
    %6618 = vmatpush1.bf16.msra.mxu0 %v6498
    %6619 = vmatprep.subr.bf16.mxu0 0
    %6620 = vmatpush1.bf16.msra.mxu0 %v6499
    %6621 = vmatprep.subr.bf16.mxu0 0
    %6622 = vmatpush1.bf16.msra.mxu0 %v6500
    %6623 = vmatprep.subr.bf16.mxu0 0
    %6624 = vmatpush1.bf16.msra.mxu0 %v6501
    %6625 = vmatprep.subr.bf16.mxu0 0
    %6626 = vmatpush1.bf16.msra.mxu0 %v6502
    %6627 = vmatprep.subr.bf16.mxu0 0
    %6628 = vmatpush1.bf16.msra.mxu0 %v6503
    %6629 = vmatprep.subr.bf16.mxu0 0
    %6630 = vmatpush1.bf16.msra.mxu0 %v6504
    %6631 = vmatprep.subr.bf16.mxu0 0
    %6632 = vmatpush1.bf16.msra.mxu0 %v6505
    %6633 = vmatprep.subr.bf16.mxu0 0
    %6634 = vmatpush1.bf16.msra.mxu0 %v6506
    %6635 = vmatprep.mubr.bf16.mxu0 %v6142
    %6636 = vmatmul.mubr.bf16.gmra.mrb[0].mxu0 %v6141
    %v6637 = vpop.f32.mrb[0].mxu0
    %v6638 = vadd.f32 %v6265, %v6637
    %v6639 = vpop.f32.mrb[0].mxu0
    %v6640 = vpop.f32.mrb[0].mxu0
    %v6641 = vpop.f32.mrb[0].mxu0
    %6642 = vdwg.mxu0
    %6643 = vmatprep.subr.bf16.mxu0 0
    %6644 = vmatpush1.bf16.msra.mxu0 %v6507
    %6645 = vmatprep.subr.bf16.mxu0 0
    %6646 = vmatpush1.bf16.msra.mxu0 %v6508
    %6647 = vmatprep.subr.bf16.mxu0 0
    %6648 = vmatpush1.bf16.msra.mxu0 %v6509
    %6649 = vmatprep.subr.bf16.mxu0 0
    %6650 = vmatpush1.bf16.msra.mxu0 %v6510
    %6651 = vmatprep.subr.bf16.mxu0 0
    %6652 = vmatpush1.bf16.msra.mxu0 %v6511
    %6653 = vmatprep.subr.bf16.mxu0 0
    %6654 = vmatpush1.bf16.msra.mxu0 %v6512
    %6655 = vmatprep.subr.bf16.mxu0 0
    %6656 = vmatpush1.bf16.msra.mxu0 %v6513
    %6657 = vmatprep.subr.bf16.mxu0 0
    %6658 = vmatpush1.bf16.msra.mxu0 %v6514
    %6659 = vmatprep.subr.bf16.mxu0 0
    %6660 = vmatpush1.bf16.msra.mxu0 %v6515
    %6661 = vmatprep.subr.bf16.mxu0 0
    %6662 = vmatpush1.bf16.msra.mxu0 %v6516
    %6663 = vmatprep.subr.bf16.mxu0 0
    %6664 = vmatpush1.bf16.msra.mxu0 %v6517
    %6665 = vmatprep.subr.bf16.mxu0 0
    %6666 = vmatpush1.bf16.msra.mxu0 %v6518
    %6667 = vmatprep.subr.bf16.mxu0 0
    %6668 = vmatpush1.bf16.msra.mxu0 %v6519
    %6669 = vmatprep.subr.bf16.mxu0 0
    %6670 = vmatpush1.bf16.msra.mxu0 %v6520
    %6671 = vmatprep.subr.bf16.mxu0 0
    %6672 = vmatpush1.bf16.msra.mxu0 %v6521
    %6673 = vmatprep.subr.bf16.mxu0 0
    %6674 = vmatpush1.bf16.msra.mxu0 %v6522
    %6675 = vmatprep.mubr.bf16.mxu0 %v6144
    %6676 = vmatmul.mubr.bf16.gmra.mrb[0].mxu0 %v6143
    %v6677 = vpop.f32.mrb[0].mxu0
    %v6678 = vadd.f32 %v6638, %v6677
    %v6679 = vpop.f32.mrb[0].mxu0
    %v6680 = vpop.f32.mrb[0].mxu0
    %v6681 = vpop.f32.mrb[0].mxu0
    %6682 = vdwg.mxu0
    %6683 = vmatprep.subr.bf16.mxu0 0
    %6684 = vmatpush1.bf16.msra.mxu0 %v6523
    %6685 = vmatprep.subr.bf16.mxu0 0
    %6686 = vmatpush1.bf16.msra.mxu0 %v6524
    %6687 = vmatprep.subr.bf16.mxu0 0
    %6688 = vmatpush1.bf16.msra.mxu0 %v6525
    %6689 = vmatprep.subr.bf16.mxu0 0
    %6690 = vmatpush1.bf16.msra.mxu0 %v6526
    %6691 = vmatprep.subr.bf16.mxu0 0
    %6692 = vmatpush1.bf16.msra.mxu0 %v6527
    %6693 = vmatprep.subr.bf16.mxu0 0
    %6694 = vmatpush1.bf16.msra.mxu0 %v6528
    %6695 = vmatprep.subr.bf16.mxu0 0
    %6696 = vmatpush1.bf16.msra.mxu0 %v6529
    %6697 = vmatprep.subr.bf16.mxu0 0
    %6698 = vmatpush1.bf16.msra.mxu0 %v6530
    %6699 = vmatprep.subr.bf16.mxu0 0
    %6700 = vmatpush1.bf16.msra.mxu0 %v6531
    %6701 = vmatprep.subr.bf16.mxu0 0
    %6702 = vmatpush1.bf16.msra.mxu0 %v6532
    %6703 = vmatprep.subr.bf16.mxu0 0
    %6704 = vmatpush1.bf16.msra.mxu0 %v6533
    %6705 = vmatprep.subr.bf16.mxu0 0
    %6706 = vmatpush1.bf16.msra.mxu0 %v6534
    %6707 = vmatprep.subr.bf16.mxu0 0
    %6708 = vmatpush1.bf16.msra.mxu0 %v6535
    %6709 = vmatprep.subr.bf16.mxu0 0
    %6710 = vmatpush1.bf16.msra.mxu0 %v6536
    %6711 = vmatprep.subr.bf16.mxu0 0
    %6712 = vmatpush1.bf16.msra.mxu0 %v6537
    %6713 = vmatprep.subr.bf16.mxu0 0
    %6714 = vmatpush1.bf16.msra.mxu0 %v6538
    %6715 = vmatprep.mubr.bf16.mxu0 %v6146
    %6716 = vmatmul.mubr.bf16.gmra.mrb[0].mxu0 %v6145
    %v6717 = vpop.f32.mrb[0].mxu0
    %v6718 = vadd.f32 %v6678, %v6717
    %v6719 = vpop.f32.mrb[0].mxu0
    %v6720 = vpop.f32.mrb[0].mxu0
    %v6721 = vpop.f32.mrb[0].mxu0
    %6722 = vdwg.mxu0
    %6723 = vmatprep.subr.bf16.mxu0 0
    %6724 = vmatpush1.bf16.msra.mxu0 %v6539
    %6725 = vmatprep.subr.bf16.mxu0 0
    %6726 = vmatpush1.bf16.msra.mxu0 %v6540
    %6727 = vmatprep.subr.bf16.mxu0 0
    %6728 = vmatpush1.bf16.msra.mxu0 %v6541
    %6729 = vmatprep.subr.bf16.mxu0 0
    %6730 = vmatpush1.bf16.msra.mxu0 %v6542
    %6731 = vmatprep.subr.bf16.mxu0 0
    %6732 = vmatpush1.bf16.msra.mxu0 %v6543
    %6733 = vmatprep.subr.bf16.mxu0 0
    %6734 = vmatpush1.bf16.msra.mxu0 %v6544
    %6735 = vmatprep.subr.bf16.mxu0 0
    %6736 = vmatpush1.bf16.msra.mxu0 %v6545
    %6737 = vmatprep.subr.bf16.mxu0 0
    %6738 = vmatpush1.bf16.msra.mxu0 %v6546
    %6739 = vmatprep.subr.bf16.mxu0 0
    %6740 = vmatpush1.bf16.msra.mxu0 0
    %6741 = vmatprep.subr.bf16.mxu0 0
    %6742 = vmatpush1.bf16.msra.mxu0 0
    %6743 = vmatprep.subr.bf16.mxu0 0
    %6744 = vmatpush1.bf16.msra.mxu0 0
    %6745 = vmatprep.subr.bf16.mxu0 0
    %6746 = vmatpush1.bf16.msra.mxu0 0
    %6747 = vmatprep.subr.bf16.mxu0 0
    %6748 = vmatpush1.bf16.msra.mxu0 0
    %6749 = vmatprep.subr.bf16.mxu0 0
    %6750 = vmatpush1.bf16.msra.mxu0 0
    %6751 = vmatprep.subr.bf16.mxu0 0
    %6752 = vmatpush1.bf16.msra.mxu0 0
    %6753 = vmatprep.subr.bf16.mxu0 0
    %6754 = vmatpush1.bf16.msra.mxu0 0
    %6755 = vmatprep.mubr.bf16.mxu0 0
    %6756 = vmatmul.mubr.bf16.gmra.mrb[0].mxu0 %v6147
    %v6757 = vpop.f32.mrb[0].mxu0
    %v6758 = vadd.f32 %v6718, %v6757
    %v6759 = vpop.f32.mrb[0].mxu0
    %v6760 = vpop.f32.mrb[0].mxu0
    %v6761 = vpop.f32.mrb[0].mxu0
    %6762 = vdwg.mxu0
    %6763 = vst [vmem:[#allocation13] sm:$0xff] %v6758
    // Predicated region
    $region54: #{mnist_classifier_forward.1} parent=1 // pred_check
      _
    $region55: #{mnist_classifier_forward.1} parent=1 // pred_check_branch
      %6765 = sbr.rel (0) target = $region57
    $region56: #{mnist_classifier_forward.1} parent=1 // pred_region
      %s6767 = ssub.s32 128, 128
      %6768 = vsyncadd [#allocation4], %s6767
      %s6770 = sshll.u32 [#allocation13], 4
      %s6771 = int_to_ptr.vmem [resolvable:$true] %s6770
      %6773 = dma.vmem_to_hbm [thread:$0]  %s6771, 128, %s7, [#allocation4]
    $region57: #{mnist_classifier_forward.1} parent=1 // pred_fallthru
      _
    // Predicated region
    $region58: #{mnist_classifier_forward.1} parent=1 // pred_check
      _
    $region59: #{mnist_classifier_forward.1} parent=1 // pred_check_branch
      %6775 = sbr.rel (0) target = $region61
    $region60: #{mnist_classifier_forward.1} parent=1 // pred_region
      %6776 = dma.done [#allocation4], 128
    $region61: #{mnist_classifier_forward.1} parent=1 // pred_fallthru
      _
    %6777 = vsyncpa [#allocation3], 1
    %6778 = vsyncpa [#allocation6], 1
    %6779 = vsyncpa [#allocation9], 1
    %6780 = vsyncpa [#allocation12], 1
    %6781 = vsyncpa [#allocation4], 1

</llo_original>
